<compile_context>
chip_gen: v5e
topology: v5e:2x2
jax: 0.10.0
libtpu: 0.0.40
codegen_flags: <defaults>
</compile_context>

<pallas_src>
import functools

import jax
import jax.numpy as jnp
from jax.experimental import pallas as pl
from jax.experimental.pallas import tpu as pltpu


def _round_up(x, m):
    return (x + m - 1) // m * m


# ----------------------------- Pallas kernel --------------------------------

def _conv_bn_kernel(x_ref, w_ref, b_ref, *rest, k, stride, th, wo, relu,
                    has_res, has_sc, group_rows):
    """Fused k x k conv (+ optional fused 1x1 shortcut conv) + folded BN
    (+ residual) (+ ReLU).

    x_ref : (tb, stride*stride, Hq, Wq, Cip) bf16 -- phase-decomposed image(s);
            the block is indexed by image only, so it stays VMEM-resident
            across the output-row-block grid axis.
    w_ref : (k*k*Cip, Cop) bf16 -- taps ordered [kh, kw, ci], BN scale folded
            into the output-channel columns.
    b_ref : (1, Cop) f32 -- folded BatchNorm bias.
    rest  : [wsc_ref (Cip, Cop) bf16, bsc_ref (1, Cop) f32]   if has_sc
            [r_ref (Mt, Cop) bf16]                            if has_res
            o_ref (Mt, Cop), [osc_ref (Mt, Cop) bf16          if has_sc]
    """
    rest = list(rest)
    wsc_ref = bsc_ref = r_ref = osc_ref = None
    if has_sc:
        wsc_ref, bsc_ref = rest.pop(0), rest.pop(0)
    if has_res:
        r_ref = rest.pop(0)
    o_ref = rest.pop(0)
    if has_sc:
        osc_ref = rest.pop(0)

    tb = x_ref.shape[0]
    cip = x_ref.shape[-1]
    m = tb * th * wo
    row0 = pl.program_id(1) * th          # first output row of this block

    def tap(kh, kw):
        # One conv tap = a contiguous slice of the phase-decomposed block;
        # im2col is never materialized in HBM or as a (m, k*k*Cip) buffer.
        ph = (kh % stride) * stride + (kw % stride)
        t = x_ref[:, ph,
                  pl.ds(row0 + kh // stride, th),
                  pl.ds(kw // stride, wo), :]
        return t.reshape(m, cip)

    # Per-tap / per-kh-row accumulation.  When Cip < 256 the k kw-taps of one
    # row are lane-concatenated so each dot has K = k*Cip >= 256 (fills the
    # 256-deep v6e/v7x MXU); for wide channels each K = Cip tap is deep enough.
    acc = None
    for kh in range(k):
        if group_rows:
            parts = [tap(kh, kw) for kw in range(k)]
            blk = parts[0] if k == 1 else jnp.concatenate(parts, axis=-1)
            d = jnp.dot(blk, w_ref[pl.ds(kh * k * cip, k * cip), :],
                        preferred_element_type=jnp.float32)
            acc = d if acc is None else acc + d
        else:
            for kw in range(k):
                d = jnp.dot(tap(kh, kw),
                            w_ref[pl.ds((kh * k + kw) * cip, cip), :],
                            preferred_element_type=jnp.float32)
                acc = d if acc is None else acc + d

    out = acc + b_ref[...]                         # BN scale already in w
    if has_res:
        out = out + r_ref[...].astype(jnp.float32)
    if relu:
        out = jnp.maximum(out, 0.0)
    o_ref[...] = out.astype(o_ref.dtype)

    if has_sc:
        # Fused 1x1 / stride-s shortcut conv: its receptive field is exactly
        # the centre tap of the k x k window -> one extra small dot.
        kc = (k - 1) // 2
        sc = jnp.dot(tap(kc, kc), wsc_ref[...],
                     preferred_element_type=jnp.float32) + bsc_ref[...]
        osc_ref[...] = sc.astype(osc_ref.dtype)


# ------------------------------ tiling helper --------------------------------

def _pick_row_tile(n, ho, wo, mt_cap=512, min_rows=128, min_steps=4):
    """Pick an output-row tile `th` (divides ho, th*wo sublane-aligned).
    Prefers th*wo in [min(min_rows, ho*wo), mt_cap] and a grid of >= min_steps
    so both v7x cores get work and the pipeline has depth."""
    cands = [t for t in range(1, ho + 1) if ho % t == 0 and (t * wo) % 8 == 0]
    if not cands:
        return None                       # handled by whole-batch fallback
    fits = [t for t in cands if t * wo <= mt_cap] or [min(cands)]
    floor = min(min_rows, ho * wo)
    good = [t for t in fits if t * wo >= floor] or [max(fits)]
    pref = [t for t in good if n * (ho // t) >= min_steps]
    return max(pref) if pref else min(good)


# ------------------------------ kernel wrapper -------------------------------

def conv_bn(x_nhwc, w_oihw, scale, bias, *, stride, relu, residual=None,
            shortcut=None, out_dtype=jnp.float32):
    """k x k conv (padding=(k-1)//2, no bias) with the BN affine folded in
    (scale -> weight columns), optional fused residual add + ReLU, and an
    optional fused 1x1/stride shortcut conv emitted as a second output.

    Returns (out (N*Ho*Wo, Cop), out_sc|None, (Ho, Wo), Cop).
    """
    N, H, W, Cin = x_nhwc.shape
    Co, Ci, kh_, kw_ = w_oihw.shape
    assert kh_ == kw_ and Ci <= Cin
    k = kh_
    pad = (k - 1) // 2
    Ho = (H + 2 * pad - k) // stride + 1
    Wo = (W + 2 * pad - k) // stride + 1
    Cip = _round_up(Cin, 128)
    Cop = _round_up(Co, 128)
    M = N * Ho * Wo

    # --- wrapper glue: ONE fused bf16 cast + spatial/channel pad pass, then
    # the stride-phase split (input-sized; never a 9x im2col in HBM). ---
    Hq = (k - 1) // stride + Ho
    Wq = (k - 1) // stride + Wo
    Hp, Wp = Hq * stride, Wq * stride
    xp = jnp.pad(x_nhwc.astype(jnp.bfloat16),
                 ((0, 0), (pad, Hp - H - pad), (pad, Wp - W - pad),
                  (0, Cip - Cin)))
    s2 = stride * stride
    if stride == 1:
        xph = xp.reshape(N, 1, Hq, Wq, Cip)
    else:
        xph = xp.reshape(N, Hq, stride, Wq, stride, Cip)
        xph = jnp.transpose(xph, (0, 2, 4, 1, 3, 5)).reshape(N, s2, Hq, Wq, Cip)

    # Weight as (k*k*Cip, Cop) bf16, taps ordered [kh, kw, ci]; BN scale folded
    # into the output-channel columns so the kernel epilogue is just + bias.
    w = jnp.transpose(w_oihw, (2, 3, 1, 0)).astype(jnp.float32)
    w = w * scale.astype(jnp.float32)[None, None, None, :]
    w = jnp.pad(w, ((0, 0), (0, 0), (0, Cip - Ci), (0, Cop - Co)))
    w_mat = w.reshape(k * k * Cip, Cop).astype(jnp.bfloat16)
    b_vec = jnp.pad(bias.astype(jnp.float32), (0, Cop - Co)).reshape(1, Cop)

    args = [xph, w_mat, b_vec]

    has_sc = shortcut is not None
    if has_sc:
        wsc, ssc, bsc = shortcut
        assert wsc.shape[0] == Co and wsc.shape[1] <= Cin
        assert wsc.shape[2:] == (1, 1)
        wsc_m = (wsc[:, :, 0, 0].astype(jnp.float32)
                 * ssc.astype(jnp.float32)[:, None]).T            # (Ci, Co)
        wsc_m = jnp.pad(wsc_m, ((0, Cip - wsc.shape[1]), (0, Cop - Co)))
        wsc_m = wsc_m.astype(jnp.bfloat16)
        bsc_v = jnp.pad(bsc.astype(jnp.float32), (0, Cop - Co)).reshape(1, Cop)
        args += [wsc_m, bsc_v]

    has_res = residual is not None
    if has_res:
        assert residual.shape == (M, Cop)
        args.append(residual)

    # --- tiling: one image per block along the grid's first axis, row blocks
    # along the second; fallback = one whole-batch block (always layout-legal).
    th = _pick_row_tile(N, Ho, Wo)
    if th is None:
        tb, th, n_hblk = N, Ho, 1
    else:
        tb, n_hblk = 1, Ho // th
    Mt = tb * th * Wo
    grid = (N // tb, n_hblk)
    group_rows = (k > 1) and (Cip < 256)

    in_specs = [
        pl.BlockSpec((tb, s2, Hq, Wq, Cip), lambda n, h: (n, 0, 0, 0, 0)),
        # Grid-invariant operands (constant index_map -> never re-DMA'd).
        pl.BlockSpec((k * k * Cip, Cop), lambda n, h: (0, 0)),
        pl.BlockSpec((1, Cop), lambda n, h: (0, 0)),
    ]
    if has_sc:
        in_specs += [pl.BlockSpec((Cip, Cop), lambda n, h: (0, 0)),
                     pl.BlockSpec((1, Cop), lambda n, h: (0, 0))]
    row_spec = pl.BlockSpec((Mt, Cop), lambda n, h: (n * n_hblk + h, 0))
    if has_res:
        in_specs.append(row_spec)

    if has_sc:
        out_shape = (jax.ShapeDtypeStruct((M, Cop), out_dtype),
                     jax.ShapeDtypeStruct((M, Cop), jnp.bfloat16))
        out_specs = (row_spec, row_spec)
    else:
        out_shape = jax.ShapeDtypeStruct((M, Cop), out_dtype)
        out_specs = row_spec

    out_bytes = jnp.dtype(out_dtype).itemsize
    flops = 2 * M * k * k * Cip * Cop + (2 * M * Cip * Cop if has_sc else 0)
    bytes_accessed = (xph.size * 2 + w_mat.size * 2 + Cop * 4
                      + M * Cop * out_bytes)
    if has_sc:
        bytes_accessed += Cip * Cop * 2 + Cop * 4 + M * Cop * 2
    if has_res:
        bytes_accessed += M * Cop * 2
    cost = pl.CostEstimate(flops=int(flops), transcendentals=0,
                           bytes_accessed=int(bytes_accessed))

    # Per-step VMEM budget (double-buffered operands + in-kernel temporaries)
    # -> explicit scoped-VMEM limit: above every generation's default, below
    # v7x's 64 MiB physical VMEM.
    x_blk = tb * s2 * Hq * Wq * Cip * 2
    w_blk = (w_mat.size * 2 + Cop * 4
             + ((Cip * Cop * 2 + Cop * 4) if has_sc else 0))
    io_blk = Mt * Cop * (out_bytes + (2 if has_res else 0)
                         + (2 if has_sc else 0))
    tmp = Mt * (k if group_rows else 1) * Cip * 2 + 2 * Mt * Cop * 4
    vmem_est = 2 * (x_blk + w_blk + io_blk) + tmp
    vmem_limit = int(min(56 * 1024 * 1024,
                         max(2 * vmem_est, 32 * 1024 * 1024)))

    kernel = functools.partial(_conv_bn_kernel, k=k, stride=stride, th=th,
                               wo=Wo, relu=relu, has_res=has_res,
                               has_sc=has_sc, group_rows=group_rows)
    out = pl.pallas_call(
        kernel,
        out_shape=out_shape,
        grid=grid,
        in_specs=in_specs,
        out_specs=out_specs,
        compiler_params=pltpu.CompilerParams(
            dimension_semantics=("parallel", "parallel"),
            vmem_limit_bytes=vmem_limit),
        cost_estimate=cost,
    )(*args)

    if has_sc:
        o, osc = out
    else:
        o, osc = out, None
    return o, osc, (Ho, Wo), Cop


# ------------------------------- forward pass --------------------------------

def fold_bn(gamma, beta, mean, var, eps=1e-5):
    scale = gamma / jnp.sqrt(var + eps)
    return scale, beta - mean * scale


def basic_block_forward(x_nchw, params, stride):
    """Pallas-based BasicBlock forward.  Input/output are NCHW float32."""
    x = jnp.transpose(x_nchw, (0, 2, 3, 1)).astype(jnp.float32)   # NHWC
    N, H, W, Cin = x.shape
    planes = params["w1"].shape[0]

    s1, b1 = fold_bn(*params["bn1"])
    if stride != 1:
        # conv1+bn1+relu and the 1x1-conv+bn shortcut share one pallas_call,
        # so the activation is padded / phase-split / read from HBM only once.
        ssc, bsc = fold_bn(*params["bn_sc"])
        out1, shortcut, (Ho, Wo), Cop = conv_bn(
            x, params["w1"], s1, b1, stride=stride, relu=True,
            shortcut=(params["w_sc"], ssc, bsc), out_dtype=jnp.bfloat16)
    else:
        # identity shortcut (PyTorch BasicBlock assumes in_planes == planes
        # when stride == 1); carried in bf16 to halve the residual HBM stream.
        assert Cin == planes
        out1, _, (Ho, Wo), Cop = conv_bn(
            x, params["w1"], s1, b1, stride=1, relu=True,
            out_dtype=jnp.bfloat16)
        shortcut = jnp.pad(x.astype(jnp.bfloat16),
                           ((0, 0), (0, 0), (0, 0), (0, Cop - Cin))
                           ).reshape(N * H * W, Cop)

    # conv2 + bn2 + residual add + relu (fused epilogue)
    s2b, b2b = fold_bn(*params["bn2"])
    out2, _, _, Cop2 = conv_bn(out1.reshape(N, Ho, Wo, Cop), params["w2"],
                               s2b, b2b, stride=1, relu=True,
                               residual=shortcut, out_dtype=jnp.float32)

    out = out2.reshape(N, Ho, Wo, Cop2)[..., :planes]
    return jnp.transpose(out, (0, 3, 1, 2))                       # back to NCHW


# --------------------------- plain-JAX reference -----------------------------

def _ref_conv(x_nchw, w_oihw, stride, padding):
    return jax.lax.conv_general_dilated(
        x_nchw, w_oihw, (stride, stride),
        ((padding, padding), (padding, padding)),
        dimension_numbers=("NCHW", "OIHW", "NCHW"))


def _ref_bn(x_nchw, gamma, beta, mean, var, eps=1e-5):
    g = gamma[None, :, None, None]
    b = beta[None, :, None, None]
    m = mean[None, :, None, None]
    v = var[None, :, None, None]
    return (x_nchw - m) / jnp.sqrt(v + eps) * g + b


def basic_block_reference(x_nchw, params, stride):
    out = _ref_conv(x_nchw, params["w1"], stride, 1)
    out = jax.nn.relu(_ref_bn(out, *params["bn1"]))
    out = _ref_conv(out, params["w2"], 1, 1)
    out = _ref_bn(out, *params["bn2"])
    if stride != 1:
        sc = _ref_conv(x_nchw, params["w_sc"], stride, 0)
        sc = _ref_bn(sc, *params["bn_sc"])
    else:
        sc = x_nchw
    return jax.nn.relu(out + sc)


# --------------------------------- main --------------------------------------

def make_params(key, in_planes, planes, stride):
    ks = jax.random.split(key, 16)

    def bn_params(k0, k1, k2, k3, c):
        gamma = 1.0 + 0.1 * jax.random.normal(k0, (c,), jnp.float32)
        beta = 0.1 * jax.random.normal(k1, (c,), jnp.float32)
        mean = 0.05 * jax.random.normal(k2, (c,), jnp.float32)
        var = 0.5 + jnp.abs(jax.random.normal(k3, (c,), jnp.float32)) * 0.5
        return (gamma, beta, mean, var)

    params = {
        "w1": 0.1 * jax.random.normal(ks[0], (planes, in_planes, 3, 3),
                                      jnp.float32),
        "bn1": bn_params(ks[1], ks[2], ks[3], ks[4], planes),
        "w2": 0.1 * jax.random.normal(ks[5], (planes, planes, 3, 3),
                                      jnp.float32),
        "bn2": bn_params(ks[6], ks[7], ks[8], ks[9], planes),
    }
    if stride != 1:
        params["w_sc"] = 0.1 * jax.random.normal(
            ks[10], (planes, in_planes, 1, 1), jnp.float32)
        params["bn_sc"] = bn_params(ks[11], ks[12], ks[13], ks[14], planes)
    return params


if __name__ == "__main__":
    key = jax.random.PRNGKey(0)
    k_x, k_p1, k_p2 = jax.random.split(key, 3)

    fwd = jax.jit(basic_block_forward, static_argnums=2)

    # Case 1: stride=1 identity shortcut (in_planes == planes)
    x1 = jax.random.normal(k_x, (2, 4, 16, 16), jnp.float32)
    p1 = make_params(k_p1, in_planes=4, planes=4, stride=1)
    y1 = jax.block_until_ready(fwd(x1, p1, 1))
    y1_ref = basic_block_reference(x1, p1, 1)
    assert y1.shape == (2, 4, 16, 16)
    # bf16 MXU inputs (f32 accumulation) => relaxed tolerance vs f32 reference
    assert jnp.allclose(y1, y1_ref, atol=5e-2, rtol=5e-2)

    # Case 2: stride=2 with fused 1x1-conv + BN shortcut
    p2 = make_params(k_p2, in_planes=4, planes=8, stride=2)
    y2 = jax.block_until_ready(fwd(x1, p2, 2))
    y2_ref = basic_block_reference(x1, p2, 2)
    assert y2.shape == (2, 8, 8, 8)
    assert jnp.allclose(y2, y2_ref, atol=5e-2, rtol=5e-2)

    print("KERNEL_OK")
</pallas_src>

<mosaic_0001>
module attributes {stable_mosaic.version = 11 : i64} {
  func.func @_conv_bn_kernel(%arg0: i32, %arg1: i32, %arg2: memref<1x1x18x18x128xbf16, #tpu.memory_space<vmem>>, %arg3: memref<1152x128xbf16, #tpu.memory_space<vmem>>, %arg4: memref<1x128xf32, #tpu.memory_space<vmem>>, %arg5: memref<128x128xbf16, #tpu.memory_space<vmem>>) attributes {dimension_semantics = [#tpu.dimension_semantics<parallel>, #tpu.dimension_semantics<parallel>], iteration_bounds = array<i64: 2, 2>, scalar_prefetch = 0 : i64, scratch_operands = 0 : i64, tpu.core_type = #tpu.core_type<tc>, window_params = [{transform_indices = @transform_0, window_bounds = array<i64: 1, 1, 18, 18, 128>}, {pipeline_mode = #tpu.pipeline_mode<synchronous>, transform_indices = @transform_1, window_bounds = array<i64: 1152, 128>}, {pipeline_mode = #tpu.pipeline_mode<synchronous>, transform_indices = @transform_2, window_bounds = array<i64: 1, 128>}, {transform_indices = @transform_3, window_bounds = array<i64: 128, 128>}]} {
    %c8_i32 = arith.constant 8 : i32
    %0 = arith.muli %arg1, %c8_i32 : i32
    %c0_i32 = arith.constant 0 : i32
    %1 = arith.addi %0, %c0_i32 : i32
    %c0 = arith.constant 0 : index
    %c0_0 = arith.constant 0 : index
    %2 = arith.index_cast %1 : i32 to index
    %c0_1 = arith.constant 0 : index
    %c0_2 = arith.constant 0 : index
    %3 = vector.load %arg2[%c0, %c0_0, %2, %c0_1, %c0_2] : memref<1x1x18x18x128xbf16, #tpu.memory_space<vmem>>, vector<1x1x8x16x128xbf16>
    %4 = vector.shape_cast %3 : vector<1x1x8x16x128xbf16> to vector<1x8x16x128xbf16>
    %5 = vector.shape_cast %4 : vector<1x8x16x128xbf16> to vector<128x128xbf16>
    %c0_i32_3 = arith.constant 0 : i32
    %6 = arith.addi %0, %c0_i32_3 : i32
    %c0_4 = arith.constant 0 : index
    %c0_5 = arith.constant 0 : index
    %7 = arith.index_cast %6 : i32 to index
    %c1 = arith.constant 1 : index
    %c0_6 = arith.constant 0 : index
    %8 = vector.load %arg2[%c0_4, %c0_5, %7, %c1, %c0_6] : memref<1x1x18x18x128xbf16, #tpu.memory_space<vmem>>, vector<1x1x8x16x128xbf16>
    %9 = vector.shape_cast %8 : vector<1x1x8x16x128xbf16> to vector<1x8x16x128xbf16>
    %10 = vector.shape_cast %9 : vector<1x8x16x128xbf16> to vector<128x128xbf16>
    %c0_i32_7 = arith.constant 0 : i32
    %11 = arith.addi %0, %c0_i32_7 : i32
    %c0_8 = arith.constant 0 : index
    %c0_9 = arith.constant 0 : index
    %12 = arith.index_cast %11 : i32 to index
    %c2 = arith.constant 2 : index
    %c0_10 = arith.constant 0 : index
    %13 = vector.load %arg2[%c0_8, %c0_9, %12, %c2, %c0_10] : memref<1x1x18x18x128xbf16, #tpu.memory_space<vmem>>, vector<1x1x8x16x128xbf16>
    %14 = vector.shape_cast %13 : vector<1x1x8x16x128xbf16> to vector<1x8x16x128xbf16>
    %15 = vector.shape_cast %14 : vector<1x8x16x128xbf16> to vector<128x128xbf16>
    %16 = tpu.concatenate %5, %10, %15 in 1 : vector<128x128xbf16>, vector<128x128xbf16>, vector<128x128xbf16> -> vector<128x384xbf16>
    %c0_11 = arith.constant 0 : index
    %c0_12 = arith.constant 0 : index
    %17 = vector.load %arg3[%c0_11, %c0_12] : memref<1152x128xbf16, #tpu.memory_space<vmem>>, vector<384x128xbf16>
    %cst = arith.constant dense<0.000000e+00> : vector<128x128xf32>
    %18 = tpu.matmul %16, %17, %cst {dimension_numbers = #tpu.dot_dimension_numbers<[1], [0], [0], [1], [0, 0, 1, 1], [], []>} : vector<128x384xbf16>, vector<384x128xbf16>, vector<128x128xf32> -> vector<128x128xf32>
    %c1_i32 = arith.constant 1 : i32
    %19 = arith.addi %0, %c1_i32 : i32
    %c0_13 = arith.constant 0 : index
    %c0_14 = arith.constant 0 : index
    %20 = arith.index_cast %19 : i32 to index
    %c0_15 = arith.constant 0 : index
    %c0_16 = arith.constant 0 : index
    %21 = vector.load %arg2[%c0_13, %c0_14, %20, %c0_15, %c0_16] : memref<1x1x18x18x128xbf16, #tpu.memory_space<vmem>>, vector<1x1x8x16x128xbf16>
    %22 = vector.shape_cast %21 : vector<1x1x8x16x128xbf16> to vector<1x8x16x128xbf16>
    %23 = vector.shape_cast %22 : vector<1x8x16x128xbf16> to vector<128x128xbf16>
    %c1_i32_17 = arith.constant 1 : i32
    %24 = arith.addi %0, %c1_i32_17 : i32
    %c0_18 = arith.constant 0 : index
    %c0_19 = arith.constant 0 : index
    %25 = arith.index_cast %24 : i32 to index
    %c1_20 = arith.constant 1 : index
    %c0_21 = arith.constant 0 : index
    %26 = vector.load %arg2[%c0_18, %c0_19, %25, %c1_20, %c0_21] : memref<1x1x18x18x128xbf16, #tpu.memory_space<vmem>>, vector<1x1x8x16x128xbf16>
    %27 = vector.shape_cast %26 : vector<1x1x8x16x128xbf16> to vector<1x8x16x128xbf16>
    %28 = vector.shape_cast %27 : vector<1x8x16x128xbf16> to vector<128x128xbf16>
    %c1_i32_22 = arith.constant 1 : i32
    %29 = arith.addi %0, %c1_i32_22 : i32
    %c0_23 = arith.constant 0 : index
    %c0_24 = arith.constant 0 : index
    %30 = arith.index_cast %29 : i32 to index
    %c2_25 = arith.constant 2 : index
    %c0_26 = arith.constant 0 : index
    %31 = vector.load %arg2[%c0_23, %c0_24, %30, %c2_25, %c0_26] : memref<1x1x18x18x128xbf16, #tpu.memory_space<vmem>>, vector<1x1x8x16x128xbf16>
    %32 = vector.shape_cast %31 : vector<1x1x8x16x128xbf16> to vector<1x8x16x128xbf16>
    %33 = vector.shape_cast %32 : vector<1x8x16x128xbf16> to vector<128x128xbf16>
    %34 = tpu.concatenate %23, %28, %33 in 1 : vector<128x128xbf16>, vector<128x128xbf16>, vector<128x128xbf16> -> vector<128x384xbf16>
    %c384 = arith.constant 384 : index
    %c0_27 = arith.constant 0 : index
    %35 = vector.load %arg3[%c384, %c0_27] : memref<1152x128xbf16, #tpu.memory_space<vmem>>, vector<384x128xbf16>
    %cst_28 = arith.constant dense<0.000000e+00> : vector<128x128xf32>
    %36 = tpu.matmul %34, %35, %cst_28 {dimension_numbers = #tpu.dot_dimension_numbers<[1], [0], [0], [1], [0, 0, 1, 1], [], []>} : vector<128x384xbf16>, vector<384x128xbf16>, vector<128x128xf32> -> vector<128x128xf32>
    %37 = arith.addf %18, %36 : vector<128x128xf32>
    %c2_i32 = arith.constant 2 : i32
    %38 = arith.addi %0, %c2_i32 : i32
    %c0_29 = arith.constant 0 : index
    %c0_30 = arith.constant 0 : index
    %39 = arith.index_cast %38 : i32 to index
    %c0_31 = arith.constant 0 : index
    %c0_32 = arith.constant 0 : index
    %40 = vector.load %arg2[%c0_29, %c0_30, %39, %c0_31, %c0_32] : memref<1x1x18x18x128xbf16, #tpu.memory_space<vmem>>, vector<1x1x8x16x128xbf16>
    %41 = vector.shape_cast %40 : vector<1x1x8x16x128xbf16> to vector<1x8x16x128xbf16>
    %42 = vector.shape_cast %41 : vector<1x8x16x128xbf16> to vector<128x128xbf16>
    %c2_i32_33 = arith.constant 2 : i32
    %43 = arith.addi %0, %c2_i32_33 : i32
    %c0_34 = arith.constant 0 : index
    %c0_35 = arith.constant 0 : index
    %44 = arith.index_cast %43 : i32 to index
    %c1_36 = arith.constant 1 : index
    %c0_37 = arith.constant 0 : index
    %45 = vector.load %arg2[%c0_34, %c0_35, %44, %c1_36, %c0_37] : memref<1x1x18x18x128xbf16, #tpu.memory_space<vmem>>, vector<1x1x8x16x128xbf16>
    %46 = vector.shape_cast %45 : vector<1x1x8x16x128xbf16> to vector<1x8x16x128xbf16>
    %47 = vector.shape_cast %46 : vector<1x8x16x128xbf16> to vector<128x128xbf16>
    %c2_i32_38 = arith.constant 2 : i32
    %48 = arith.addi %0, %c2_i32_38 : i32
    %c0_39 = arith.constant 0 : index
    %c0_40 = arith.constant 0 : index
    %49 = arith.index_cast %48 : i32 to index
    %c2_41 = arith.constant 2 : index
    %c0_42 = arith.constant 0 : index
    %50 = vector.load %arg2[%c0_39, %c0_40, %49, %c2_41, %c0_42] : memref<1x1x18x18x128xbf16, #tpu.memory_space<vmem>>, vector<1x1x8x16x128xbf16>
    %51 = vector.shape_cast %50 : vector<1x1x8x16x128xbf16> to vector<1x8x16x128xbf16>
    %52 = vector.shape_cast %51 : vector<1x8x16x128xbf16> to vector<128x128xbf16>
    %53 = tpu.concatenate %42, %47, %52 in 1 : vector<128x128xbf16>, vector<128x128xbf16>, vector<128x128xbf16> -> vector<128x384xbf16>
    %c768 = arith.constant 768 : index
    %c0_43 = arith.constant 0 : index
    %54 = vector.load %arg3[%c768, %c0_43] : memref<1152x128xbf16, #tpu.memory_space<vmem>>, vector<384x128xbf16>
    %cst_44 = arith.constant dense<0.000000e+00> : vector<128x128xf32>
    %55 = tpu.matmul %53, %54, %cst_44 {dimension_numbers = #tpu.dot_dimension_numbers<[1], [0], [0], [1], [0, 0, 1, 1], [], []>} : vector<128x384xbf16>, vector<384x128xbf16>, vector<128x128xf32> -> vector<128x128xf32>
    %56 = arith.addf %37, %55 : vector<128x128xf32>
    %c0_45 = arith.constant 0 : index
    %c0_46 = arith.constant 0 : index
    %57 = vector.load %arg4[%c0_45, %c0_46] : memref<1x128xf32, #tpu.memory_space<vmem>>, vector<1x128xf32>
    %58 = vector.broadcast %57 : vector<1x128xf32> to vector<128x128xf32>
    %59 = arith.addf %56, %58 : vector<128x128xf32>
    %cst_47 = arith.constant 0.000000e+00 : f32
    %60 = vector.broadcast %cst_47 : f32 to vector<128x128xf32>
    %61 = arith.maximumf %59, %60 : vector<128x128xf32>
    %62 = arith.truncf %61 : vector<128x128xf32> to vector<128x128xbf16>
    %c0_48 = arith.constant 0 : index
    %c0_49 = arith.constant 0 : index
    %63 = vector.load %arg5[%c0_48, %c0_49] : memref<128x128xbf16, #tpu.memory_space<vmem>>, vector<128x128xbf16>
    tpu.vector_store %arg5[%c0_48, %c0_49], %62 {strides = array<i32>} : memref<128x128xbf16, #tpu.memory_space<vmem>>, vector<128x128xbf16>,
    return
  }
  func.func @transform_0(%arg0: i32, %arg1: i32) -> (i32, i32, i32, i32, i32) {
    %c0_i32 = arith.constant 0 : i32
    %c0_i32_0 = arith.constant 0 : i32
    %c0_i32_1 = arith.constant 0 : i32
    %c0_i32_2 = arith.constant 0 : i32
    %c0_i32_3 = arith.constant 0 : i32
    return %arg0, %c0_i32, %c0_i32_0, %c0_i32_1, %c0_i32_2 : i32, i32, i32, i32, i32
  }
  func.func @transform_1(%arg0: i32, %arg1: i32) -> (i32, i32) {
    %c0_i32 = arith.constant 0 : i32
    %c0_i32_0 = arith.constant 0 : i32
    %c0_i32_1 = arith.constant 0 : i32
    return %c0_i32, %c0_i32_0 : i32, i32
  }
  func.func @transform_2(%arg0: i32, %arg1: i32) -> (i32, i32) {
    %c0_i32 = arith.constant 0 : i32
    %c0_i32_0 = arith.constant 0 : i32
    %c0_i32_1 = arith.constant 0 : i32
    return %c0_i32, %c0_i32_0 : i32, i32
  }
  func.func @transform_3(%arg0: i32, %arg1: i32) -> (i32, i32) {
    %c2_i32 = arith.constant 2 : i32
    %0 = arith.muli %arg0, %c2_i32 : i32
    %1 = arith.addi %0, %arg1 : i32
    %c0_i32 = arith.constant 0 : i32
    %c0_i32_0 = arith.constant 0 : i32
    return %1, %c0_i32 : i32, i32
  }
}

module attributes {stable_mosaic.version = 11 : i64} {
  func.func @_conv_bn_kernel(%arg0: i32, %arg1: i32, %arg2: memref<1x1x18x18x128xbf16, #tpu.memory_space<vmem>>, %arg3: memref<1152x128xbf16, #tpu.memory_space<vmem>>, %arg4: memref<1x128xf32, #tpu.memory_space<vmem>>, %arg5: memref<128x128xbf16, #tpu.memory_space<vmem>>, %arg6: memref<128x128xf32, #tpu.memory_space<vmem>>) attributes {dimension_semantics = [#tpu.dimension_semantics<parallel>, #tpu.dimension_semantics<parallel>], iteration_bounds = array<i64: 2, 2>, scalar_prefetch = 0 : i64, scratch_operands = 0 : i64, tpu.core_type = #tpu.core_type<tc>, window_params = [{transform_indices = @transform_0, window_bounds = array<i64: 1, 1, 18, 18, 128>}, {pipeline_mode = #tpu.pipeline_mode<synchronous>, transform_indices = @transform_1, window_bounds = array<i64: 1152, 128>}, {pipeline_mode = #tpu.pipeline_mode<synchronous>, transform_indices = @transform_2, window_bounds = array<i64: 1, 128>}, {transform_indices = @transform_3, window_bounds = array<i64: 128, 128>}, {transform_indices = @transform_4, window_bounds = array<i64: 128, 128>}]} {
    %c8_i32 = arith.constant 8 : i32
    %0 = arith.muli %arg1, %c8_i32 : i32
    %c0_i32 = arith.constant 0 : i32
    %1 = arith.addi %0, %c0_i32 : i32
    %c0 = arith.constant 0 : index
    %c0_0 = arith.constant 0 : index
    %2 = arith.index_cast %1 : i32 to index
    %c0_1 = arith.constant 0 : index
    %c0_2 = arith.constant 0 : index
    %3 = vector.load %arg2[%c0, %c0_0, %2, %c0_1, %c0_2] : memref<1x1x18x18x128xbf16, #tpu.memory_space<vmem>>, vector<1x1x8x16x128xbf16>
    %4 = vector.shape_cast %3 : vector<1x1x8x16x128xbf16> to vector<1x8x16x128xbf16>
    %5 = vector.shape_cast %4 : vector<1x8x16x128xbf16> to vector<128x128xbf16>
    %c0_i32_3 = arith.constant 0 : i32
    %6 = arith.addi %0, %c0_i32_3 : i32
    %c0_4 = arith.constant 0 : index
    %c0_5 = arith.constant 0 : index
    %7 = arith.index_cast %6 : i32 to index
    %c1 = arith.constant 1 : index
    %c0_6 = arith.constant 0 : index
    %8 = vector.load %arg2[%c0_4, %c0_5, %7, %c1, %c0_6] : memref<1x1x18x18x128xbf16, #tpu.memory_space<vmem>>, vector<1x1x8x16x128xbf16>
    %9 = vector.shape_cast %8 : vector<1x1x8x16x128xbf16> to vector<1x8x16x128xbf16>
    %10 = vector.shape_cast %9 : vector<1x8x16x128xbf16> to vector<128x128xbf16>
    %c0_i32_7 = arith.constant 0 : i32
    %11 = arith.addi %0, %c0_i32_7 : i32
    %c0_8 = arith.constant 0 : index
    %c0_9 = arith.constant 0 : index
    %12 = arith.index_cast %11 : i32 to index
    %c2 = arith.constant 2 : index
    %c0_10 = arith.constant 0 : index
    %13 = vector.load %arg2[%c0_8, %c0_9, %12, %c2, %c0_10] : memref<1x1x18x18x128xbf16, #tpu.memory_space<vmem>>, vector<1x1x8x16x128xbf16>
    %14 = vector.shape_cast %13 : vector<1x1x8x16x128xbf16> to vector<1x8x16x128xbf16>
    %15 = vector.shape_cast %14 : vector<1x8x16x128xbf16> to vector<128x128xbf16>
    %16 = tpu.concatenate %5, %10, %15 in 1 : vector<128x128xbf16>, vector<128x128xbf16>, vector<128x128xbf16> -> vector<128x384xbf16>
    %c0_11 = arith.constant 0 : index
    %c0_12 = arith.constant 0 : index
    %17 = vector.load %arg3[%c0_11, %c0_12] : memref<1152x128xbf16, #tpu.memory_space<vmem>>, vector<384x128xbf16>
    %cst = arith.constant dense<0.000000e+00> : vector<128x128xf32>
    %18 = tpu.matmul %16, %17, %cst {dimension_numbers = #tpu.dot_dimension_numbers<[1], [0], [0], [1], [0, 0, 1, 1], [], []>} : vector<128x384xbf16>, vector<384x128xbf16>, vector<128x128xf32> -> vector<128x128xf32>
    %c1_i32 = arith.constant 1 : i32
    %19 = arith.addi %0, %c1_i32 : i32
    %c0_13 = arith.constant 0 : index
    %c0_14 = arith.constant 0 : index
    %20 = arith.index_cast %19 : i32 to index
    %c0_15 = arith.constant 0 : index
    %c0_16 = arith.constant 0 : index
    %21 = vector.load %arg2[%c0_13, %c0_14, %20, %c0_15, %c0_16] : memref<1x1x18x18x128xbf16, #tpu.memory_space<vmem>>, vector<1x1x8x16x128xbf16>
    %22 = vector.shape_cast %21 : vector<1x1x8x16x128xbf16> to vector<1x8x16x128xbf16>
    %23 = vector.shape_cast %22 : vector<1x8x16x128xbf16> to vector<128x128xbf16>
    %c1_i32_17 = arith.constant 1 : i32
    %24 = arith.addi %0, %c1_i32_17 : i32
    %c0_18 = arith.constant 0 : index
    %c0_19 = arith.constant 0 : index
    %25 = arith.index_cast %24 : i32 to index
    %c1_20 = arith.constant 1 : index
    %c0_21 = arith.constant 0 : index
    %26 = vector.load %arg2[%c0_18, %c0_19, %25, %c1_20, %c0_21] : memref<1x1x18x18x128xbf16, #tpu.memory_space<vmem>>, vector<1x1x8x16x128xbf16>
    %27 = vector.shape_cast %26 : vector<1x1x8x16x128xbf16> to vector<1x8x16x128xbf16>
    %28 = vector.shape_cast %27 : vector<1x8x16x128xbf16> to vector<128x128xbf16>
    %c1_i32_22 = arith.constant 1 : i32
    %29 = arith.addi %0, %c1_i32_22 : i32
    %c0_23 = arith.constant 0 : index
    %c0_24 = arith.constant 0 : index
    %30 = arith.index_cast %29 : i32 to index
    %c2_25 = arith.constant 2 : index
    %c0_26 = arith.constant 0 : index
    %31 = vector.load %arg2[%c0_23, %c0_24, %30, %c2_25, %c0_26] : memref<1x1x18x18x128xbf16, #tpu.memory_space<vmem>>, vector<1x1x8x16x128xbf16>
    %32 = vector.shape_cast %31 : vector<1x1x8x16x128xbf16> to vector<1x8x16x128xbf16>
    %33 = vector.shape_cast %32 : vector<1x8x16x128xbf16> to vector<128x128xbf16>
    %34 = tpu.concatenate %23, %28, %33 in 1 : vector<128x128xbf16>, vector<128x128xbf16>, vector<128x128xbf16> -> vector<128x384xbf16>
    %c384 = arith.constant 384 : index
    %c0_27 = arith.constant 0 : index
    %35 = vector.load %arg3[%c384, %c0_27] : memref<1152x128xbf16, #tpu.memory_space<vmem>>, vector<384x128xbf16>
    %cst_28 = arith.constant dense<0.000000e+00> : vector<128x128xf32>
    %36 = tpu.matmul %34, %35, %cst_28 {dimension_numbers = #tpu.dot_dimension_numbers<[1], [0], [0], [1], [0, 0, 1, 1], [], []>} : vector<128x384xbf16>, vector<384x128xbf16>, vector<128x128xf32> -> vector<128x128xf32>
    %37 = arith.addf %18, %36 : vector<128x128xf32>
    %c2_i32 = arith.constant 2 : i32
    %38 = arith.addi %0, %c2_i32 : i32
    %c0_29 = arith.constant 0 : index
    %c0_30 = arith.constant 0 : index
    %39 = arith.index_cast %38 : i32 to index
    %c0_31 = arith.constant 0 : index
    %c0_32 = arith.constant 0 : index
    %40 = vector.load %arg2[%c0_29, %c0_30, %39, %c0_31, %c0_32] : memref<1x1x18x18x128xbf16, #tpu.memory_space<vmem>>, vector<1x1x8x16x128xbf16>
    %41 = vector.shape_cast %40 : vector<1x1x8x16x128xbf16> to vector<1x8x16x128xbf16>
    %42 = vector.shape_cast %41 : vector<1x8x16x128xbf16> to vector<128x128xbf16>
    %c2_i32_33 = arith.constant 2 : i32
    %43 = arith.addi %0, %c2_i32_33 : i32
    %c0_34 = arith.constant 0 : index
    %c0_35 = arith.constant 0 : index
    %44 = arith.index_cast %43 : i32 to index
    %c1_36 = arith.constant 1 : index
    %c0_37 = arith.constant 0 : index
    %45 = vector.load %arg2[%c0_34, %c0_35, %44, %c1_36, %c0_37] : memref<1x1x18x18x128xbf16, #tpu.memory_space<vmem>>, vector<1x1x8x16x128xbf16>
    %46 = vector.shape_cast %45 : vector<1x1x8x16x128xbf16> to vector<1x8x16x128xbf16>
    %47 = vector.shape_cast %46 : vector<1x8x16x128xbf16> to vector<128x128xbf16>
    %c2_i32_38 = arith.constant 2 : i32
    %48 = arith.addi %0, %c2_i32_38 : i32
    %c0_39 = arith.constant 0 : index
    %c0_40 = arith.constant 0 : index
    %49 = arith.index_cast %48 : i32 to index
    %c2_41 = arith.constant 2 : index
    %c0_42 = arith.constant 0 : index
    %50 = vector.load %arg2[%c0_39, %c0_40, %49, %c2_41, %c0_42] : memref<1x1x18x18x128xbf16, #tpu.memory_space<vmem>>, vector<1x1x8x16x128xbf16>
    %51 = vector.shape_cast %50 : vector<1x1x8x16x128xbf16> to vector<1x8x16x128xbf16>
    %52 = vector.shape_cast %51 : vector<1x8x16x128xbf16> to vector<128x128xbf16>
    %53 = tpu.concatenate %42, %47, %52 in 1 : vector<128x128xbf16>, vector<128x128xbf16>, vector<128x128xbf16> -> vector<128x384xbf16>
    %c768 = arith.constant 768 : index
    %c0_43 = arith.constant 0 : index
    %54 = vector.load %arg3[%c768, %c0_43] : memref<1152x128xbf16, #tpu.memory_space<vmem>>, vector<384x128xbf16>
    %cst_44 = arith.constant dense<0.000000e+00> : vector<128x128xf32>
    %55 = tpu.matmul %53, %54, %cst_44 {dimension_numbers = #tpu.dot_dimension_numbers<[1], [0], [0], [1], [0, 0, 1, 1], [], []>} : vector<128x384xbf16>, vector<384x128xbf16>, vector<128x128xf32> -> vector<128x128xf32>
    %56 = arith.addf %37, %55 : vector<128x128xf32>
    %c0_45 = arith.constant 0 : index
    %c0_46 = arith.constant 0 : index
    %57 = vector.load %arg4[%c0_45, %c0_46] : memref<1x128xf32, #tpu.memory_space<vmem>>, vector<1x128xf32>
    %58 = vector.broadcast %57 : vector<1x128xf32> to vector<128x128xf32>
    %59 = arith.addf %56, %58 : vector<128x128xf32>
    %c0_47 = arith.constant 0 : index
    %c0_48 = arith.constant 0 : index
    %60 = vector.load %arg5[%c0_47, %c0_48] : memref<128x128xbf16, #tpu.memory_space<vmem>>, vector<128x128xbf16>
    %61 = arith.extf %60 : vector<128x128xbf16> to vector<128x128xf32>
    %62 = arith.addf %59, %61 : vector<128x128xf32>
    %cst_49 = arith.constant 0.000000e+00 : f32
    %63 = vector.broadcast %cst_49 : f32 to vector<128x128xf32>
    %64 = arith.maximumf %62, %63 : vector<128x128xf32>
    %c0_50 = arith.constant 0 : index
    %c0_51 = arith.constant 0 : index
    %65 = vector.load %arg6[%c0_50, %c0_51] : memref<128x128xf32, #tpu.memory_space<vmem>>, vector<128x128xf32>
    tpu.vector_store %arg6[%c0_50, %c0_51], %64 {strides = array<i32>} : memref<128x128xf32, #tpu.memory_space<vmem>>, vector<128x128xf32>,
    return
  }
  func.func @transform_0(%arg0: i32, %arg1: i32) -> (i32, i32, i32, i32, i32) {
    %c0_i32 = arith.constant 0 : i32
    %c0_i32_0 = arith.constant 0 : i32
    %c0_i32_1 = arith.constant 0 : i32
    %c0_i32_2 = arith.constant 0 : i32
    %c0_i32_3 = arith.constant 0 : i32
    return %arg0, %c0_i32, %c0_i32_0, %c0_i32_1, %c0_i32_2 : i32, i32, i32, i32, i32
  }
  func.func @transform_1(%arg0: i32, %arg1: i32) -> (i32, i32) {
    %c0_i32 = arith.constant 0 : i32
    %c0_i32_0 = arith.constant 0 : i32
    %c0_i32_1 = arith.constant 0 : i32
    return %c0_i32, %c0_i32_0 : i32, i32
  }
  func.func @transform_2(%arg0: i32, %arg1: i32) -> (i32, i32) {
    %c0_i32 = arith.constant 0 : i32
    %c0_i32_0 = arith.constant 0 : i32
    %c0_i32_1 = arith.constant 0 : i32
    return %c0_i32, %c0_i32_0 : i32, i32
  }
  func.func @transform_3(%arg0: i32, %arg1: i32) -> (i32, i32) {
    %c2_i32 = arith.constant 2 : i32
    %0 = arith.muli %arg0, %c2_i32 : i32
    %1 = arith.addi %0, %arg1 : i32
    %c0_i32 = arith.constant 0 : i32
    %c0_i32_0 = arith.constant 0 : i32
    return %1, %c0_i32 : i32, i32
  }
  func.func @transform_4(%arg0: i32, %arg1: i32) -> (i32, i32) {
    %c2_i32 = arith.constant 2 : i32
    %0 = arith.muli %arg0, %c2_i32 : i32
    %1 = arith.addi %0, %arg1 : i32
    %c0_i32 = arith.constant 0 : i32
    %c0_i32_0 = arith.constant 0 : i32
    return %1, %c0_i32 : i32, i32
  }
}

</mosaic_0001>

<llo_original>
// kernel: basic_block_forward.2
$region0: #{basic_block_forward.2}
  #allocation0 [shape = 'u32[]', space=smem, size = 0x4, offset = 0x4, fixed_abs, tag = 'smem constant byte address 0x4 - core index']
  #allocation1 [shape = 'u32[72,128]{1,0:T(1,128)}', space=vmem, size = 0x9000, scoped, tag = 'internal scratch']
  %s0 = inlined_call_operand.vmem [shape: bf16[2,1,18,18,128], index: 0, kind: input, shape index: {}]
  %s1 = inlined_call_operand.vmem [shape: bf16[1152,128], index: 1, kind: input, shape index: {}]
  %s2 = inlined_call_operand.vmem [shape: f32[1,128], index: 2, kind: input, shape index: {}]
  %s3 = inlined_call_operand.vmem [shape: bf16[512,128], index: 3, kind: output, shape index: {}]
  %s4 = sld [smem:[#allocation0]]
  $region45: #{basic_block_forward.2} parent=0
    _
  %s6 = ssub.s32 1, %s4
  %s7 = scalar_select 0, %s6, %s4
  loop: start=0, step=1, limit=6
  $region2: #{basic_block_forward.2} parent=0 // loop_pre_header
    _
  $region3: #{basic_block_forward.2} parent=0 // loop_header
    %s9 = sphi 0, %s13
    %p10 = scmp.ge.s32.totalorder %s9, 6
    %s16 = sphi 0, %s28
    %s17 = sphi 0, %s24
    %s18 = sphi 0, %s16
    %s19 = sphi 0, %s17
    %s20 = sphi 0, %s18
    %s21 = sphi 0, %s19
    %s31 = sphi 0, %s33
    %s34 = sphi 0, %s31
    %s35 = sphi 0, %s34
    %s51 = sphi 0, %s35
    %s55 = sphi 0, %s55
    %s57 = sphi 0, %s55
    %s58 = sphi 0, %s57
    %s72 = sphi 0, %s58
    %s76 = sphi 0, %s76
    %s78 = sphi 0, %s76
    %s79 = sphi 0, %s78
    %s93 = sphi 0, %s79
    %s103 = sphi 0, %s105
    %s106 = sphi 0, %s103
    %s107 = sphi 0, %s106
    %s123 = sphi 0, %s107
  $region4: #{basic_block_forward.2} parent=0 // loop_header_branch
    %12 = sbr.rel (%p10) target = $region8
  $region5: #{basic_block_forward.2} parent=0 // loop_body
    %s14 = ssub.s32 %s9, 1
    %s15 = ssub.s32 %s9, 2
    %s22 = sadd.s32 1, %s17
    %p23 = scmp.ge.s32.totalorder %s22, 2
    %s24 = scalar_select %p23, 0, %s22
    %s25 = sadd.s32 1, %s16
    %s26 = scalar_select %p23, %s25, %s16
    %p27 = scmp.ge.s32.totalorder %s26, 2
    %s28 = scalar_select %p27, 0, %s26
    %s29 = ssub.s32 %s16, %s28
    %p30 = scmp.eq.s32.totalorder %s29, 0
    %s32 = sadd.s32 %s31, 1
    %s33 = scalar_select %p30, %s31, %s32
    %p36 = pneg %p30
    %p37 = scmp.eq.s32.totalorder %s9, 3
    %p38 = por %p36, %p37
    %p39 = scmp.ne.s32.totalorder %s31, %s34
    %p40 = scmp.eq.s32.totalorder %s9, 0
    %p41 = por %p39, %p40
    %p42 = scmp.ne.s32.totalorder %s31, %s34
    %p43 = scmp.eq.s32.totalorder %s14, 3
    %p44 = por %p42, %p43
    %p45 = scmp.ne.s32.totalorder %s34, %s35
    %p46 = scmp.eq.s32.totalorder %s14, 0
    %p47 = por %p45, %p46
    %p48 = scmp.ne.s32.totalorder %s34, %s35
    %p49 = scmp.eq.s32.totalorder %s15, 3
    %p50 = por %p48, %p49
    %p52 = scmp.ne.s32.totalorder %s35, %s51
    %p53 = scmp.eq.s32.totalorder %s15, 0
    %p54 = por %p52, %p53
    %s56 = sadd.s32 %s55, 1
    %p59 = scmp.eq.s32.totalorder %s9, 3
    %p60 = scmp.ne.s32.totalorder %s55, %s57
    %p61 = scmp.eq.s32.totalorder %s9, 0
    %p62 = por %p60, %p61
    %p63 = scmp.ne.s32.totalorder %s55, %s57
    %p64 = scmp.eq.s32.totalorder %s14, 3
    %p65 = por %p63, %p64
    %p66 = scmp.ne.s32.totalorder %s57, %s58
    %p67 = scmp.eq.s32.totalorder %s14, 0
    %p68 = por %p66, %p67
    %p69 = scmp.ne.s32.totalorder %s57, %s58
    %p70 = scmp.eq.s32.totalorder %s15, 3
    %p71 = por %p69, %p70
    %p73 = scmp.ne.s32.totalorder %s58, %s72
    %p74 = scmp.eq.s32.totalorder %s15, 0
    %p75 = por %p73, %p74
    %s77 = sadd.s32 %s76, 1
    %p80 = scmp.eq.s32.totalorder %s9, 3
    %p81 = scmp.ne.s32.totalorder %s76, %s78
    %p82 = scmp.eq.s32.totalorder %s9, 0
    %p83 = por %p81, %p82
    %p84 = scmp.ne.s32.totalorder %s76, %s78
    %p85 = scmp.eq.s32.totalorder %s14, 3
    %p86 = por %p84, %p85
    %p87 = scmp.ne.s32.totalorder %s78, %s79
    %p88 = scmp.eq.s32.totalorder %s14, 0
    %p89 = por %p87, %p88
    %p90 = scmp.ne.s32.totalorder %s78, %s79
    %p91 = scmp.eq.s32.totalorder %s15, 3
    %p92 = por %p90, %p91
    %p94 = scmp.ne.s32.totalorder %s79, %s93
    %p95 = scmp.eq.s32.totalorder %s15, 0
    %p96 = por %p94, %p95
    %s97 = smul.u32 %s16, 2
    %s98 = sadd.s32 %s97, %s17
    %s99 = smul.u32 %s28, 2
    %s100 = sadd.s32 %s99, %s24
    %s101 = ssub.s32 %s98, %s100
    %p102 = scmp.eq.s32.totalorder %s101, 0
    %s104 = sadd.s32 %s103, 1
    %s105 = scalar_select %p102, %s103, %s104
    %p108 = pneg %p102
    %p109 = scmp.eq.s32.totalorder %s9, 3
    %p110 = por %p108, %p109
    %p111 = scmp.ne.s32.totalorder %s103, %s106
    %p112 = scmp.eq.s32.totalorder %s9, 0
    %p113 = por %p111, %p112
    %p114 = scmp.ne.s32.totalorder %s103, %s106
    %p115 = scmp.eq.s32.totalorder %s14, 3
    %p116 = por %p114, %p115
    %p117 = scmp.ne.s32.totalorder %s106, %s107
    %p118 = scmp.eq.s32.totalorder %s14, 0
    %p119 = por %p117, %p118
    %p120 = scmp.ne.s32.totalorder %s106, %s107
    %p121 = scmp.eq.s32.totalorder %s15, 3
    %p122 = por %p120, %p121
    %p124 = scmp.ne.s32.totalorder %s107, %s123
    %p125 = scmp.eq.s32.totalorder %s15, 0
    %p126 = por %p124, %p125
    %p127 = scmp.le.s32.totalorder 1, %s9
    %p128 = scmp.lt.s32.totalorder %s9, 5
    %p129 = pnand %p127, %p128
    %p130 = pneg %p129
    // Predicated region
    $region9: #{basic_block_forward.2} parent=5 // pred_check
      _
    $region10: #{basic_block_forward.2} parent=5 // pred_check_branch
      %132 = sbr.rel (%p129) target = $region12
    $region11: #{basic_block_forward.2} parent=5 // pred_region
      %s133 = ssub.s32 %s9, 1
      // Predicated region
      $region13: #{basic_block_forward.2} parent=11 // pred_check
        %p134 = pneg %p68
      $region14: #{basic_block_forward.2} parent=11 // pred_check_branch
        %136 = sbr.rel (%p134) target = $region16
      $region15: #{basic_block_forward.2} parent=11 // pred_region
        _
      $region16: #{basic_block_forward.2} parent=11 // pred_fallthru
        _
      // Predicated region
      $region17: #{basic_block_forward.2} parent=11 // pred_check
        %p137 = pneg %p89
      $region18: #{basic_block_forward.2} parent=11 // pred_check_branch
        %139 = sbr.rel (%p137) target = $region20
      $region19: #{basic_block_forward.2} parent=11 // pred_region
        _
      $region20: #{basic_block_forward.2} parent=11 // pred_fallthru
        _
    $region12: #{basic_block_forward.2} parent=5 // pred_fallthru
      _
    %p140 = scmp.lt.s32.totalorder %s9, 4
    // Predicated region
    $region21: #{basic_block_forward.2} parent=5 // pred_check
      %p141 = pneg %p140
    $region22: #{basic_block_forward.2} parent=5 // pred_check_branch
      %143 = sbr.rel (%p141) target = $region24
    $region23: #{basic_block_forward.2} parent=5 // pred_region
      // Predicated region
      $region25: #{basic_block_forward.2} parent=23 // pred_check
        %p144 = pneg %p41
      $region26: #{basic_block_forward.2} parent=23 // pred_check_branch
        %146 = sbr.rel (%p144) target = $region28
      $region27: #{basic_block_forward.2} parent=23 // pred_region
        %p147 = scmp.lt.s32.totalorder %s16, 1
        %s148 = scalar_select %p147, %s16, 1
        %s149 = smul.addr %s148, 54
        %s150 = smul.addr %s149, 4
        %s151 = scalar_lea.vmem %s0, %s150
      $region28: #{basic_block_forward.2} parent=23 // pred_fallthru
        _
    $region24: #{basic_block_forward.2} parent=5 // pred_fallthru
      _
    %p152 = scmp.le.s32.totalorder 1, %s9
    %p153 = scmp.lt.s32.totalorder %s9, 5
    %p154 = pnand %p152, %p153
    %p155 = pneg %p154
    // Predicated region
    $region29: #{basic_block_forward.2} parent=5 // pred_check
      _
    $region30: #{basic_block_forward.2} parent=5 // pred_check_branch
      %157 = sbr.rel (%p154) target = $region32
    $region31: #{basic_block_forward.2} parent=5 // pred_region
      %s158 = ssub.s32 %s9, 1
      %p159 = scmp.lt.s32.totalorder %s18, 1
      %s160 = scalar_select %p159, %s18, 1
      %s161 = smul.addr %s160, 54
      %s162 = smul.addr %s161, 4
      %s163 = scalar_lea.vmem %s0, %s162
      %p164 = pneg %p47
      %p165 = pneg %p44
      %p166 = pneg %p68
      %p167 = pneg %p65
      %p168 = pneg %p89
      %p169 = pneg %p86
      %p170 = pneg %p119
      %p171 = pneg %p116
      %s172 = smul.u32 %s18, 2
      %s173 = sadd.s32 %s172, %s19
      %s174 = smul.u32 16, %s173
      %p175 = scmp.lt.s32.totalorder %s174, 63
      %s176 = scalar_select %p175, %s174, 63
      %s177 = smul.addr %s176, 4
      %s178 = scalar_lea.vmem %s3, %s177
      %p179 = scmp.lt.s32.totalorder %s18, 1
      %s180 = scalar_select %p179, %s18, 1
      %s181 = smul.addr %s180, 54
      %s182 = smul.addr %s181, 4
      %s183 = scalar_lea.vmem %s0, %s182
      %s184 = smul.u32 %s18, 2
      %s185 = sadd.s32 %s184, %s19
      %s186 = smul.u32 16, %s185
      %p187 = scmp.lt.s32.totalorder %s186, 63
      %s188 = scalar_select %p187, %s186, 63
      %s189 = smul.addr %s188, 4
      %s190 = scalar_lea.vmem %s3, %s189
      %s191 = smul.u32 %s18, 2
      %s192 = sadd.s32 %s191, %s19
      %s193 = smul.u32 16, %s192
      %s194 = smul.u32 %s19, 8
      %s195 = smul.u32 %s194, 3
      %s196 = smul.addr %s195, 4
      %s197 = scalar_lea.vmem %s183, %s196
      %v198 = vld [vmem:[%s197] sm:$0xf]
      %v199 = vld [vmem:[%s197 + $0x4] sm:$0xf]
      %v200 = vld [vmem:[%s197 + $0xc] sm:$0xf]
      %v201 = vld [vmem:[%s197 + $0x10] sm:$0xf]
      %v202 = vld [vmem:[%s197 + $0x18] sm:$0xf]
      %v203 = vld [vmem:[%s197 + $0x1c] sm:$0xf]
      %v204 = vld [vmem:[%s197 + $0x24] sm:$0xf]
      %v205 = vld [vmem:[%s197 + $0x28] sm:$0xf]
      %v206 = vld [vmem:[%s197 + $0x30] sm:$0xf]
      %v207 = vld [vmem:[%s197 + $0x34] sm:$0xf]
      %v208 = vld [vmem:[%s197 + $0x3c] sm:$0xf]
      %v209 = vld [vmem:[%s197 + $0x40] sm:$0xf]
      %v210 = vld [vmem:[%s197 + $0x48] sm:$0xf]
      %v211 = vld [vmem:[%s197 + $0x4c] sm:$0xf]
      %v212 = vld [vmem:[%s197 + $0x54] sm:$0xf]
      %v213 = vld [vmem:[%s197 + $0x58] sm:$0xf]
      %v214 = vld [vmem:[%s197 + $0x8] sm:$0x1]
      %v215 = vld [vmem:[%s197 + $0x14] sm:$0x1]
      %v216 = vld [vmem:[%s197 + $0x20] sm:$0x1]
      %v217 = vld [vmem:[%s197 + $0x2c] sm:$0x1]
      %v218 = vld [vmem:[%s197 + $0x38] sm:$0x1]
      %v219 = vld [vmem:[%s197 + $0x44] sm:$0x1]
      %v220 = vld [vmem:[%s197 + $0x50] sm:$0x1]
      %v221 = vld [vmem:[%s197 + $0x5c] sm:$0x1]
      %vm222 = vsmask.f32 3328
      %vm223 = vsmask.f32 7440
      %vm224 = vmor %vm222, %vm223
      %v226 = vshrl.u32 %v198, 16
      %v228 = vrot.slane %v226, 4
      %v229 = vshll.u32 %v198, 16
      %v231 = vrot.slane %v229, 5
      %v232 = vor.u32 %v228, %v231
      %v233 = vrot.slane %v232, 4
      %v235 = vshll.u32 %v199, 16
      %v237 = vrot.slane %v235, 5
      %v238 = vsel %vm224, %v233, %v237
      %v239 = vshrl.u32 %v199, 16
      %v241 = vrot.slane %v239, 4
      %v242 = vor.u32 %v241, %v237
      %v243 = vrot.slane %v242, 4
      %v245 = vshll.u32 %v214, 16
      %v247 = vrot.slane %v245, 5
      %v248 = vsel %vm224, %v243, %v247
      %v250 = vshrl.u32 %v200, 16
      %v252 = vrot.slane %v250, 4
      %v253 = vshll.u32 %v200, 16
      %v255 = vrot.slane %v253, 5
      %v256 = vor.u32 %v252, %v255
      %v257 = vrot.slane %v256, 4
      %v259 = vshll.u32 %v201, 16
      %v261 = vrot.slane %v259, 5
      %v262 = vsel %vm224, %v257, %v261
      %v263 = vshrl.u32 %v201, 16
      %v265 = vrot.slane %v263, 4
      %v266 = vor.u32 %v265, %v261
      %v267 = vrot.slane %v266, 4
      %v269 = vshll.u32 %v215, 16
      %v271 = vrot.slane %v269, 5
      %v272 = vsel %vm224, %v267, %v271
      %v274 = vshrl.u32 %v202, 16
      %v276 = vrot.slane %v274, 4
      %v277 = vshll.u32 %v202, 16
      %v279 = vrot.slane %v277, 5
      %v280 = vor.u32 %v276, %v279
      %v281 = vrot.slane %v280, 4
      %v283 = vshll.u32 %v203, 16
      %v285 = vrot.slane %v283, 5
      %v286 = vsel %vm224, %v281, %v285
      %v287 = vshrl.u32 %v203, 16
      %v289 = vrot.slane %v287, 4
      %v290 = vor.u32 %v289, %v285
      %v291 = vrot.slane %v290, 4
      %v293 = vshll.u32 %v216, 16
      %v295 = vrot.slane %v293, 5
      %v296 = vsel %vm224, %v291, %v295
      %v298 = vshrl.u32 %v204, 16
      %v300 = vrot.slane %v298, 4
      %v301 = vshll.u32 %v204, 16
      %v303 = vrot.slane %v301, 5
      %v304 = vor.u32 %v300, %v303
      %v305 = vrot.slane %v304, 4
      %v307 = vshll.u32 %v205, 16
      %v309 = vrot.slane %v307, 5
      %v310 = vsel %vm224, %v305, %v309
      %v311 = vshrl.u32 %v205, 16
      %v313 = vrot.slane %v311, 4
      %v314 = vor.u32 %v313, %v309
      %v315 = vrot.slane %v314, 4
      %v317 = vshll.u32 %v217, 16
      %v319 = vrot.slane %v317, 5
      %v320 = vsel %vm224, %v315, %v319
      %v322 = vshrl.u32 %v206, 16
      %v324 = vrot.slane %v322, 4
      %v325 = vshll.u32 %v206, 16
      %v327 = vrot.slane %v325, 5
      %v328 = vor.u32 %v324, %v327
      %v329 = vrot.slane %v328, 4
      %v331 = vshll.u32 %v207, 16
      %v333 = vrot.slane %v331, 5
      %v334 = vsel %vm224, %v329, %v333
      %v335 = vshrl.u32 %v207, 16
      %v337 = vrot.slane %v335, 4
      %v338 = vor.u32 %v337, %v333
      %v339 = vrot.slane %v338, 4
      %v341 = vshll.u32 %v218, 16
      %v343 = vrot.slane %v341, 5
      %v344 = vsel %vm224, %v339, %v343
      %v346 = vshrl.u32 %v208, 16
      %v348 = vrot.slane %v346, 4
      %v349 = vshll.u32 %v208, 16
      %v351 = vrot.slane %v349, 5
      %v352 = vor.u32 %v348, %v351
      %v353 = vrot.slane %v352, 4
      %v355 = vshll.u32 %v209, 16
      %v357 = vrot.slane %v355, 5
      %v358 = vsel %vm224, %v353, %v357
      %v359 = vshrl.u32 %v209, 16
      %v361 = vrot.slane %v359, 4
      %v362 = vor.u32 %v361, %v357
      %v363 = vrot.slane %v362, 4
      %v365 = vshll.u32 %v219, 16
      %v367 = vrot.slane %v365, 5
      %v368 = vsel %vm224, %v363, %v367
      %v370 = vshrl.u32 %v210, 16
      %v372 = vrot.slane %v370, 4
      %v373 = vshll.u32 %v210, 16
      %v375 = vrot.slane %v373, 5
      %v376 = vor.u32 %v372, %v375
      %v377 = vrot.slane %v376, 4
      %v379 = vshll.u32 %v211, 16
      %v381 = vrot.slane %v379, 5
      %v382 = vsel %vm224, %v377, %v381
      %v383 = vshrl.u32 %v211, 16
      %v385 = vrot.slane %v383, 4
      %v386 = vor.u32 %v385, %v381
      %v387 = vrot.slane %v386, 4
      %v389 = vshll.u32 %v220, 16
      %v391 = vrot.slane %v389, 5
      %v392 = vsel %vm224, %v387, %v391
      %v394 = vshrl.u32 %v212, 16
      %v396 = vrot.slane %v394, 4
      %v397 = vshll.u32 %v212, 16
      %v399 = vrot.slane %v397, 5
      %v400 = vor.u32 %v396, %v399
      %v401 = vrot.slane %v400, 4
      %v403 = vshll.u32 %v213, 16
      %v405 = vrot.slane %v403, 5
      %v406 = vsel %vm224, %v401, %v405
      %v407 = vshrl.u32 %v213, 16
      %v409 = vrot.slane %v407, 4
      %v410 = vor.u32 %v409, %v405
      %v411 = vrot.slane %v410, 4
      %v413 = vshll.u32 %v221, 16
      %v415 = vrot.slane %v413, 5
      %v416 = vsel %vm224, %v411, %v415
      %v417 = vld [vmem:[%s197] sm:$0xe]
      %v418 = vld [vmem:[%s197 + $0xc] sm:$0xe]
      %v419 = vld [vmem:[%s197 + $0x18] sm:$0xe]
      %v420 = vld [vmem:[%s197 + $0x24] sm:$0xe]
      %v421 = vld [vmem:[%s197 + $0x30] sm:$0xe]
      %v422 = vld [vmem:[%s197 + $0x3c] sm:$0xe]
      %v423 = vld [vmem:[%s197 + $0x48] sm:$0xe]
      %v424 = vld [vmem:[%s197 + $0x54] sm:$0xe]
      %vm449 = vcmask 1042432
      %vm450 = vcmask 1046532
      %vm451 = vmor %vm449, %vm450
      %v452 = vrot.slane %v417, 5
      %v453 = vrot.slane %v452, 4
      %v454 = vrot.slane %v199, 5
      %v455 = vsel %vm451, %v453, %v454
      %v456 = vrot.slane %v454, 4
      %v457 = vrot.slane %v214, 5
      %v458 = vsel %vm451, %v456, %v457
      %v459 = vrot.slane %v418, 5
      %v460 = vrot.slane %v459, 4
      %v461 = vrot.slane %v201, 5
      %v462 = vsel %vm451, %v460, %v461
      %v463 = vrot.slane %v461, 4
      %v464 = vrot.slane %v215, 5
      %v465 = vsel %vm451, %v463, %v464
      %v466 = vrot.slane %v419, 5
      %v467 = vrot.slane %v466, 4
      %v468 = vrot.slane %v203, 5
      %v469 = vsel %vm451, %v467, %v468
      %v470 = vrot.slane %v468, 4
      %v471 = vrot.slane %v216, 5
      %v472 = vsel %vm451, %v470, %v471
      %v473 = vrot.slane %v420, 5
      %v474 = vrot.slane %v473, 4
      %v475 = vrot.slane %v205, 5
      %v476 = vsel %vm451, %v474, %v475
      %v477 = vrot.slane %v475, 4
      %v478 = vrot.slane %v217, 5
      %v479 = vsel %vm451, %v477, %v478
      %v480 = vrot.slane %v421, 5
      %v481 = vrot.slane %v480, 4
      %v482 = vrot.slane %v207, 5
      %v483 = vsel %vm451, %v481, %v482
      %v484 = vrot.slane %v482, 4
      %v485 = vrot.slane %v218, 5
      %v486 = vsel %vm451, %v484, %v485
      %v487 = vrot.slane %v422, 5
      %v488 = vrot.slane %v487, 4
      %v489 = vrot.slane %v209, 5
      %v490 = vsel %vm451, %v488, %v489
      %v491 = vrot.slane %v489, 4
      %v492 = vrot.slane %v219, 5
      %v493 = vsel %vm451, %v491, %v492
      %v494 = vrot.slane %v423, 5
      %v495 = vrot.slane %v494, 4
      %v496 = vrot.slane %v211, 5
      %v497 = vsel %vm451, %v495, %v496
      %v498 = vrot.slane %v496, 4
      %v499 = vrot.slane %v220, 5
      %v500 = vsel %vm451, %v498, %v499
      %v501 = vrot.slane %v424, 5
      %v502 = vrot.slane %v501, 4
      %v503 = vrot.slane %v213, 5
      %v504 = vsel %vm451, %v502, %v503
      %v505 = vrot.slane %v503, 4
      %v506 = vrot.slane %v221, 5
      %v507 = vsel %vm451, %v505, %v506
      %v516 = vunpack.c.l.b16 %v198
      %v517 = vunpack.c.l.b16 %v199
      %v518 = vunpack.c.l.b16 %v200
      %v519 = vunpack.c.l.b16 %v201
      %v520 = vunpack.c.l.b16 %v202
      %v521 = vunpack.c.l.b16 %v203
      %v522 = vunpack.c.l.b16 %v204
      %v523 = vunpack.c.l.b16 %v205
      %v524 = vunpack.c.l.b16 %v206
      %v525 = vunpack.c.l.b16 %v207
      %v526 = vunpack.c.l.b16 %v208
      %v527 = vunpack.c.l.b16 %v209
      %v528 = vunpack.c.l.b16 %v210
      %v529 = vunpack.c.l.b16 %v211
      %v530 = vunpack.c.l.b16 %v212
      %v531 = vunpack.c.l.b16 %v213
      %v532 = vpack.c.b16 %v517, %v516
      %v533 = vpack.c.b16 %v519, %v518
      %v534 = vpack.c.b16 %v521, %v520
      %v535 = vpack.c.b16 %v523, %v522
      %v536 = vpack.c.b16 %v525, %v524
      %v537 = vpack.c.b16 %v527, %v526
      %v538 = vpack.c.b16 %v529, %v528
      %v539 = vpack.c.b16 %v531, %v530
      %v548 = vunpack.c.l.b16 %v238
      %v549 = vunpack.c.l.b16 %v248
      %v550 = vunpack.c.l.b16 %v262
      %v551 = vunpack.c.l.b16 %v272
      %v552 = vunpack.c.l.b16 %v286
      %v553 = vunpack.c.l.b16 %v296
      %v554 = vunpack.c.l.b16 %v310
      %v555 = vunpack.c.l.b16 %v320
      %v556 = vunpack.c.l.b16 %v334
      %v557 = vunpack.c.l.b16 %v344
      %v558 = vunpack.c.l.b16 %v358
      %v559 = vunpack.c.l.b16 %v368
      %v560 = vunpack.c.l.b16 %v382
      %v561 = vunpack.c.l.b16 %v392
      %v562 = vunpack.c.l.b16 %v406
      %v563 = vunpack.c.l.b16 %v416
      %v564 = vpack.c.b16 %v549, %v548
      %v565 = vpack.c.b16 %v551, %v550
      %v566 = vpack.c.b16 %v553, %v552
      %v567 = vpack.c.b16 %v555, %v554
      %v568 = vpack.c.b16 %v557, %v556
      %v569 = vpack.c.b16 %v559, %v558
      %v570 = vpack.c.b16 %v561, %v560
      %v571 = vpack.c.b16 %v563, %v562
      %v580 = vunpack.c.l.b16 %v455
      %v581 = vunpack.c.l.b16 %v458
      %v582 = vunpack.c.l.b16 %v462
      %v583 = vunpack.c.l.b16 %v465
      %v584 = vunpack.c.l.b16 %v469
      %v585 = vunpack.c.l.b16 %v472
      %v586 = vunpack.c.l.b16 %v476
      %v587 = vunpack.c.l.b16 %v479
      %v588 = vunpack.c.l.b16 %v483
      %v589 = vunpack.c.l.b16 %v486
      %v590 = vunpack.c.l.b16 %v490
      %v591 = vunpack.c.l.b16 %v493
      %v592 = vunpack.c.l.b16 %v497
      %v593 = vunpack.c.l.b16 %v500
      %v594 = vunpack.c.l.b16 %v504
      %v595 = vunpack.c.l.b16 %v507
      %v596 = vpack.c.b16 %v581, %v580
      %v597 = vpack.c.b16 %v583, %v582
      %v598 = vpack.c.b16 %v585, %v584
      %v599 = vpack.c.b16 %v587, %v586
      %v600 = vpack.c.b16 %v589, %v588
      %v601 = vpack.c.b16 %v591, %v590
      %v602 = vpack.c.b16 %v593, %v592
      %v603 = vpack.c.b16 %v595, %v594
      %v612 = vld [vmem:[%s1] sm:$0xf]
      %v613 = vld [vmem:[%s1 + $0x4] sm:$0xf]
      %v614 = vld [vmem:[%s1 + $0x8] sm:$0xf]
      %v615 = vld [vmem:[%s1 + $0xc] sm:$0xf]
      %v616 = vld [vmem:[%s1 + $0x10] sm:$0xf]
      %v617 = vld [vmem:[%s1 + $0x14] sm:$0xf]
      %v618 = vld [vmem:[%s1 + $0x18] sm:$0xf]
      %v619 = vld [vmem:[%s1 + $0x1c] sm:$0xf]
      %v620 = vld [vmem:[%s1 + $0x20] sm:$0xf]
      %v621 = vld [vmem:[%s1 + $0x24] sm:$0xf]
      %v622 = vld [vmem:[%s1 + $0x28] sm:$0xf]
      %v623 = vld [vmem:[%s1 + $0x2c] sm:$0xf]
      %v624 = vld [vmem:[%s1 + $0x30] sm:$0xf]
      %v625 = vld [vmem:[%s1 + $0x34] sm:$0xf]
      %v626 = vld [vmem:[%s1 + $0x38] sm:$0xf]
      %v627 = vld [vmem:[%s1 + $0x3c] sm:$0xf]
      %v628 = vld [vmem:[%s1 + $0x40] sm:$0xf]
      %v629 = vld [vmem:[%s1 + $0x44] sm:$0xf]
      %v630 = vld [vmem:[%s1 + $0x48] sm:$0xf]
      %v631 = vld [vmem:[%s1 + $0x4c] sm:$0xf]
      %v632 = vld [vmem:[%s1 + $0x50] sm:$0xf]
      %v633 = vld [vmem:[%s1 + $0x54] sm:$0xf]
      %v634 = vld [vmem:[%s1 + $0x58] sm:$0xf]
      %v635 = vld [vmem:[%s1 + $0x5c] sm:$0xf]
      %v636 = vld [vmem:[%s1 + $0x60] sm:$0xf]
      %v637 = vld [vmem:[%s1 + $0x64] sm:$0xf]
      %v638 = vld [vmem:[%s1 + $0x68] sm:$0xf]
      %v639 = vld [vmem:[%s1 + $0x6c] sm:$0xf]
      %v640 = vld [vmem:[%s1 + $0x70] sm:$0xf]
      %v641 = vld [vmem:[%s1 + $0x74] sm:$0xf]
      %v642 = vld [vmem:[%s1 + $0x78] sm:$0xf]
      %v643 = vld [vmem:[%s1 + $0x7c] sm:$0xf]
      %v644 = vld [vmem:[%s1 + $0x80] sm:$0xf]
      %v645 = vld [vmem:[%s1 + $0x84] sm:$0xf]
      %v646 = vld [vmem:[%s1 + $0x88] sm:$0xf]
      %v647 = vld [vmem:[%s1 + $0x8c] sm:$0xf]
      %v648 = vld [vmem:[%s1 + $0x90] sm:$0xf]
      %v649 = vld [vmem:[%s1 + $0x94] sm:$0xf]
      %v650 = vld [vmem:[%s1 + $0x98] sm:$0xf]
      %v651 = vld [vmem:[%s1 + $0x9c] sm:$0xf]
      %v652 = vld [vmem:[%s1 + $0xa0] sm:$0xf]
      %v653 = vld [vmem:[%s1 + $0xa4] sm:$0xf]
      %v654 = vld [vmem:[%s1 + $0xa8] sm:$0xf]
      %v655 = vld [vmem:[%s1 + $0xac] sm:$0xf]
      %v656 = vld [vmem:[%s1 + $0xb0] sm:$0xf]
      %v657 = vld [vmem:[%s1 + $0xb4] sm:$0xf]
      %v658 = vld [vmem:[%s1 + $0xb8] sm:$0xf]
      %v659 = vld [vmem:[%s1 + $0xbc] sm:$0xf]
      %s660 = sadd.s32 %s194, 1
      %s661 = smul.u32 %s660, 3
      %s662 = smul.addr %s661, 4
      %s663 = scalar_lea.vmem %s183, %s662
      %v664 = vld [vmem:[%s663] sm:$0xf]
      %v665 = vld [vmem:[%s663 + $0x4] sm:$0xf]
      %v666 = vld [vmem:[%s663 + $0xc] sm:$0xf]
      %v667 = vld [vmem:[%s663 + $0x10] sm:$0xf]
      %v668 = vld [vmem:[%s663 + $0x18] sm:$0xf]
      %v669 = vld [vmem:[%s663 + $0x1c] sm:$0xf]
      %v670 = vld [vmem:[%s663 + $0x24] sm:$0xf]
      %v671 = vld [vmem:[%s663 + $0x28] sm:$0xf]
      %v672 = vld [vmem:[%s663 + $0x30] sm:$0xf]
      %v673 = vld [vmem:[%s663 + $0x34] sm:$0xf]
      %v674 = vld [vmem:[%s663 + $0x3c] sm:$0xf]
      %v675 = vld [vmem:[%s663 + $0x40] sm:$0xf]
      %v676 = vld [vmem:[%s663 + $0x48] sm:$0xf]
      %v677 = vld [vmem:[%s663 + $0x4c] sm:$0xf]
      %v678 = vld [vmem:[%s663 + $0x54] sm:$0xf]
      %v679 = vld [vmem:[%s663 + $0x58] sm:$0xf]
      %v680 = vld [vmem:[%s663 + $0x8] sm:$0x1]
      %v681 = vld [vmem:[%s663 + $0x14] sm:$0x1]
      %v682 = vld [vmem:[%s663 + $0x20] sm:$0x1]
      %v683 = vld [vmem:[%s663 + $0x2c] sm:$0x1]
      %v684 = vld [vmem:[%s663 + $0x38] sm:$0x1]
      %v685 = vld [vmem:[%s663 + $0x44] sm:$0x1]
      %v686 = vld [vmem:[%s663 + $0x50] sm:$0x1]
      %v687 = vld [vmem:[%s663 + $0x5c] sm:$0x1]
      %v689 = vshrl.u32 %v664, 16
      %v691 = vrot.slane %v689, 4
      %v692 = vshll.u32 %v664, 16
      %v694 = vrot.slane %v692, 5
      %v695 = vor.u32 %v691, %v694
      %v696 = vrot.slane %v695, 4
      %v698 = vshll.u32 %v665, 16
      %v700 = vrot.slane %v698, 5
      %v701 = vsel %vm224, %v696, %v700
      %v702 = vshrl.u32 %v665, 16
      %v704 = vrot.slane %v702, 4
      %v705 = vor.u32 %v704, %v700
      %v706 = vrot.slane %v705, 4
      %v708 = vshll.u32 %v680, 16
      %v710 = vrot.slane %v708, 5
      %v711 = vsel %vm224, %v706, %v710
      %v713 = vshrl.u32 %v666, 16
      %v715 = vrot.slane %v713, 4
      %v716 = vshll.u32 %v666, 16
      %v718 = vrot.slane %v716, 5
      %v719 = vor.u32 %v715, %v718
      %v720 = vrot.slane %v719, 4
      %v722 = vshll.u32 %v667, 16
      %v724 = vrot.slane %v722, 5
      %v725 = vsel %vm224, %v720, %v724
      %v726 = vshrl.u32 %v667, 16
      %v728 = vrot.slane %v726, 4
      %v729 = vor.u32 %v728, %v724
      %v730 = vrot.slane %v729, 4
      %v732 = vshll.u32 %v681, 16
      %v734 = vrot.slane %v732, 5
      %v735 = vsel %vm224, %v730, %v734
      %v737 = vshrl.u32 %v668, 16
      %v739 = vrot.slane %v737, 4
      %v740 = vshll.u32 %v668, 16
      %v742 = vrot.slane %v740, 5
      %v743 = vor.u32 %v739, %v742
      %v744 = vrot.slane %v743, 4
      %v746 = vshll.u32 %v669, 16
      %v748 = vrot.slane %v746, 5
      %v749 = vsel %vm224, %v744, %v748
      %v750 = vshrl.u32 %v669, 16
      %v752 = vrot.slane %v750, 4
      %v753 = vor.u32 %v752, %v748
      %v754 = vrot.slane %v753, 4
      %v756 = vshll.u32 %v682, 16
      %v758 = vrot.slane %v756, 5
      %v759 = vsel %vm224, %v754, %v758
      %v761 = vshrl.u32 %v670, 16
      %v763 = vrot.slane %v761, 4
      %v764 = vshll.u32 %v670, 16
      %v766 = vrot.slane %v764, 5
      %v767 = vor.u32 %v763, %v766
      %v768 = vrot.slane %v767, 4
      %v770 = vshll.u32 %v671, 16
      %v772 = vrot.slane %v770, 5
      %v773 = vsel %vm224, %v768, %v772
      %v774 = vshrl.u32 %v671, 16
      %v776 = vrot.slane %v774, 4
      %v777 = vor.u32 %v776, %v772
      %v778 = vrot.slane %v777, 4
      %v780 = vshll.u32 %v683, 16
      %v782 = vrot.slane %v780, 5
      %v783 = vsel %vm224, %v778, %v782
      %v785 = vshrl.u32 %v672, 16
      %v787 = vrot.slane %v785, 4
      %v788 = vshll.u32 %v672, 16
      %v790 = vrot.slane %v788, 5
      %v791 = vor.u32 %v787, %v790
      %v792 = vrot.slane %v791, 4
      %v794 = vshll.u32 %v673, 16
      %v796 = vrot.slane %v794, 5
      %v797 = vsel %vm224, %v792, %v796
      %v798 = vshrl.u32 %v673, 16
      %v800 = vrot.slane %v798, 4
      %v801 = vor.u32 %v800, %v796
      %v802 = vrot.slane %v801, 4
      %v804 = vshll.u32 %v684, 16
      %v806 = vrot.slane %v804, 5
      %v807 = vsel %vm224, %v802, %v806
      %v809 = vshrl.u32 %v674, 16
      %v811 = vrot.slane %v809, 4
      %v812 = vshll.u32 %v674, 16
      %v814 = vrot.slane %v812, 5
      %v815 = vor.u32 %v811, %v814
      %v816 = vrot.slane %v815, 4
      %v818 = vshll.u32 %v675, 16
      %v820 = vrot.slane %v818, 5
      %v821 = vsel %vm224, %v816, %v820
      %v822 = vshrl.u32 %v675, 16
      %v824 = vrot.slane %v822, 4
      %v825 = vor.u32 %v824, %v820
      %v826 = vrot.slane %v825, 4
      %v828 = vshll.u32 %v685, 16
      %v830 = vrot.slane %v828, 5
      %v831 = vsel %vm224, %v826, %v830
      %v833 = vshrl.u32 %v676, 16
      %v835 = vrot.slane %v833, 4
      %v836 = vshll.u32 %v676, 16
      %v838 = vrot.slane %v836, 5
      %v839 = vor.u32 %v835, %v838
      %v840 = vrot.slane %v839, 4
      %v842 = vshll.u32 %v677, 16
      %v844 = vrot.slane %v842, 5
      %v845 = vsel %vm224, %v840, %v844
      %v846 = vshrl.u32 %v677, 16
      %v848 = vrot.slane %v846, 4
      %v849 = vor.u32 %v848, %v844
      %v850 = vrot.slane %v849, 4
      %v852 = vshll.u32 %v686, 16
      %v854 = vrot.slane %v852, 5
      %v855 = vsel %vm224, %v850, %v854
      %v857 = vshrl.u32 %v678, 16
      %v859 = vrot.slane %v857, 4
      %v860 = vshll.u32 %v678, 16
      %v862 = vrot.slane %v860, 5
      %v863 = vor.u32 %v859, %v862
      %v864 = vrot.slane %v863, 4
      %v866 = vshll.u32 %v679, 16
      %v868 = vrot.slane %v866, 5
      %v869 = vsel %vm224, %v864, %v868
      %v870 = vshrl.u32 %v679, 16
      %v872 = vrot.slane %v870, 4
      %v873 = vor.u32 %v872, %v868
      %v874 = vrot.slane %v873, 4
      %v876 = vshll.u32 %v687, 16
      %v878 = vrot.slane %v876, 5
      %v879 = vsel %vm224, %v874, %v878
      %v880 = vld [vmem:[%s663] sm:$0xe]
      %v881 = vld [vmem:[%s663 + $0xc] sm:$0xe]
      %v882 = vld [vmem:[%s663 + $0x18] sm:$0xe]
      %v883 = vld [vmem:[%s663 + $0x24] sm:$0xe]
      %v884 = vld [vmem:[%s663 + $0x30] sm:$0xe]
      %v885 = vld [vmem:[%s663 + $0x3c] sm:$0xe]
      %v886 = vld [vmem:[%s663 + $0x48] sm:$0xe]
      %v887 = vld [vmem:[%s663 + $0x54] sm:$0xe]
      %v912 = vrot.slane %v880, 5
      %v913 = vrot.slane %v912, 4
      %v914 = vrot.slane %v665, 5
      %v915 = vsel %vm451, %v913, %v914
      %v916 = vrot.slane %v914, 4
      %v917 = vrot.slane %v680, 5
      %v918 = vsel %vm451, %v916, %v917
      %v919 = vrot.slane %v881, 5
      %v920 = vrot.slane %v919, 4
      %v921 = vrot.slane %v667, 5
      %v922 = vsel %vm451, %v920, %v921
      %v923 = vrot.slane %v921, 4
      %v924 = vrot.slane %v681, 5
      %v925 = vsel %vm451, %v923, %v924
      %v926 = vrot.slane %v882, 5
      %v927 = vrot.slane %v926, 4
      %v928 = vrot.slane %v669, 5
      %v929 = vsel %vm451, %v927, %v928
      %v930 = vrot.slane %v928, 4
      %v931 = vrot.slane %v682, 5
      %v932 = vsel %vm451, %v930, %v931
      %v933 = vrot.slane %v883, 5
      %v934 = vrot.slane %v933, 4
      %v935 = vrot.slane %v671, 5
      %v936 = vsel %vm451, %v934, %v935
      %v937 = vrot.slane %v935, 4
      %v938 = vrot.slane %v683, 5
      %v939 = vsel %vm451, %v937, %v938
      %v940 = vrot.slane %v884, 5
      %v941 = vrot.slane %v940, 4
      %v942 = vrot.slane %v673, 5
      %v943 = vsel %vm451, %v941, %v942
      %v944 = vrot.slane %v942, 4
      %v945 = vrot.slane %v684, 5
      %v946 = vsel %vm451, %v944, %v945
      %v947 = vrot.slane %v885, 5
      %v948 = vrot.slane %v947, 4
      %v949 = vrot.slane %v675, 5
      %v950 = vsel %vm451, %v948, %v949
      %v951 = vrot.slane %v949, 4
      %v952 = vrot.slane %v685, 5
      %v953 = vsel %vm451, %v951, %v952
      %v954 = vrot.slane %v886, 5
      %v955 = vrot.slane %v954, 4
      %v956 = vrot.slane %v677, 5
      %v957 = vsel %vm451, %v955, %v956
      %v958 = vrot.slane %v956, 4
      %v959 = vrot.slane %v686, 5
      %v960 = vsel %vm451, %v958, %v959
      %v961 = vrot.slane %v887, 5
      %v962 = vrot.slane %v961, 4
      %v963 = vrot.slane %v679, 5
      %v964 = vsel %vm451, %v962, %v963
      %v965 = vrot.slane %v963, 4
      %v966 = vrot.slane %v687, 5
      %v967 = vsel %vm451, %v965, %v966
      %v976 = vunpack.c.l.b16 %v664
      %v977 = vunpack.c.l.b16 %v665
      %v978 = vunpack.c.l.b16 %v666
      %v979 = vunpack.c.l.b16 %v667
      %v980 = vunpack.c.l.b16 %v668
      %v981 = vunpack.c.l.b16 %v669
      %v982 = vunpack.c.l.b16 %v670
      %v983 = vunpack.c.l.b16 %v671
      %v984 = vunpack.c.l.b16 %v672
      %v985 = vunpack.c.l.b16 %v673
      %v986 = vunpack.c.l.b16 %v674
      %v987 = vunpack.c.l.b16 %v675
      %v988 = vunpack.c.l.b16 %v676
      %v989 = vunpack.c.l.b16 %v677
      %v990 = vunpack.c.l.b16 %v678
      %v991 = vunpack.c.l.b16 %v679
      %v992 = vpack.c.b16 %v977, %v976
      %v993 = vpack.c.b16 %v979, %v978
      %v994 = vpack.c.b16 %v981, %v980
      %v995 = vpack.c.b16 %v983, %v982
      %v996 = vpack.c.b16 %v985, %v984
      %v997 = vpack.c.b16 %v987, %v986
      %v998 = vpack.c.b16 %v989, %v988
      %v999 = vpack.c.b16 %v991, %v990
      %v1008 = vunpack.c.l.b16 %v701
      %v1009 = vunpack.c.l.b16 %v711
      %v1010 = vunpack.c.l.b16 %v725
      %v1011 = vunpack.c.l.b16 %v735
      %v1012 = vunpack.c.l.b16 %v749
      %v1013 = vunpack.c.l.b16 %v759
      %v1014 = vunpack.c.l.b16 %v773
      %v1015 = vunpack.c.l.b16 %v783
      %v1016 = vunpack.c.l.b16 %v797
      %v1017 = vunpack.c.l.b16 %v807
      %v1018 = vunpack.c.l.b16 %v821
      %v1019 = vunpack.c.l.b16 %v831
      %v1020 = vunpack.c.l.b16 %v845
      %v1021 = vunpack.c.l.b16 %v855
      %v1022 = vunpack.c.l.b16 %v869
      %v1023 = vunpack.c.l.b16 %v879
      %v1024 = vpack.c.b16 %v1009, %v1008
      %v1025 = vpack.c.b16 %v1011, %v1010
      %v1026 = vpack.c.b16 %v1013, %v1012
      %v1027 = vpack.c.b16 %v1015, %v1014
      %v1028 = vpack.c.b16 %v1017, %v1016
      %v1029 = vpack.c.b16 %v1019, %v1018
      %v1030 = vpack.c.b16 %v1021, %v1020
      %v1031 = vpack.c.b16 %v1023, %v1022
      %v1040 = vunpack.c.l.b16 %v915
      %v1041 = vunpack.c.l.b16 %v918
      %v1042 = vunpack.c.l.b16 %v922
      %v1043 = vunpack.c.l.b16 %v925
      %v1044 = vunpack.c.l.b16 %v929
      %v1045 = vunpack.c.l.b16 %v932
      %v1046 = vunpack.c.l.b16 %v936
      %v1047 = vunpack.c.l.b16 %v939
      %v1048 = vunpack.c.l.b16 %v943
      %v1049 = vunpack.c.l.b16 %v946
      %v1050 = vunpack.c.l.b16 %v950
      %v1051 = vunpack.c.l.b16 %v953
      %v1052 = vunpack.c.l.b16 %v957
      %v1053 = vunpack.c.l.b16 %v960
      %v1054 = vunpack.c.l.b16 %v964
      %v1055 = vunpack.c.l.b16 %v967
      %v1056 = vpack.c.b16 %v1041, %v1040
      %v1057 = vpack.c.b16 %v1043, %v1042
      %v1058 = vpack.c.b16 %v1045, %v1044
      %v1059 = vpack.c.b16 %v1047, %v1046
      %v1060 = vpack.c.b16 %v1049, %v1048
      %v1061 = vpack.c.b16 %v1051, %v1050
      %v1062 = vpack.c.b16 %v1053, %v1052
      %v1063 = vpack.c.b16 %v1055, %v1054
      %v1072 = vld [vmem:[%s1 + $0xc0] sm:$0xf]
      %v1073 = vld [vmem:[%s1 + $0xc4] sm:$0xf]
      %v1074 = vld [vmem:[%s1 + $0xc8] sm:$0xf]
      %v1075 = vld [vmem:[%s1 + $0xcc] sm:$0xf]
      %v1076 = vld [vmem:[%s1 + $0xd0] sm:$0xf]
      %v1077 = vld [vmem:[%s1 + $0xd4] sm:$0xf]
      %v1078 = vld [vmem:[%s1 + $0xd8] sm:$0xf]
      %v1079 = vld [vmem:[%s1 + $0xdc] sm:$0xf]
      %v1080 = vld [vmem:[%s1 + $0xe0] sm:$0xf]
      %v1081 = vld [vmem:[%s1 + $0xe4] sm:$0xf]
      %v1082 = vld [vmem:[%s1 + $0xe8] sm:$0xf]
      %v1083 = vld [vmem:[%s1 + $0xec] sm:$0xf]
      %v1084 = vld [vmem:[%s1 + $0xf0] sm:$0xf]
      %v1085 = vld [vmem:[%s1 + $0xf4] sm:$0xf]
      %v1086 = vld [vmem:[%s1 + $0xf8] sm:$0xf]
      %v1087 = vld [vmem:[%s1 + $0xfc] sm:$0xf]
      %v1088 = vld [vmem:[%s1 + $0x100] sm:$0xf]
      %v1089 = vld [vmem:[%s1 + $0x104] sm:$0xf]
      %v1090 = vld [vmem:[%s1 + $0x108] sm:$0xf]
      %v1091 = vld [vmem:[%s1 + $0x10c] sm:$0xf]
      %v1092 = vld [vmem:[%s1 + $0x110] sm:$0xf]
      %v1093 = vld [vmem:[%s1 + $0x114] sm:$0xf]
      %v1094 = vld [vmem:[%s1 + $0x118] sm:$0xf]
      %v1095 = vld [vmem:[%s1 + $0x11c] sm:$0xf]
      %v1096 = vld [vmem:[%s1 + $0x120] sm:$0xf]
      %v1097 = vld [vmem:[%s1 + $0x124] sm:$0xf]
      %v1098 = vld [vmem:[%s1 + $0x128] sm:$0xf]
      %v1099 = vld [vmem:[%s1 + $0x12c] sm:$0xf]
      %v1100 = vld [vmem:[%s1 + $0x130] sm:$0xf]
      %v1101 = vld [vmem:[%s1 + $0x134] sm:$0xf]
      %v1102 = vld [vmem:[%s1 + $0x138] sm:$0xf]
      %v1103 = vld [vmem:[%s1 + $0x13c] sm:$0xf]
      %v1104 = vld [vmem:[%s1 + $0x140] sm:$0xf]
      %v1105 = vld [vmem:[%s1 + $0x144] sm:$0xf]
      %v1106 = vld [vmem:[%s1 + $0x148] sm:$0xf]
      %v1107 = vld [vmem:[%s1 + $0x14c] sm:$0xf]
      %v1108 = vld [vmem:[%s1 + $0x150] sm:$0xf]
      %v1109 = vld [vmem:[%s1 + $0x154] sm:$0xf]
      %v1110 = vld [vmem:[%s1 + $0x158] sm:$0xf]
      %v1111 = vld [vmem:[%s1 + $0x15c] sm:$0xf]
      %v1112 = vld [vmem:[%s1 + $0x160] sm:$0xf]
      %v1113 = vld [vmem:[%s1 + $0x164] sm:$0xf]
      %v1114 = vld [vmem:[%s1 + $0x168] sm:$0xf]
      %v1115 = vld [vmem:[%s1 + $0x16c] sm:$0xf]
      %v1116 = vld [vmem:[%s1 + $0x170] sm:$0xf]
      %v1117 = vld [vmem:[%s1 + $0x174] sm:$0xf]
      %v1118 = vld [vmem:[%s1 + $0x178] sm:$0xf]
      %v1119 = vld [vmem:[%s1 + $0x17c] sm:$0xf]
      %v1168 = vunpack.c.l.b16 %v1072
      %v1169 = vunpack.c.l.b16 %v1073
      %v1170 = vunpack.c.l.b16 %v1074
      %v1171 = vunpack.c.l.b16 %v1075
      %v1172 = vunpack.c.l.b16 %v1076
      %v1173 = vunpack.c.l.b16 %v1077
      %v1174 = vunpack.c.l.b16 %v1078
      %v1175 = vunpack.c.l.b16 %v1079
      %v1176 = vunpack.c.l.b16 %v1080
      %v1177 = vunpack.c.l.b16 %v1081
      %v1178 = vunpack.c.l.b16 %v1082
      %v1179 = vunpack.c.l.b16 %v1083
      %v1180 = vunpack.c.l.b16 %v1084
      %v1181 = vunpack.c.l.b16 %v1085
      %v1182 = vunpack.c.l.b16 %v1086
      %v1183 = vunpack.c.l.b16 %v1087
      %v1184 = vunpack.c.l.b16 %v1088
      %v1185 = vunpack.c.l.b16 %v1089
      %v1186 = vunpack.c.l.b16 %v1090
      %v1187 = vunpack.c.l.b16 %v1091
      %v1188 = vunpack.c.l.b16 %v1092
      %v1189 = vunpack.c.l.b16 %v1093
      %v1190 = vunpack.c.l.b16 %v1094
      %v1191 = vunpack.c.l.b16 %v1095
      %v1192 = vunpack.c.l.b16 %v1096
      %v1193 = vunpack.c.l.b16 %v1097
      %v1194 = vunpack.c.l.b16 %v1098
      %v1195 = vunpack.c.l.b16 %v1099
      %v1196 = vunpack.c.l.b16 %v1100
      %v1197 = vunpack.c.l.b16 %v1101
      %v1198 = vunpack.c.l.b16 %v1102
      %v1199 = vunpack.c.l.b16 %v1103
      %v1200 = vunpack.c.l.b16 %v1104
      %v1201 = vunpack.c.l.b16 %v1105
      %v1202 = vunpack.c.l.b16 %v1106
      %v1203 = vunpack.c.l.b16 %v1107
      %v1204 = vunpack.c.l.b16 %v1108
      %v1205 = vunpack.c.l.b16 %v1109
      %v1206 = vunpack.c.l.b16 %v1110
      %v1207 = vunpack.c.l.b16 %v1111
      %v1208 = vunpack.c.l.b16 %v1112
      %v1209 = vunpack.c.l.b16 %v1113
      %v1210 = vunpack.c.l.b16 %v1114
      %v1211 = vunpack.c.l.b16 %v1115
      %v1212 = vunpack.c.l.b16 %v1116
      %v1213 = vunpack.c.l.b16 %v1117
      %v1214 = vunpack.c.l.b16 %v1118
      %v1215 = vunpack.c.l.b16 %v1119
      %v1216 = vpack.c.b16 %v1169, %v1168
      %v1217 = vpack.c.b16 %v1171, %v1170
      %v1218 = vpack.c.b16 %v1173, %v1172
      %v1219 = vpack.c.b16 %v1175, %v1174
      %v1220 = vpack.c.b16 %v1177, %v1176
      %v1221 = vpack.c.b16 %v1179, %v1178
      %v1222 = vpack.c.b16 %v1181, %v1180
      %v1223 = vpack.c.b16 %v1183, %v1182
      %v1224 = vpack.c.b16 %v1185, %v1184
      %v1225 = vpack.c.b16 %v1187, %v1186
      %v1226 = vpack.c.b16 %v1189, %v1188
      %v1227 = vpack.c.b16 %v1191, %v1190
      %v1228 = vpack.c.b16 %v1193, %v1192
      %v1229 = vpack.c.b16 %v1195, %v1194
      %v1230 = vpack.c.b16 %v1197, %v1196
      %v1231 = vpack.c.b16 %v1199, %v1198
      %v1232 = vpack.c.b16 %v1201, %v1200
      %v1233 = vpack.c.b16 %v1203, %v1202
      %v1234 = vpack.c.b16 %v1205, %v1204
      %v1235 = vpack.c.b16 %v1207, %v1206
      %v1236 = vpack.c.b16 %v1209, %v1208
      %v1237 = vpack.c.b16 %v1211, %v1210
      %v1238 = vpack.c.b16 %v1213, %v1212
      %v1239 = vpack.c.b16 %v1215, %v1214
      %1264 = vmatpush.bf16.msra.mxu0 %v1223
      %1265 = vmatpush.bf16.msra.mxu0 %v1222
      %1266 = vmatpush.bf16.msra.mxu0 %v1221
      %1267 = vmatpush.bf16.msra.mxu0 %v1220
      %1268 = vmatpush.bf16.msra.mxu0 %v1219
      %1269 = vmatpush.bf16.msra.mxu0 %v1218
      %1270 = vmatpush.bf16.msra.mxu0 %v1217
      %1271 = vmatpush.bf16.msra.mxu0 %v1216
      %1272 = vmatmul.bf16.gmra.mxu0 %v992
      %v1273 = vpop.f32.mrf.mxu0
      %v1274 = vadd.f32 0.0, %v1273
      %v1275 = vpop.f32.mrf.mxu0
      %v1276 = vadd.f32 0.0, %v1275
      %1277 = vmatmul.bf16.gmra.mxu0 %v993
      %v1278 = vpop.f32.mrf.mxu0
      %v1279 = vadd.f32 0.0, %v1278
      %v1280 = vpop.f32.mrf.mxu0
      %v1281 = vadd.f32 0.0, %v1280
      %1282 = vmatmul.bf16.gmra.mxu0 %v994
      %v1283 = vpop.f32.mrf.mxu0
      %v1284 = vadd.f32 0.0, %v1283
      %v1285 = vpop.f32.mrf.mxu0
      %v1286 = vadd.f32 0.0, %v1285
      %1287 = vmatmul.bf16.gmra.mxu0 %v995
      %v1288 = vpop.f32.mrf.mxu0
      %v1289 = vadd.f32 0.0, %v1288
      %v1290 = vpop.f32.mrf.mxu0
      %v1291 = vadd.f32 0.0, %v1290
      %1292 = vmatmul.bf16.gmra.mxu0 %v996
      %v1293 = vpop.f32.mrf.mxu0
      %v1294 = vadd.f32 0.0, %v1293
      %v1295 = vpop.f32.mrf.mxu0
      %v1296 = vadd.f32 0.0, %v1295
      %1297 = vmatmul.bf16.gmra.mxu0 %v997
      %v1298 = vpop.f32.mrf.mxu0
      %v1299 = vadd.f32 0.0, %v1298
      %v1300 = vpop.f32.mrf.mxu0
      %v1301 = vadd.f32 0.0, %v1300
      %1302 = vmatmul.bf16.gmra.mxu0 %v998
      %v1303 = vpop.f32.mrf.mxu0
      %v1304 = vadd.f32 0.0, %v1303
      %v1305 = vpop.f32.mrf.mxu0
      %v1306 = vadd.f32 0.0, %v1305
      %1307 = vmatmul.bf16.gmra.mxu0 %v999
      %v1308 = vpop.f32.mrf.mxu0
      %v1309 = vadd.f32 0.0, %v1308
      %v1310 = vpop.f32.mrf.mxu0
      %v1311 = vadd.f32 0.0, %v1310
      %1312 = vdwg.mxu0
      %1313 = vmatpush.bf16.msra.mxu0 %v1231
      %1314 = vmatpush.bf16.msra.mxu0 %v1230
      %1315 = vmatpush.bf16.msra.mxu0 %v1229
      %1316 = vmatpush.bf16.msra.mxu0 %v1228
      %1317 = vmatpush.bf16.msra.mxu0 %v1227
      %1318 = vmatpush.bf16.msra.mxu0 %v1226
      %1319 = vmatpush.bf16.msra.mxu0 %v1225
      %1320 = vmatpush.bf16.msra.mxu0 %v1224
      %1321 = vmatmul.bf16.gmra.mxu0 %v1024
      %v1322 = vpop.f32.mrf.mxu0
      %v1323 = vadd.f32 %v1274, %v1322
      %v1324 = vpop.f32.mrf.mxu0
      %v1325 = vadd.f32 %v1276, %v1324
      %1326 = vmatmul.bf16.gmra.mxu0 %v1025
      %v1327 = vpop.f32.mrf.mxu0
      %v1328 = vadd.f32 %v1279, %v1327
      %v1329 = vpop.f32.mrf.mxu0
      %v1330 = vadd.f32 %v1281, %v1329
      %1331 = vmatmul.bf16.gmra.mxu0 %v1026
      %v1332 = vpop.f32.mrf.mxu0
      %v1333 = vadd.f32 %v1284, %v1332
      %v1334 = vpop.f32.mrf.mxu0
      %v1335 = vadd.f32 %v1286, %v1334
      %1336 = vmatmul.bf16.gmra.mxu0 %v1027
      %v1337 = vpop.f32.mrf.mxu0
      %v1338 = vadd.f32 %v1289, %v1337
      %v1339 = vpop.f32.mrf.mxu0
      %v1340 = vadd.f32 %v1291, %v1339
      %1341 = vmatmul.bf16.gmra.mxu0 %v1028
      %v1342 = vpop.f32.mrf.mxu0
      %v1343 = vadd.f32 %v1294, %v1342
      %v1344 = vpop.f32.mrf.mxu0
      %v1345 = vadd.f32 %v1296, %v1344
      %1346 = vmatmul.bf16.gmra.mxu0 %v1029
      %v1347 = vpop.f32.mrf.mxu0
      %v1348 = vadd.f32 %v1299, %v1347
      %v1349 = vpop.f32.mrf.mxu0
      %v1350 = vadd.f32 %v1301, %v1349
      %1351 = vmatmul.bf16.gmra.mxu0 %v1030
      %v1352 = vpop.f32.mrf.mxu0
      %v1353 = vadd.f32 %v1304, %v1352
      %v1354 = vpop.f32.mrf.mxu0
      %v1355 = vadd.f32 %v1306, %v1354
      %1356 = vmatmul.bf16.gmra.mxu0 %v1031
      %v1357 = vpop.f32.mrf.mxu0
      %v1358 = vadd.f32 %v1309, %v1357
      %v1359 = vpop.f32.mrf.mxu0
      %v1360 = vadd.f32 %v1311, %v1359
      %1361 = vdwg.mxu0
      %1362 = vmatpush.bf16.msra.mxu0 %v1239
      %1363 = vmatpush.bf16.msra.mxu0 %v1238
      %1364 = vmatpush.bf16.msra.mxu0 %v1237
      %1365 = vmatpush.bf16.msra.mxu0 %v1236
      %1366 = vmatpush.bf16.msra.mxu0 %v1235
      %1367 = vmatpush.bf16.msra.mxu0 %v1234
      %1368 = vmatpush.bf16.msra.mxu0 %v1233
      %1369 = vmatpush.bf16.msra.mxu0 %v1232
      %1370 = vmatmul.bf16.gmra.mxu0 %v1056
      %v1371 = vpop.f32.mrf.mxu0
      %v1372 = vadd.f32 %v1323, %v1371
      %v1373 = vpop.f32.mrf.mxu0
      %v1374 = vadd.f32 %v1325, %v1373
      %1375 = vmatmul.bf16.gmra.mxu0 %v1057
      %v1376 = vpop.f32.mrf.mxu0
      %v1377 = vadd.f32 %v1328, %v1376
      %v1378 = vpop.f32.mrf.mxu0
      %v1379 = vadd.f32 %v1330, %v1378
      %1380 = vmatmul.bf16.gmra.mxu0 %v1058
      %v1381 = vpop.f32.mrf.mxu0
      %v1382 = vadd.f32 %v1333, %v1381
      %v1383 = vpop.f32.mrf.mxu0
      %v1384 = vadd.f32 %v1335, %v1383
      %1385 = vmatmul.bf16.gmra.mxu0 %v1059
      %v1386 = vpop.f32.mrf.mxu0
      %v1387 = vadd.f32 %v1338, %v1386
      %v1388 = vpop.f32.mrf.mxu0
      %v1389 = vadd.f32 %v1340, %v1388
      %1390 = vmatmul.bf16.gmra.mxu0 %v1060
      %v1391 = vpop.f32.mrf.mxu0
      %v1392 = vadd.f32 %v1343, %v1391
      %v1393 = vpop.f32.mrf.mxu0
      %v1394 = vadd.f32 %v1345, %v1393
      %1395 = vmatmul.bf16.gmra.mxu0 %v1061
      %v1396 = vpop.f32.mrf.mxu0
      %v1397 = vadd.f32 %v1348, %v1396
      %v1398 = vpop.f32.mrf.mxu0
      %v1399 = vadd.f32 %v1350, %v1398
      %1400 = vmatmul.bf16.gmra.mxu0 %v1062
      %v1401 = vpop.f32.mrf.mxu0
      %v1402 = vadd.f32 %v1353, %v1401
      %v1403 = vpop.f32.mrf.mxu0
      %v1404 = vadd.f32 %v1355, %v1403
      %1405 = vmatmul.bf16.gmra.mxu0 %v1063
      %v1406 = vpop.f32.mrf.mxu0
      %v1407 = vadd.f32 %v1358, %v1406
      %v1408 = vpop.f32.mrf.mxu0
      %v1409 = vadd.f32 %v1360, %v1408
      %1410 = vdwg.mxu0
      %v1459 = vunpack.c.l.b16 %v612
      %v1460 = vunpack.c.l.b16 %v613
      %v1461 = vunpack.c.l.b16 %v614
      %v1462 = vunpack.c.l.b16 %v615
      %v1463 = vunpack.c.l.b16 %v616
      %v1464 = vunpack.c.l.b16 %v617
      %v1465 = vunpack.c.l.b16 %v618
      %v1466 = vunpack.c.l.b16 %v619
      %v1467 = vunpack.c.l.b16 %v620
      %v1468 = vunpack.c.l.b16 %v621
      %v1469 = vunpack.c.l.b16 %v622
      %v1470 = vunpack.c.l.b16 %v623
      %v1471 = vunpack.c.l.b16 %v624
      %v1472 = vunpack.c.l.b16 %v625
      %v1473 = vunpack.c.l.b16 %v626
      %v1474 = vunpack.c.l.b16 %v627
      %v1475 = vunpack.c.l.b16 %v628
      %v1476 = vunpack.c.l.b16 %v629
      %v1477 = vunpack.c.l.b16 %v630
      %v1478 = vunpack.c.l.b16 %v631
      %v1479 = vunpack.c.l.b16 %v632
      %v1480 = vunpack.c.l.b16 %v633
      %v1481 = vunpack.c.l.b16 %v634
      %v1482 = vunpack.c.l.b16 %v635
      %v1483 = vunpack.c.l.b16 %v636
      %v1484 = vunpack.c.l.b16 %v637
      %v1485 = vunpack.c.l.b16 %v638
      %v1486 = vunpack.c.l.b16 %v639
      %v1487 = vunpack.c.l.b16 %v640
      %v1488 = vunpack.c.l.b16 %v641
      %v1489 = vunpack.c.l.b16 %v642
      %v1490 = vunpack.c.l.b16 %v643
      %v1491 = vunpack.c.l.b16 %v644
      %v1492 = vunpack.c.l.b16 %v645
      %v1493 = vunpack.c.l.b16 %v646
      %v1494 = vunpack.c.l.b16 %v647
      %v1495 = vunpack.c.l.b16 %v648
      %v1496 = vunpack.c.l.b16 %v649
      %v1497 = vunpack.c.l.b16 %v650
      %v1498 = vunpack.c.l.b16 %v651
      %v1499 = vunpack.c.l.b16 %v652
      %v1500 = vunpack.c.l.b16 %v653
      %v1501 = vunpack.c.l.b16 %v654
      %v1502 = vunpack.c.l.b16 %v655
      %v1503 = vunpack.c.l.b16 %v656
      %v1504 = vunpack.c.l.b16 %v657
      %v1505 = vunpack.c.l.b16 %v658
      %v1506 = vunpack.c.l.b16 %v659
      %v1507 = vpack.c.b16 %v1460, %v1459
      %v1508 = vpack.c.b16 %v1462, %v1461
      %v1509 = vpack.c.b16 %v1464, %v1463
      %v1510 = vpack.c.b16 %v1466, %v1465
      %v1511 = vpack.c.b16 %v1468, %v1467
      %v1512 = vpack.c.b16 %v1470, %v1469
      %v1513 = vpack.c.b16 %v1472, %v1471
      %v1514 = vpack.c.b16 %v1474, %v1473
      %v1515 = vpack.c.b16 %v1476, %v1475
      %v1516 = vpack.c.b16 %v1478, %v1477
      %v1517 = vpack.c.b16 %v1480, %v1479
      %v1518 = vpack.c.b16 %v1482, %v1481
      %v1519 = vpack.c.b16 %v1484, %v1483
      %v1520 = vpack.c.b16 %v1486, %v1485
      %v1521 = vpack.c.b16 %v1488, %v1487
      %v1522 = vpack.c.b16 %v1490, %v1489
      %v1523 = vpack.c.b16 %v1492, %v1491
      %v1524 = vpack.c.b16 %v1494, %v1493
      %v1525 = vpack.c.b16 %v1496, %v1495
      %v1526 = vpack.c.b16 %v1498, %v1497
      %v1527 = vpack.c.b16 %v1500, %v1499
      %v1528 = vpack.c.b16 %v1502, %v1501
      %v1529 = vpack.c.b16 %v1504, %v1503
      %v1530 = vpack.c.b16 %v1506, %v1505
      %1555 = vmatpush.bf16.msra.mxu0 %v1514
      %1556 = vmatpush.bf16.msra.mxu0 %v1513
      %1557 = vmatpush.bf16.msra.mxu0 %v1512
      %1558 = vmatpush.bf16.msra.mxu0 %v1511
      %1559 = vmatpush.bf16.msra.mxu0 %v1510
      %1560 = vmatpush.bf16.msra.mxu0 %v1509
      %1561 = vmatpush.bf16.msra.mxu0 %v1508
      %1562 = vmatpush.bf16.msra.mxu0 %v1507
      %1563 = vmatmul.bf16.gmra.mxu0 %v532
      %v1564 = vpop.f32.mrf.mxu0
      %v1565 = vadd.f32 %v1372, %v1564
      %v1566 = vpop.f32.mrf.mxu0
      %v1567 = vadd.f32 %v1374, %v1566
      %1568 = vmatmul.bf16.gmra.mxu0 %v533
      %v1569 = vpop.f32.mrf.mxu0
      %v1570 = vadd.f32 %v1377, %v1569
      %v1571 = vpop.f32.mrf.mxu0
      %v1572 = vadd.f32 %v1379, %v1571
      %1573 = vmatmul.bf16.gmra.mxu0 %v534
      %v1574 = vpop.f32.mrf.mxu0
      %v1575 = vadd.f32 %v1382, %v1574
      %v1576 = vpop.f32.mrf.mxu0
      %v1577 = vadd.f32 %v1384, %v1576
      %1578 = vmatmul.bf16.gmra.mxu0 %v535
      %v1579 = vpop.f32.mrf.mxu0
      %v1580 = vadd.f32 %v1387, %v1579
      %v1581 = vpop.f32.mrf.mxu0
      %v1582 = vadd.f32 %v1389, %v1581
      %1583 = vmatmul.bf16.gmra.mxu0 %v536
      %v1584 = vpop.f32.mrf.mxu0
      %v1585 = vadd.f32 %v1392, %v1584
      %v1586 = vpop.f32.mrf.mxu0
      %v1587 = vadd.f32 %v1394, %v1586
      %1588 = vmatmul.bf16.gmra.mxu0 %v537
      %v1589 = vpop.f32.mrf.mxu0
      %v1590 = vadd.f32 %v1397, %v1589
      %v1591 = vpop.f32.mrf.mxu0
      %v1592 = vadd.f32 %v1399, %v1591
      %1593 = vmatmul.bf16.gmra.mxu0 %v538
      %v1594 = vpop.f32.mrf.mxu0
      %v1595 = vadd.f32 %v1402, %v1594
      %v1596 = vpop.f32.mrf.mxu0
      %v1597 = vadd.f32 %v1404, %v1596
      %1598 = vmatmul.bf16.gmra.mxu0 %v539
      %v1599 = vpop.f32.mrf.mxu0
      %v1600 = vadd.f32 %v1407, %v1599
      %v1601 = vpop.f32.mrf.mxu0
      %v1602 = vadd.f32 %v1409, %v1601
      %1603 = vdwg.mxu0
      %1604 = vmatpush.bf16.msra.mxu0 %v1522
      %1605 = vmatpush.bf16.msra.mxu0 %v1521
      %1606 = vmatpush.bf16.msra.mxu0 %v1520
      %1607 = vmatpush.bf16.msra.mxu0 %v1519
      %1608 = vmatpush.bf16.msra.mxu0 %v1518
      %1609 = vmatpush.bf16.msra.mxu0 %v1517
      %1610 = vmatpush.bf16.msra.mxu0 %v1516
      %1611 = vmatpush.bf16.msra.mxu0 %v1515
      %1612 = vmatmul.bf16.gmra.mxu0 %v564
      %v1613 = vpop.f32.mrf.mxu0
      %v1614 = vadd.f32 %v1565, %v1613
      %v1615 = vpop.f32.mrf.mxu0
      %v1616 = vadd.f32 %v1567, %v1615
      %1617 = vmatmul.bf16.gmra.mxu0 %v565
      %v1618 = vpop.f32.mrf.mxu0
      %v1619 = vadd.f32 %v1570, %v1618
      %v1620 = vpop.f32.mrf.mxu0
      %v1621 = vadd.f32 %v1572, %v1620
      %1622 = vmatmul.bf16.gmra.mxu0 %v566
      %v1623 = vpop.f32.mrf.mxu0
      %v1624 = vadd.f32 %v1575, %v1623
      %v1625 = vpop.f32.mrf.mxu0
      %v1626 = vadd.f32 %v1577, %v1625
      %1627 = vmatmul.bf16.gmra.mxu0 %v567
      %v1628 = vpop.f32.mrf.mxu0
      %v1629 = vadd.f32 %v1580, %v1628
      %v1630 = vpop.f32.mrf.mxu0
      %v1631 = vadd.f32 %v1582, %v1630
      %1632 = vmatmul.bf16.gmra.mxu0 %v568
      %v1633 = vpop.f32.mrf.mxu0
      %v1634 = vadd.f32 %v1585, %v1633
      %v1635 = vpop.f32.mrf.mxu0
      %v1636 = vadd.f32 %v1587, %v1635
      %1637 = vmatmul.bf16.gmra.mxu0 %v569
      %v1638 = vpop.f32.mrf.mxu0
      %v1639 = vadd.f32 %v1590, %v1638
      %v1640 = vpop.f32.mrf.mxu0
      %v1641 = vadd.f32 %v1592, %v1640
      %1642 = vmatmul.bf16.gmra.mxu0 %v570
      %v1643 = vpop.f32.mrf.mxu0
      %v1644 = vadd.f32 %v1595, %v1643
      %v1645 = vpop.f32.mrf.mxu0
      %v1646 = vadd.f32 %v1597, %v1645
      %1647 = vmatmul.bf16.gmra.mxu0 %v571
      %v1648 = vpop.f32.mrf.mxu0
      %v1649 = vadd.f32 %v1600, %v1648
      %v1650 = vpop.f32.mrf.mxu0
      %v1651 = vadd.f32 %v1602, %v1650
      %1652 = vdwg.mxu0
      %1653 = vmatpush.bf16.msra.mxu0 %v1530
      %1654 = vmatpush.bf16.msra.mxu0 %v1529
      %1655 = vmatpush.bf16.msra.mxu0 %v1528
      %1656 = vmatpush.bf16.msra.mxu0 %v1527
      %1657 = vmatpush.bf16.msra.mxu0 %v1526
      %1658 = vmatpush.bf16.msra.mxu0 %v1525
      %1659 = vmatpush.bf16.msra.mxu0 %v1524
      %1660 = vmatpush.bf16.msra.mxu0 %v1523
      %1661 = vmatmul.bf16.gmra.mxu0 %v596
      %v1662 = vpop.f32.mrf.mxu0
      %v1663 = vadd.f32 %v1614, %v1662
      %v1664 = vpop.f32.mrf.mxu0
      %v1665 = vadd.f32 %v1616, %v1664
      %1666 = vmatmul.bf16.gmra.mxu0 %v597
      %v1667 = vpop.f32.mrf.mxu0
      %v1668 = vadd.f32 %v1619, %v1667
      %v1669 = vpop.f32.mrf.mxu0
      %v1670 = vadd.f32 %v1621, %v1669
      %1671 = vmatmul.bf16.gmra.mxu0 %v598
      %v1672 = vpop.f32.mrf.mxu0
      %v1673 = vadd.f32 %v1624, %v1672
      %v1674 = vpop.f32.mrf.mxu0
      %v1675 = vadd.f32 %v1626, %v1674
      %1676 = vmatmul.bf16.gmra.mxu0 %v599
      %v1677 = vpop.f32.mrf.mxu0
      %v1678 = vadd.f32 %v1629, %v1677
      %v1679 = vpop.f32.mrf.mxu0
      %v1680 = vadd.f32 %v1631, %v1679
      %1681 = vmatmul.bf16.gmra.mxu0 %v600
      %v1682 = vpop.f32.mrf.mxu0
      %v1683 = vadd.f32 %v1634, %v1682
      %v1684 = vpop.f32.mrf.mxu0
      %v1685 = vadd.f32 %v1636, %v1684
      %1686 = vmatmul.bf16.gmra.mxu0 %v601
      %v1687 = vpop.f32.mrf.mxu0
      %v1688 = vadd.f32 %v1639, %v1687
      %v1689 = vpop.f32.mrf.mxu0
      %v1690 = vadd.f32 %v1641, %v1689
      %1691 = vmatmul.bf16.gmra.mxu0 %v602
      %v1692 = vpop.f32.mrf.mxu0
      %v1693 = vadd.f32 %v1644, %v1692
      %v1694 = vpop.f32.mrf.mxu0
      %v1695 = vadd.f32 %v1646, %v1694
      %1696 = vmatmul.bf16.gmra.mxu0 %v603
      %v1697 = vpop.f32.mrf.mxu0
      %v1698 = vadd.f32 %v1649, %v1697
      %v1699 = vpop.f32.mrf.mxu0
      %v1700 = vadd.f32 %v1651, %v1699
      %1701 = vdwg.mxu0
      %s1702 = sadd.s32 %s194, 2
      %s1703 = smul.u32 %s1702, 3
      %s1704 = smul.addr %s1703, 4
      %s1705 = scalar_lea.vmem %s183, %s1704
      %v1706 = vld [vmem:[%s1705] sm:$0xf]
      %v1707 = vld [vmem:[%s1705 + $0x4] sm:$0xf]
      %v1708 = vld [vmem:[%s1705 + $0xc] sm:$0xf]
      %v1709 = vld [vmem:[%s1705 + $0x10] sm:$0xf]
      %v1710 = vld [vmem:[%s1705 + $0x18] sm:$0xf]
      %v1711 = vld [vmem:[%s1705 + $0x1c] sm:$0xf]
      %v1712 = vld [vmem:[%s1705 + $0x24] sm:$0xf]
      %v1713 = vld [vmem:[%s1705 + $0x28] sm:$0xf]
      %v1714 = vld [vmem:[%s1705 + $0x30] sm:$0xf]
      %v1715 = vld [vmem:[%s1705 + $0x34] sm:$0xf]
      %v1716 = vld [vmem:[%s1705 + $0x3c] sm:$0xf]
      %v1717 = vld [vmem:[%s1705 + $0x40] sm:$0xf]
      %v1718 = vld [vmem:[%s1705 + $0x48] sm:$0xf]
      %v1719 = vld [vmem:[%s1705 + $0x4c] sm:$0xf]
      %v1720 = vld [vmem:[%s1705 + $0x54] sm:$0xf]
      %v1721 = vld [vmem:[%s1705 + $0x58] sm:$0xf]
      %v1722 = vld [vmem:[%s1705 + $0x8] sm:$0x1]
      %v1723 = vld [vmem:[%s1705 + $0x14] sm:$0x1]
      %v1724 = vld [vmem:[%s1705 + $0x20] sm:$0x1]
      %v1725 = vld [vmem:[%s1705 + $0x2c] sm:$0x1]
      %v1726 = vld [vmem:[%s1705 + $0x38] sm:$0x1]
      %v1727 = vld [vmem:[%s1705 + $0x44] sm:$0x1]
      %v1728 = vld [vmem:[%s1705 + $0x50] sm:$0x1]
      %v1729 = vld [vmem:[%s1705 + $0x5c] sm:$0x1]
      %v1731 = vshrl.u32 %v1706, 16
      %v1733 = vrot.slane %v1731, 4
      %v1734 = vshll.u32 %v1706, 16
      %v1736 = vrot.slane %v1734, 5
      %v1737 = vor.u32 %v1733, %v1736
      %v1738 = vrot.slane %v1737, 4
      %v1740 = vshll.u32 %v1707, 16
      %v1742 = vrot.slane %v1740, 5
      %v1743 = vsel %vm224, %v1738, %v1742
      %v1744 = vshrl.u32 %v1707, 16
      %v1746 = vrot.slane %v1744, 4
      %v1747 = vor.u32 %v1746, %v1742
      %v1748 = vrot.slane %v1747, 4
      %v1750 = vshll.u32 %v1722, 16
      %v1752 = vrot.slane %v1750, 5
      %v1753 = vsel %vm224, %v1748, %v1752
      %v1755 = vshrl.u32 %v1708, 16
      %v1757 = vrot.slane %v1755, 4
      %v1758 = vshll.u32 %v1708, 16
      %v1760 = vrot.slane %v1758, 5
      %v1761 = vor.u32 %v1757, %v1760
      %v1762 = vrot.slane %v1761, 4
      %v1764 = vshll.u32 %v1709, 16
      %v1766 = vrot.slane %v1764, 5
      %v1767 = vsel %vm224, %v1762, %v1766
      %v1768 = vshrl.u32 %v1709, 16
      %v1770 = vrot.slane %v1768, 4
      %v1771 = vor.u32 %v1770, %v1766
      %v1772 = vrot.slane %v1771, 4
      %v1774 = vshll.u32 %v1723, 16
      %v1776 = vrot.slane %v1774, 5
      %v1777 = vsel %vm224, %v1772, %v1776
      %v1779 = vshrl.u32 %v1710, 16
      %v1781 = vrot.slane %v1779, 4
      %v1782 = vshll.u32 %v1710, 16
      %v1784 = vrot.slane %v1782, 5
      %v1785 = vor.u32 %v1781, %v1784
      %v1786 = vrot.slane %v1785, 4
      %v1788 = vshll.u32 %v1711, 16
      %v1790 = vrot.slane %v1788, 5
      %v1791 = vsel %vm224, %v1786, %v1790
      %v1792 = vshrl.u32 %v1711, 16
      %v1794 = vrot.slane %v1792, 4
      %v1795 = vor.u32 %v1794, %v1790
      %v1796 = vrot.slane %v1795, 4
      %v1798 = vshll.u32 %v1724, 16
      %v1800 = vrot.slane %v1798, 5
      %v1801 = vsel %vm224, %v1796, %v1800
      %v1803 = vshrl.u32 %v1712, 16
      %v1805 = vrot.slane %v1803, 4
      %v1806 = vshll.u32 %v1712, 16
      %v1808 = vrot.slane %v1806, 5
      %v1809 = vor.u32 %v1805, %v1808
      %v1810 = vrot.slane %v1809, 4
      %v1812 = vshll.u32 %v1713, 16
      %v1814 = vrot.slane %v1812, 5
      %v1815 = vsel %vm224, %v1810, %v1814
      %v1816 = vshrl.u32 %v1713, 16
      %v1818 = vrot.slane %v1816, 4
      %v1819 = vor.u32 %v1818, %v1814
      %v1820 = vrot.slane %v1819, 4
      %v1822 = vshll.u32 %v1725, 16
      %v1824 = vrot.slane %v1822, 5
      %v1825 = vsel %vm224, %v1820, %v1824
      %v1827 = vshrl.u32 %v1714, 16
      %v1829 = vrot.slane %v1827, 4
      %v1830 = vshll.u32 %v1714, 16
      %v1832 = vrot.slane %v1830, 5
      %v1833 = vor.u32 %v1829, %v1832
      %v1834 = vrot.slane %v1833, 4
      %v1836 = vshll.u32 %v1715, 16
      %v1838 = vrot.slane %v1836, 5
      %v1839 = vsel %vm224, %v1834, %v1838
      %v1840 = vshrl.u32 %v1715, 16
      %v1842 = vrot.slane %v1840, 4
      %v1843 = vor.u32 %v1842, %v1838
      %v1844 = vrot.slane %v1843, 4
      %v1846 = vshll.u32 %v1726, 16
      %v1848 = vrot.slane %v1846, 5
      %v1849 = vsel %vm224, %v1844, %v1848
      %v1851 = vshrl.u32 %v1716, 16
      %v1853 = vrot.slane %v1851, 4
      %v1854 = vshll.u32 %v1716, 16
      %v1856 = vrot.slane %v1854, 5
      %v1857 = vor.u32 %v1853, %v1856
      %v1858 = vrot.slane %v1857, 4
      %v1860 = vshll.u32 %v1717, 16
      %v1862 = vrot.slane %v1860, 5
      %v1863 = vsel %vm224, %v1858, %v1862
      %v1864 = vshrl.u32 %v1717, 16
      %v1866 = vrot.slane %v1864, 4
      %v1867 = vor.u32 %v1866, %v1862
      %v1868 = vrot.slane %v1867, 4
      %v1870 = vshll.u32 %v1727, 16
      %v1872 = vrot.slane %v1870, 5
      %v1873 = vsel %vm224, %v1868, %v1872
      %v1875 = vshrl.u32 %v1718, 16
      %v1877 = vrot.slane %v1875, 4
      %v1878 = vshll.u32 %v1718, 16
      %v1880 = vrot.slane %v1878, 5
      %v1881 = vor.u32 %v1877, %v1880
      %v1882 = vrot.slane %v1881, 4
      %v1884 = vshll.u32 %v1719, 16
      %v1886 = vrot.slane %v1884, 5
      %v1887 = vsel %vm224, %v1882, %v1886
      %v1888 = vshrl.u32 %v1719, 16
      %v1890 = vrot.slane %v1888, 4
      %v1891 = vor.u32 %v1890, %v1886
      %v1892 = vrot.slane %v1891, 4
      %v1894 = vshll.u32 %v1728, 16
      %v1896 = vrot.slane %v1894, 5
      %v1897 = vsel %vm224, %v1892, %v1896
      %v1899 = vshrl.u32 %v1720, 16
      %v1901 = vrot.slane %v1899, 4
      %v1902 = vshll.u32 %v1720, 16
      %v1904 = vrot.slane %v1902, 5
      %v1905 = vor.u32 %v1901, %v1904
      %v1906 = vrot.slane %v1905, 4
      %v1908 = vshll.u32 %v1721, 16
      %v1910 = vrot.slane %v1908, 5
      %v1911 = vsel %vm224, %v1906, %v1910
      %v1912 = vshrl.u32 %v1721, 16
      %v1914 = vrot.slane %v1912, 4
      %v1915 = vor.u32 %v1914, %v1910
      %v1916 = vrot.slane %v1915, 4
      %v1918 = vshll.u32 %v1729, 16
      %v1920 = vrot.slane %v1918, 5
      %v1921 = vsel %vm224, %v1916, %v1920
      %v1922 = vld [vmem:[%s1705] sm:$0xe]
      %v1923 = vld [vmem:[%s1705 + $0xc] sm:$0xe]
      %v1924 = vld [vmem:[%s1705 + $0x18] sm:$0xe]
      %v1925 = vld [vmem:[%s1705 + $0x24] sm:$0xe]
      %v1926 = vld [vmem:[%s1705 + $0x30] sm:$0xe]
      %v1927 = vld [vmem:[%s1705 + $0x3c] sm:$0xe]
      %v1928 = vld [vmem:[%s1705 + $0x48] sm:$0xe]
      %v1929 = vld [vmem:[%s1705 + $0x54] sm:$0xe]
      %v1954 = vrot.slane %v1922, 5
      %v1955 = vrot.slane %v1954, 4
      %v1956 = vrot.slane %v1707, 5
      %v1957 = vsel %vm451, %v1955, %v1956
      %v1958 = vrot.slane %v1956, 4
      %v1959 = vrot.slane %v1722, 5
      %v1960 = vsel %vm451, %v1958, %v1959
      %v1961 = vrot.slane %v1923, 5
      %v1962 = vrot.slane %v1961, 4
      %v1963 = vrot.slane %v1709, 5
      %v1964 = vsel %vm451, %v1962, %v1963
      %v1965 = vrot.slane %v1963, 4
      %v1966 = vrot.slane %v1723, 5
      %v1967 = vsel %vm451, %v1965, %v1966
      %v1968 = vrot.slane %v1924, 5
      %v1969 = vrot.slane %v1968, 4
      %v1970 = vrot.slane %v1711, 5
      %v1971 = vsel %vm451, %v1969, %v1970
      %v1972 = vrot.slane %v1970, 4
      %v1973 = vrot.slane %v1724, 5
      %v1974 = vsel %vm451, %v1972, %v1973
      %v1975 = vrot.slane %v1925, 5
      %v1976 = vrot.slane %v1975, 4
      %v1977 = vrot.slane %v1713, 5
      %v1978 = vsel %vm451, %v1976, %v1977
      %v1979 = vrot.slane %v1977, 4
      %v1980 = vrot.slane %v1725, 5
      %v1981 = vsel %vm451, %v1979, %v1980
      %v1982 = vrot.slane %v1926, 5
      %v1983 = vrot.slane %v1982, 4
      %v1984 = vrot.slane %v1715, 5
      %v1985 = vsel %vm451, %v1983, %v1984
      %v1986 = vrot.slane %v1984, 4
      %v1987 = vrot.slane %v1726, 5
      %v1988 = vsel %vm451, %v1986, %v1987
      %v1989 = vrot.slane %v1927, 5
      %v1990 = vrot.slane %v1989, 4
      %v1991 = vrot.slane %v1717, 5
      %v1992 = vsel %vm451, %v1990, %v1991
      %v1993 = vrot.slane %v1991, 4
      %v1994 = vrot.slane %v1727, 5
      %v1995 = vsel %vm451, %v1993, %v1994
      %v1996 = vrot.slane %v1928, 5
      %v1997 = vrot.slane %v1996, 4
      %v1998 = vrot.slane %v1719, 5
      %v1999 = vsel %vm451, %v1997, %v1998
      %v2000 = vrot.slane %v1998, 4
      %v2001 = vrot.slane %v1728, 5
      %v2002 = vsel %vm451, %v2000, %v2001
      %v2003 = vrot.slane %v1929, 5
      %v2004 = vrot.slane %v2003, 4
      %v2005 = vrot.slane %v1721, 5
      %v2006 = vsel %vm451, %v2004, %v2005
      %v2007 = vrot.slane %v2005, 4
      %v2008 = vrot.slane %v1729, 5
      %v2009 = vsel %vm451, %v2007, %v2008
      %v2018 = vunpack.c.l.b16 %v1706
      %v2019 = vunpack.c.l.b16 %v1707
      %v2020 = vunpack.c.l.b16 %v1708
      %v2021 = vunpack.c.l.b16 %v1709
      %v2022 = vunpack.c.l.b16 %v1710
      %v2023 = vunpack.c.l.b16 %v1711
      %v2024 = vunpack.c.l.b16 %v1712
      %v2025 = vunpack.c.l.b16 %v1713
      %v2026 = vunpack.c.l.b16 %v1714
      %v2027 = vunpack.c.l.b16 %v1715
      %v2028 = vunpack.c.l.b16 %v1716
      %v2029 = vunpack.c.l.b16 %v1717
      %v2030 = vunpack.c.l.b16 %v1718
      %v2031 = vunpack.c.l.b16 %v1719
      %v2032 = vunpack.c.l.b16 %v1720
      %v2033 = vunpack.c.l.b16 %v1721
      %v2034 = vpack.c.b16 %v2019, %v2018
      %v2035 = vpack.c.b16 %v2021, %v2020
      %v2036 = vpack.c.b16 %v2023, %v2022
      %v2037 = vpack.c.b16 %v2025, %v2024
      %v2038 = vpack.c.b16 %v2027, %v2026
      %v2039 = vpack.c.b16 %v2029, %v2028
      %v2040 = vpack.c.b16 %v2031, %v2030
      %v2041 = vpack.c.b16 %v2033, %v2032
      %v2050 = vunpack.c.l.b16 %v1743
      %v2051 = vunpack.c.l.b16 %v1753
      %v2052 = vunpack.c.l.b16 %v1767
      %v2053 = vunpack.c.l.b16 %v1777
      %v2054 = vunpack.c.l.b16 %v1791
      %v2055 = vunpack.c.l.b16 %v1801
      %v2056 = vunpack.c.l.b16 %v1815
      %v2057 = vunpack.c.l.b16 %v1825
      %v2058 = vunpack.c.l.b16 %v1839
      %v2059 = vunpack.c.l.b16 %v1849
      %v2060 = vunpack.c.l.b16 %v1863
      %v2061 = vunpack.c.l.b16 %v1873
      %v2062 = vunpack.c.l.b16 %v1887
      %v2063 = vunpack.c.l.b16 %v1897
      %v2064 = vunpack.c.l.b16 %v1911
      %v2065 = vunpack.c.l.b16 %v1921
      %v2066 = vpack.c.b16 %v2051, %v2050
      %v2067 = vpack.c.b16 %v2053, %v2052
      %v2068 = vpack.c.b16 %v2055, %v2054
      %v2069 = vpack.c.b16 %v2057, %v2056
      %v2070 = vpack.c.b16 %v2059, %v2058
      %v2071 = vpack.c.b16 %v2061, %v2060
      %v2072 = vpack.c.b16 %v2063, %v2062
      %v2073 = vpack.c.b16 %v2065, %v2064
      %v2082 = vunpack.c.l.b16 %v1957
      %v2083 = vunpack.c.l.b16 %v1960
      %v2084 = vunpack.c.l.b16 %v1964
      %v2085 = vunpack.c.l.b16 %v1967
      %v2086 = vunpack.c.l.b16 %v1971
      %v2087 = vunpack.c.l.b16 %v1974
      %v2088 = vunpack.c.l.b16 %v1978
      %v2089 = vunpack.c.l.b16 %v1981
      %v2090 = vunpack.c.l.b16 %v1985
      %v2091 = vunpack.c.l.b16 %v1988
      %v2092 = vunpack.c.l.b16 %v1992
      %v2093 = vunpack.c.l.b16 %v1995
      %v2094 = vunpack.c.l.b16 %v1999
      %v2095 = vunpack.c.l.b16 %v2002
      %v2096 = vunpack.c.l.b16 %v2006
      %v2097 = vunpack.c.l.b16 %v2009
      %v2098 = vpack.c.b16 %v2083, %v2082
      %v2099 = vpack.c.b16 %v2085, %v2084
      %v2100 = vpack.c.b16 %v2087, %v2086
      %v2101 = vpack.c.b16 %v2089, %v2088
      %v2102 = vpack.c.b16 %v2091, %v2090
      %v2103 = vpack.c.b16 %v2093, %v2092
      %v2104 = vpack.c.b16 %v2095, %v2094
      %v2105 = vpack.c.b16 %v2097, %v2096
      %v2114 = vld [vmem:[%s1 + $0x180] sm:$0xf]
      %v2115 = vld [vmem:[%s1 + $0x184] sm:$0xf]
      %v2116 = vld [vmem:[%s1 + $0x188] sm:$0xf]
      %v2117 = vld [vmem:[%s1 + $0x18c] sm:$0xf]
      %v2118 = vld [vmem:[%s1 + $0x190] sm:$0xf]
      %v2119 = vld [vmem:[%s1 + $0x194] sm:$0xf]
      %v2120 = vld [vmem:[%s1 + $0x198] sm:$0xf]
      %v2121 = vld [vmem:[%s1 + $0x19c] sm:$0xf]
      %v2122 = vld [vmem:[%s1 + $0x1a0] sm:$0xf]
      %v2123 = vld [vmem:[%s1 + $0x1a4] sm:$0xf]
      %v2124 = vld [vmem:[%s1 + $0x1a8] sm:$0xf]
      %v2125 = vld [vmem:[%s1 + $0x1ac] sm:$0xf]
      %v2126 = vld [vmem:[%s1 + $0x1b0] sm:$0xf]
      %v2127 = vld [vmem:[%s1 + $0x1b4] sm:$0xf]
      %v2128 = vld [vmem:[%s1 + $0x1b8] sm:$0xf]
      %v2129 = vld [vmem:[%s1 + $0x1bc] sm:$0xf]
      %v2130 = vld [vmem:[%s1 + $0x1c0] sm:$0xf]
      %v2131 = vld [vmem:[%s1 + $0x1c4] sm:$0xf]
      %v2132 = vld [vmem:[%s1 + $0x1c8] sm:$0xf]
      %v2133 = vld [vmem:[%s1 + $0x1cc] sm:$0xf]
      %v2134 = vld [vmem:[%s1 + $0x1d0] sm:$0xf]
      %v2135 = vld [vmem:[%s1 + $0x1d4] sm:$0xf]
      %v2136 = vld [vmem:[%s1 + $0x1d8] sm:$0xf]
      %v2137 = vld [vmem:[%s1 + $0x1dc] sm:$0xf]
      %v2138 = vld [vmem:[%s1 + $0x1e0] sm:$0xf]
      %v2139 = vld [vmem:[%s1 + $0x1e4] sm:$0xf]
      %v2140 = vld [vmem:[%s1 + $0x1e8] sm:$0xf]
      %v2141 = vld [vmem:[%s1 + $0x1ec] sm:$0xf]
      %v2142 = vld [vmem:[%s1 + $0x1f0] sm:$0xf]
      %v2143 = vld [vmem:[%s1 + $0x1f4] sm:$0xf]
      %v2144 = vld [vmem:[%s1 + $0x1f8] sm:$0xf]
      %v2145 = vld [vmem:[%s1 + $0x1fc] sm:$0xf]
      %v2146 = vld [vmem:[%s1 + $0x200] sm:$0xf]
      %v2147 = vld [vmem:[%s1 + $0x204] sm:$0xf]
      %v2148 = vld [vmem:[%s1 + $0x208] sm:$0xf]
      %v2149 = vld [vmem:[%s1 + $0x20c] sm:$0xf]
      %v2150 = vld [vmem:[%s1 + $0x210] sm:$0xf]
      %v2151 = vld [vmem:[%s1 + $0x214] sm:$0xf]
      %v2152 = vld [vmem:[%s1 + $0x218] sm:$0xf]
      %v2153 = vld [vmem:[%s1 + $0x21c] sm:$0xf]
      %v2154 = vld [vmem:[%s1 + $0x220] sm:$0xf]
      %v2155 = vld [vmem:[%s1 + $0x224] sm:$0xf]
      %v2156 = vld [vmem:[%s1 + $0x228] sm:$0xf]
      %v2157 = vld [vmem:[%s1 + $0x22c] sm:$0xf]
      %v2158 = vld [vmem:[%s1 + $0x230] sm:$0xf]
      %v2159 = vld [vmem:[%s1 + $0x234] sm:$0xf]
      %v2160 = vld [vmem:[%s1 + $0x238] sm:$0xf]
      %v2161 = vld [vmem:[%s1 + $0x23c] sm:$0xf]
      %v2210 = vunpack.c.l.b16 %v2114
      %v2211 = vunpack.c.l.b16 %v2115
      %v2212 = vunpack.c.l.b16 %v2116
      %v2213 = vunpack.c.l.b16 %v2117
      %v2214 = vunpack.c.l.b16 %v2118
      %v2215 = vunpack.c.l.b16 %v2119
      %v2216 = vunpack.c.l.b16 %v2120
      %v2217 = vunpack.c.l.b16 %v2121
      %v2218 = vunpack.c.l.b16 %v2122
      %v2219 = vunpack.c.l.b16 %v2123
      %v2220 = vunpack.c.l.b16 %v2124
      %v2221 = vunpack.c.l.b16 %v2125
      %v2222 = vunpack.c.l.b16 %v2126
      %v2223 = vunpack.c.l.b16 %v2127
      %v2224 = vunpack.c.l.b16 %v2128
      %v2225 = vunpack.c.l.b16 %v2129
      %v2226 = vunpack.c.l.b16 %v2130
      %v2227 = vunpack.c.l.b16 %v2131
      %v2228 = vunpack.c.l.b16 %v2132
      %v2229 = vunpack.c.l.b16 %v2133
      %v2230 = vunpack.c.l.b16 %v2134
      %v2231 = vunpack.c.l.b16 %v2135
      %v2232 = vunpack.c.l.b16 %v2136
      %v2233 = vunpack.c.l.b16 %v2137
      %v2234 = vunpack.c.l.b16 %v2138
      %v2235 = vunpack.c.l.b16 %v2139
      %v2236 = vunpack.c.l.b16 %v2140
      %v2237 = vunpack.c.l.b16 %v2141
      %v2238 = vunpack.c.l.b16 %v2142
      %v2239 = vunpack.c.l.b16 %v2143
      %v2240 = vunpack.c.l.b16 %v2144
      %v2241 = vunpack.c.l.b16 %v2145
      %v2242 = vunpack.c.l.b16 %v2146
      %v2243 = vunpack.c.l.b16 %v2147
      %v2244 = vunpack.c.l.b16 %v2148
      %v2245 = vunpack.c.l.b16 %v2149
      %v2246 = vunpack.c.l.b16 %v2150
      %v2247 = vunpack.c.l.b16 %v2151
      %v2248 = vunpack.c.l.b16 %v2152
      %v2249 = vunpack.c.l.b16 %v2153
      %v2250 = vunpack.c.l.b16 %v2154
      %v2251 = vunpack.c.l.b16 %v2155
      %v2252 = vunpack.c.l.b16 %v2156
      %v2253 = vunpack.c.l.b16 %v2157
      %v2254 = vunpack.c.l.b16 %v2158
      %v2255 = vunpack.c.l.b16 %v2159
      %v2256 = vunpack.c.l.b16 %v2160
      %v2257 = vunpack.c.l.b16 %v2161
      %v2258 = vpack.c.b16 %v2211, %v2210
      %v2259 = vpack.c.b16 %v2213, %v2212
      %v2260 = vpack.c.b16 %v2215, %v2214
      %v2261 = vpack.c.b16 %v2217, %v2216
      %v2262 = vpack.c.b16 %v2219, %v2218
      %v2263 = vpack.c.b16 %v2221, %v2220
      %v2264 = vpack.c.b16 %v2223, %v2222
      %v2265 = vpack.c.b16 %v2225, %v2224
      %v2266 = vpack.c.b16 %v2227, %v2226
      %v2267 = vpack.c.b16 %v2229, %v2228
      %v2268 = vpack.c.b16 %v2231, %v2230
      %v2269 = vpack.c.b16 %v2233, %v2232
      %v2270 = vpack.c.b16 %v2235, %v2234
      %v2271 = vpack.c.b16 %v2237, %v2236
      %v2272 = vpack.c.b16 %v2239, %v2238
      %v2273 = vpack.c.b16 %v2241, %v2240
      %v2274 = vpack.c.b16 %v2243, %v2242
      %v2275 = vpack.c.b16 %v2245, %v2244
      %v2276 = vpack.c.b16 %v2247, %v2246
      %v2277 = vpack.c.b16 %v2249, %v2248
      %v2278 = vpack.c.b16 %v2251, %v2250
      %v2279 = vpack.c.b16 %v2253, %v2252
      %v2280 = vpack.c.b16 %v2255, %v2254
      %v2281 = vpack.c.b16 %v2257, %v2256
      %2306 = vmatpush.bf16.msra.mxu0 %v2265
      %2307 = vmatpush.bf16.msra.mxu0 %v2264
      %2308 = vmatpush.bf16.msra.mxu0 %v2263
      %2309 = vmatpush.bf16.msra.mxu0 %v2262
      %2310 = vmatpush.bf16.msra.mxu0 %v2261
      %2311 = vmatpush.bf16.msra.mxu0 %v2260
      %2312 = vmatpush.bf16.msra.mxu0 %v2259
      %2313 = vmatpush.bf16.msra.mxu0 %v2258
      %2314 = vmatmul.bf16.gmra.mxu0 %v2034
      %v2315 = vpop.f32.mrf.mxu0
      %v2316 = vadd.f32 0.0, %v2315
      %v2317 = vpop.f32.mrf.mxu0
      %v2318 = vadd.f32 0.0, %v2317
      %2319 = vmatmul.bf16.gmra.mxu0 %v2035
      %v2320 = vpop.f32.mrf.mxu0
      %v2321 = vadd.f32 0.0, %v2320
      %v2322 = vpop.f32.mrf.mxu0
      %v2323 = vadd.f32 0.0, %v2322
      %2324 = vmatmul.bf16.gmra.mxu0 %v2036
      %v2325 = vpop.f32.mrf.mxu0
      %v2326 = vadd.f32 0.0, %v2325
      %v2327 = vpop.f32.mrf.mxu0
      %v2328 = vadd.f32 0.0, %v2327
      %2329 = vmatmul.bf16.gmra.mxu0 %v2037
      %v2330 = vpop.f32.mrf.mxu0
      %v2331 = vadd.f32 0.0, %v2330
      %v2332 = vpop.f32.mrf.mxu0
      %v2333 = vadd.f32 0.0, %v2332
      %2334 = vmatmul.bf16.gmra.mxu0 %v2038
      %v2335 = vpop.f32.mrf.mxu0
      %v2336 = vadd.f32 0.0, %v2335
      %v2337 = vpop.f32.mrf.mxu0
      %v2338 = vadd.f32 0.0, %v2337
      %2339 = vmatmul.bf16.gmra.mxu0 %v2039
      %v2340 = vpop.f32.mrf.mxu0
      %v2341 = vadd.f32 0.0, %v2340
      %v2342 = vpop.f32.mrf.mxu0
      %v2343 = vadd.f32 0.0, %v2342
      %2344 = vmatmul.bf16.gmra.mxu0 %v2040
      %v2345 = vpop.f32.mrf.mxu0
      %v2346 = vadd.f32 0.0, %v2345
      %v2347 = vpop.f32.mrf.mxu0
      %v2348 = vadd.f32 0.0, %v2347
      %2349 = vmatmul.bf16.gmra.mxu0 %v2041
      %v2350 = vpop.f32.mrf.mxu0
      %v2351 = vadd.f32 0.0, %v2350
      %v2352 = vpop.f32.mrf.mxu0
      %v2353 = vadd.f32 0.0, %v2352
      %2354 = vdwg.mxu0
      %2355 = vmatpush.bf16.msra.mxu0 %v2273
      %2356 = vmatpush.bf16.msra.mxu0 %v2272
      %2357 = vmatpush.bf16.msra.mxu0 %v2271
      %2358 = vmatpush.bf16.msra.mxu0 %v2270
      %2359 = vmatpush.bf16.msra.mxu0 %v2269
      %2360 = vmatpush.bf16.msra.mxu0 %v2268
      %2361 = vmatpush.bf16.msra.mxu0 %v2267
      %2362 = vmatpush.bf16.msra.mxu0 %v2266
      %2363 = vmatmul.bf16.gmra.mxu0 %v2066
      %v2364 = vpop.f32.mrf.mxu0
      %v2365 = vadd.f32 %v2316, %v2364
      %v2366 = vpop.f32.mrf.mxu0
      %v2367 = vadd.f32 %v2318, %v2366
      %2368 = vmatmul.bf16.gmra.mxu0 %v2067
      %v2369 = vpop.f32.mrf.mxu0
      %v2370 = vadd.f32 %v2321, %v2369
      %v2371 = vpop.f32.mrf.mxu0
      %v2372 = vadd.f32 %v2323, %v2371
      %2373 = vmatmul.bf16.gmra.mxu0 %v2068
      %v2374 = vpop.f32.mrf.mxu0
      %v2375 = vadd.f32 %v2326, %v2374
      %v2376 = vpop.f32.mrf.mxu0
      %v2377 = vadd.f32 %v2328, %v2376
      %2378 = vmatmul.bf16.gmra.mxu0 %v2069
      %v2379 = vpop.f32.mrf.mxu0
      %v2380 = vadd.f32 %v2331, %v2379
      %v2381 = vpop.f32.mrf.mxu0
      %v2382 = vadd.f32 %v2333, %v2381
      %2383 = vmatmul.bf16.gmra.mxu0 %v2070
      %v2384 = vpop.f32.mrf.mxu0
      %v2385 = vadd.f32 %v2336, %v2384
      %v2386 = vpop.f32.mrf.mxu0
      %v2387 = vadd.f32 %v2338, %v2386
      %2388 = vmatmul.bf16.gmra.mxu0 %v2071
      %v2389 = vpop.f32.mrf.mxu0
      %v2390 = vadd.f32 %v2341, %v2389
      %v2391 = vpop.f32.mrf.mxu0
      %v2392 = vadd.f32 %v2343, %v2391
      %2393 = vmatmul.bf16.gmra.mxu0 %v2072
      %v2394 = vpop.f32.mrf.mxu0
      %v2395 = vadd.f32 %v2346, %v2394
      %v2396 = vpop.f32.mrf.mxu0
      %v2397 = vadd.f32 %v2348, %v2396
      %2398 = vmatmul.bf16.gmra.mxu0 %v2073
      %v2399 = vpop.f32.mrf.mxu0
      %v2400 = vadd.f32 %v2351, %v2399
      %v2401 = vpop.f32.mrf.mxu0
      %v2402 = vadd.f32 %v2353, %v2401
      %2403 = vdwg.mxu0
      %2404 = vmatpush.bf16.msra.mxu0 %v2281
      %2405 = vmatpush.bf16.msra.mxu0 %v2280
      %2406 = vmatpush.bf16.msra.mxu0 %v2279
      %2407 = vmatpush.bf16.msra.mxu0 %v2278
      %2408 = vmatpush.bf16.msra.mxu0 %v2277
      %2409 = vmatpush.bf16.msra.mxu0 %v2276
      %2410 = vmatpush.bf16.msra.mxu0 %v2275
      %2411 = vmatpush.bf16.msra.mxu0 %v2274
      %2412 = vmatmul.bf16.gmra.mxu0 %v2098
      %v2413 = vpop.f32.mrf.mxu0
      %v2414 = vadd.f32 %v2365, %v2413
      %v2415 = vpop.f32.mrf.mxu0
      %v2416 = vadd.f32 %v2367, %v2415
      %2417 = vmatmul.bf16.gmra.mxu0 %v2099
      %v2418 = vpop.f32.mrf.mxu0
      %v2419 = vadd.f32 %v2370, %v2418
      %v2420 = vpop.f32.mrf.mxu0
      %v2421 = vadd.f32 %v2372, %v2420
      %2422 = vmatmul.bf16.gmra.mxu0 %v2100
      %v2423 = vpop.f32.mrf.mxu0
      %v2424 = vadd.f32 %v2375, %v2423
      %v2425 = vpop.f32.mrf.mxu0
      %v2426 = vadd.f32 %v2377, %v2425
      %2427 = vmatmul.bf16.gmra.mxu0 %v2101
      %v2428 = vpop.f32.mrf.mxu0
      %v2429 = vadd.f32 %v2380, %v2428
      %v2430 = vpop.f32.mrf.mxu0
      %v2431 = vadd.f32 %v2382, %v2430
      %2432 = vmatmul.bf16.gmra.mxu0 %v2102
      %v2433 = vpop.f32.mrf.mxu0
      %v2434 = vadd.f32 %v2385, %v2433
      %v2435 = vpop.f32.mrf.mxu0
      %v2436 = vadd.f32 %v2387, %v2435
      %2437 = vmatmul.bf16.gmra.mxu0 %v2103
      %v2438 = vpop.f32.mrf.mxu0
      %v2439 = vadd.f32 %v2390, %v2438
      %v2440 = vpop.f32.mrf.mxu0
      %v2441 = vadd.f32 %v2392, %v2440
      %2442 = vmatmul.bf16.gmra.mxu0 %v2104
      %v2443 = vpop.f32.mrf.mxu0
      %v2444 = vadd.f32 %v2395, %v2443
      %v2445 = vpop.f32.mrf.mxu0
      %v2446 = vadd.f32 %v2397, %v2445
      %2447 = vmatmul.bf16.gmra.mxu0 %v2105
      %v2448 = vpop.f32.mrf.mxu0
      %v2449 = vadd.f32 %v2400, %v2448
      %v2450 = vpop.f32.mrf.mxu0
      %v2451 = vadd.f32 %v2402, %v2450
      %2452 = vdwg.mxu0
      %v2453 = vadd.f32 %v1663, %v2414
      %v2454 = vadd.f32 %v1665, %v2416
      %v2455 = vadd.f32 %v1668, %v2419
      %v2456 = vadd.f32 %v1670, %v2421
      %v2457 = vadd.f32 %v1673, %v2424
      %v2458 = vadd.f32 %v1675, %v2426
      %v2459 = vadd.f32 %v1678, %v2429
      %v2460 = vadd.f32 %v1680, %v2431
      %v2461 = vadd.f32 %v1683, %v2434
      %v2462 = vadd.f32 %v1685, %v2436
      %v2463 = vadd.f32 %v1688, %v2439
      %v2464 = vadd.f32 %v1690, %v2441
      %v2465 = vadd.f32 %v1693, %v2444
      %v2466 = vadd.f32 %v1695, %v2446
      %v2467 = vadd.f32 %v1698, %v2449
      %v2468 = vadd.f32 %v1700, %v2451
      %v2469 = vld [vmem:[%s2] sm:$0x1]
      %v2471 = vperm.slane %v2469, 0
      %v2473 = vadd.f32 %v2453, %v2471
      %v2474 = vadd.f32 %v2454, %v2471
      %v2475 = vadd.f32 %v2455, %v2471
      %v2476 = vadd.f32 %v2456, %v2471
      %v2477 = vadd.f32 %v2457, %v2471
      %v2478 = vadd.f32 %v2458, %v2471
      %v2479 = vadd.f32 %v2459, %v2471
      %v2480 = vadd.f32 %v2460, %v2471
      %v2481 = vadd.f32 %v2461, %v2471
      %v2482 = vadd.f32 %v2462, %v2471
      %v2483 = vadd.f32 %v2463, %v2471
      %v2484 = vadd.f32 %v2464, %v2471
      %v2485 = vadd.f32 %v2465, %v2471
      %v2486 = vadd.f32 %v2466, %v2471
      %v2487 = vadd.f32 %v2467, %v2471
      %v2488 = vadd.f32 %v2468, %v2471
      %v2489 = vmax.f32 %v2473, 0.0
      %v2490 = vmax.f32 %v2474, 0.0
      %v2491 = vmax.f32 %v2475, 0.0
      %v2492 = vmax.f32 %v2476, 0.0
      %v2493 = vmax.f32 %v2477, 0.0
      %v2494 = vmax.f32 %v2478, 0.0
      %v2495 = vmax.f32 %v2479, 0.0
      %v2496 = vmax.f32 %v2480, 0.0
      %v2497 = vmax.f32 %v2481, 0.0
      %v2498 = vmax.f32 %v2482, 0.0
      %v2499 = vmax.f32 %v2483, 0.0
      %v2500 = vmax.f32 %v2484, 0.0
      %v2501 = vmax.f32 %v2485, 0.0
      %v2502 = vmax.f32 %v2486, 0.0
      %v2503 = vmax.f32 %v2487, 0.0
      %v2504 = vmax.f32 %v2488, 0.0
      %v2505 = vpack.c.bf16 %v2489, %v2489
      %v2506 = vpack.c.bf16 %v2490, %v2490
      %v2507 = vpack.c.bf16 %v2491, %v2491
      %v2508 = vpack.c.bf16 %v2492, %v2492
      %v2509 = vpack.c.bf16 %v2493, %v2493
      %v2510 = vpack.c.bf16 %v2494, %v2494
      %v2511 = vpack.c.bf16 %v2495, %v2495
      %v2512 = vpack.c.bf16 %v2496, %v2496
      %v2513 = vpack.c.bf16 %v2497, %v2497
      %v2514 = vpack.c.bf16 %v2498, %v2498
      %v2515 = vpack.c.bf16 %v2499, %v2499
      %v2516 = vpack.c.bf16 %v2500, %v2500
      %v2517 = vpack.c.bf16 %v2501, %v2501
      %v2518 = vpack.c.bf16 %v2502, %v2502
      %v2519 = vpack.c.bf16 %v2503, %v2503
      %v2520 = vpack.c.bf16 %v2504, %v2504
      %2521 = vst [vmem:[%s190] sm:$0xf] %v2505
      %2522 = vst [vmem:[%s190 + $0x4] sm:$0xf] %v2506
      %2523 = vst [vmem:[%s190 + $0x8] sm:$0xf] %v2507
      %2524 = vst [vmem:[%s190 + $0xc] sm:$0xf] %v2508
      %2525 = vst [vmem:[%s190 + $0x10] sm:$0xf] %v2509
      %2526 = vst [vmem:[%s190 + $0x14] sm:$0xf] %v2510
      %2527 = vst [vmem:[%s190 + $0x18] sm:$0xf] %v2511
      %2528 = vst [vmem:[%s190 + $0x1c] sm:$0xf] %v2512
      %2529 = vst [vmem:[%s190 + $0x20] sm:$0xf] %v2513
      %2530 = vst [vmem:[%s190 + $0x24] sm:$0xf] %v2514
      %2531 = vst [vmem:[%s190 + $0x28] sm:$0xf] %v2515
      %2532 = vst [vmem:[%s190 + $0x2c] sm:$0xf] %v2516
      %2533 = vst [vmem:[%s190 + $0x30] sm:$0xf] %v2517
      %2534 = vst [vmem:[%s190 + $0x34] sm:$0xf] %v2518
      %2535 = vst [vmem:[%s190 + $0x38] sm:$0xf] %v2519
      %2536 = vst [vmem:[%s190 + $0x3c] sm:$0xf] %v2520
      %s2537 = smul.u32 %s18, 2
      %s2538 = sadd.s32 %s2537, %s19
      %s2539 = smul.u32 16, %s2538
      %p2540 = scmp.lt.s32.totalorder %s2539, 63
      %s2541 = scalar_select %p2540, %s2539, 63
      %s2542 = smul.addr %s2541, 4
      %s2543 = scalar_lea.vmem %s3, %s2542
      // Predicated region
      $region33: #{basic_block_forward.2} parent=31 // pred_check
        %p2544 = pneg %p116
      $region34: #{basic_block_forward.2} parent=31 // pred_check_branch
        %2546 = sbr.rel (%p2544) target = $region36
      $region35: #{basic_block_forward.2} parent=31 // pred_region
        %s2547 = smul.u32 %s18, 2
        %s2548 = sadd.s32 %s2547, %s19
        %s2549 = smul.u32 16, %s2548
      $region36: #{basic_block_forward.2} parent=31 // pred_fallthru
        _
    $region32: #{basic_block_forward.2} parent=5 // pred_fallthru
      _
    %p2550 = scmp.le.s32.totalorder 2, %s9
    // Predicated region
    $region37: #{basic_block_forward.2} parent=5 // pred_check
      %p2551 = pneg %p2550
    $region38: #{basic_block_forward.2} parent=5 // pred_check_branch
      %2553 = sbr.rel (%p2551) target = $region40
    $region39: #{basic_block_forward.2} parent=5 // pred_region
      %s2554 = ssub.s32 %s9, 2
      // Predicated region
      $region41: #{basic_block_forward.2} parent=39 // pred_check
        %p2555 = pneg %p122
      $region42: #{basic_block_forward.2} parent=39 // pred_check_branch
        %2557 = sbr.rel (%p2555) target = $region44
      $region43: #{basic_block_forward.2} parent=39 // pred_region
        %s2558 = smul.u32 %s20, 2
        %s2559 = sadd.s32 %s2558, %s21
        %s2560 = smul.u32 16, %s2559
        %p2561 = scmp.lt.s32.totalorder %s2560, 63
        %s2562 = scalar_select %p2561, %s2560, 63
        %s2563 = smul.addr %s2562, 4
        %s2564 = scalar_lea.vmem %s3, %s2563
      $region44: #{basic_block_forward.2} parent=39 // pred_fallthru
        _
    $region40: #{basic_block_forward.2} parent=5 // pred_fallthru
      _
  $region6: #{basic_block_forward.2} parent=0 // loop_footer
    %s13 = sadd.s32 1, %s9
  $region7: #{basic_block_forward.2} parent=0 // loop_footer_branch
    %8 = sbr.rel target = $region3
  $region8: #{basic_block_forward.2} parent=0 // loop_exit
    _

// kernel: basic_block_forward.3
$region0: #{basic_block_forward.3}
  #allocation0 [shape = 'u32[]', space=smem, size = 0x4, offset = 0x4, fixed_abs, tag = 'smem constant byte address 0x4 - core index']
  #allocation1 [shape = 'u32[72,128]{1,0:T(1,128)}', space=vmem, size = 0x9000, scoped, tag = 'internal scratch']
  %s0 = inlined_call_operand.vmem [shape: bf16[2,1,18,18,128], index: 0, kind: input, shape index: {}]
  %s1 = inlined_call_operand.vmem [shape: bf16[1152,128], index: 1, kind: input, shape index: {}]
  %s2 = inlined_call_operand.vmem [shape: f32[1,128], index: 2, kind: input, shape index: {}]
  %s3 = inlined_call_operand.vmem [shape: bf16[512,128], index: 3, kind: input, shape index: {}]
  %s4 = inlined_call_operand.vmem [shape: f32[512,128], index: 4, kind: output, shape index: {}]
  %s5 = sld [smem:[#allocation0]]
  $region49: #{basic_block_forward.3} parent=0
    _
  %s7 = ssub.s32 1, %s5
  %s8 = scalar_select 0, %s7, %s5
  loop: start=0, step=1, limit=6
  $region2: #{basic_block_forward.3} parent=0 // loop_pre_header
    _
  $region3: #{basic_block_forward.3} parent=0 // loop_header
    %s10 = sphi 0, %s14
    %p11 = scmp.ge.s32.totalorder %s10, 6
    %s17 = sphi 0, %s29
    %s18 = sphi 0, %s25
    %s19 = sphi 0, %s17
    %s20 = sphi 0, %s18
    %s21 = sphi 0, %s19
    %s22 = sphi 0, %s20
    %s32 = sphi 0, %s34
    %s35 = sphi 0, %s32
    %s36 = sphi 0, %s35
    %s52 = sphi 0, %s36
    %s56 = sphi 0, %s56
    %s58 = sphi 0, %s56
    %s59 = sphi 0, %s58
    %s73 = sphi 0, %s59
    %s77 = sphi 0, %s77
    %s79 = sphi 0, %s77
    %s80 = sphi 0, %s79
    %s94 = sphi 0, %s80
    %s104 = sphi 0, %s106
    %s107 = sphi 0, %s104
    %s108 = sphi 0, %s107
    %s124 = sphi 0, %s108
    %s134 = sphi 0, %s136
    %s137 = sphi 0, %s134
    %s138 = sphi 0, %s137
    %s154 = sphi 0, %s138
  $region4: #{basic_block_forward.3} parent=0 // loop_header_branch
    %13 = sbr.rel (%p11) target = $region8
  $region5: #{basic_block_forward.3} parent=0 // loop_body
    %s15 = ssub.s32 %s10, 1
    %s16 = ssub.s32 %s10, 2
    %s23 = sadd.s32 1, %s18
    %p24 = scmp.ge.s32.totalorder %s23, 2
    %s25 = scalar_select %p24, 0, %s23
    %s26 = sadd.s32 1, %s17
    %s27 = scalar_select %p24, %s26, %s17
    %p28 = scmp.ge.s32.totalorder %s27, 2
    %s29 = scalar_select %p28, 0, %s27
    %s30 = ssub.s32 %s17, %s29
    %p31 = scmp.eq.s32.totalorder %s30, 0
    %s33 = sadd.s32 %s32, 1
    %s34 = scalar_select %p31, %s32, %s33
    %p37 = pneg %p31
    %p38 = scmp.eq.s32.totalorder %s10, 3
    %p39 = por %p37, %p38
    %p40 = scmp.ne.s32.totalorder %s32, %s35
    %p41 = scmp.eq.s32.totalorder %s10, 0
    %p42 = por %p40, %p41
    %p43 = scmp.ne.s32.totalorder %s32, %s35
    %p44 = scmp.eq.s32.totalorder %s15, 3
    %p45 = por %p43, %p44
    %p46 = scmp.ne.s32.totalorder %s35, %s36
    %p47 = scmp.eq.s32.totalorder %s15, 0
    %p48 = por %p46, %p47
    %p49 = scmp.ne.s32.totalorder %s35, %s36
    %p50 = scmp.eq.s32.totalorder %s16, 3
    %p51 = por %p49, %p50
    %p53 = scmp.ne.s32.totalorder %s36, %s52
    %p54 = scmp.eq.s32.totalorder %s16, 0
    %p55 = por %p53, %p54
    %s57 = sadd.s32 %s56, 1
    %p60 = scmp.eq.s32.totalorder %s10, 3
    %p61 = scmp.ne.s32.totalorder %s56, %s58
    %p62 = scmp.eq.s32.totalorder %s10, 0
    %p63 = por %p61, %p62
    %p64 = scmp.ne.s32.totalorder %s56, %s58
    %p65 = scmp.eq.s32.totalorder %s15, 3
    %p66 = por %p64, %p65
    %p67 = scmp.ne.s32.totalorder %s58, %s59
    %p68 = scmp.eq.s32.totalorder %s15, 0
    %p69 = por %p67, %p68
    %p70 = scmp.ne.s32.totalorder %s58, %s59
    %p71 = scmp.eq.s32.totalorder %s16, 3
    %p72 = por %p70, %p71
    %p74 = scmp.ne.s32.totalorder %s59, %s73
    %p75 = scmp.eq.s32.totalorder %s16, 0
    %p76 = por %p74, %p75
    %s78 = sadd.s32 %s77, 1
    %p81 = scmp.eq.s32.totalorder %s10, 3
    %p82 = scmp.ne.s32.totalorder %s77, %s79
    %p83 = scmp.eq.s32.totalorder %s10, 0
    %p84 = por %p82, %p83
    %p85 = scmp.ne.s32.totalorder %s77, %s79
    %p86 = scmp.eq.s32.totalorder %s15, 3
    %p87 = por %p85, %p86
    %p88 = scmp.ne.s32.totalorder %s79, %s80
    %p89 = scmp.eq.s32.totalorder %s15, 0
    %p90 = por %p88, %p89
    %p91 = scmp.ne.s32.totalorder %s79, %s80
    %p92 = scmp.eq.s32.totalorder %s16, 3
    %p93 = por %p91, %p92
    %p95 = scmp.ne.s32.totalorder %s80, %s94
    %p96 = scmp.eq.s32.totalorder %s16, 0
    %p97 = por %p95, %p96
    %s98 = smul.u32 %s17, 2
    %s99 = sadd.s32 %s98, %s18
    %s100 = smul.u32 %s29, 2
    %s101 = sadd.s32 %s100, %s25
    %s102 = ssub.s32 %s99, %s101
    %p103 = scmp.eq.s32.totalorder %s102, 0
    %s105 = sadd.s32 %s104, 1
    %s106 = scalar_select %p103, %s104, %s105
    %p109 = pneg %p103
    %p110 = scmp.eq.s32.totalorder %s10, 3
    %p111 = por %p109, %p110
    %p112 = scmp.ne.s32.totalorder %s104, %s107
    %p113 = scmp.eq.s32.totalorder %s10, 0
    %p114 = por %p112, %p113
    %p115 = scmp.ne.s32.totalorder %s104, %s107
    %p116 = scmp.eq.s32.totalorder %s15, 3
    %p117 = por %p115, %p116
    %p118 = scmp.ne.s32.totalorder %s107, %s108
    %p119 = scmp.eq.s32.totalorder %s15, 0
    %p120 = por %p118, %p119
    %p121 = scmp.ne.s32.totalorder %s107, %s108
    %p122 = scmp.eq.s32.totalorder %s16, 3
    %p123 = por %p121, %p122
    %p125 = scmp.ne.s32.totalorder %s108, %s124
    %p126 = scmp.eq.s32.totalorder %s16, 0
    %p127 = por %p125, %p126
    %s128 = smul.u32 %s17, 2
    %s129 = sadd.s32 %s128, %s18
    %s130 = smul.u32 %s29, 2
    %s131 = sadd.s32 %s130, %s25
    %s132 = ssub.s32 %s129, %s131
    %p133 = scmp.eq.s32.totalorder %s132, 0
    %s135 = sadd.s32 %s134, 1
    %s136 = scalar_select %p133, %s134, %s135
    %p139 = pneg %p133
    %p140 = scmp.eq.s32.totalorder %s10, 3
    %p141 = por %p139, %p140
    %p142 = scmp.ne.s32.totalorder %s134, %s137
    %p143 = scmp.eq.s32.totalorder %s10, 0
    %p144 = por %p142, %p143
    %p145 = scmp.ne.s32.totalorder %s134, %s137
    %p146 = scmp.eq.s32.totalorder %s15, 3
    %p147 = por %p145, %p146
    %p148 = scmp.ne.s32.totalorder %s137, %s138
    %p149 = scmp.eq.s32.totalorder %s15, 0
    %p150 = por %p148, %p149
    %p151 = scmp.ne.s32.totalorder %s137, %s138
    %p152 = scmp.eq.s32.totalorder %s16, 3
    %p153 = por %p151, %p152
    %p155 = scmp.ne.s32.totalorder %s138, %s154
    %p156 = scmp.eq.s32.totalorder %s16, 0
    %p157 = por %p155, %p156
    %p158 = scmp.le.s32.totalorder 1, %s10
    %p159 = scmp.lt.s32.totalorder %s10, 5
    %p160 = pnand %p158, %p159
    %p161 = pneg %p160
    // Predicated region
    $region9: #{basic_block_forward.3} parent=5 // pred_check
      _
    $region10: #{basic_block_forward.3} parent=5 // pred_check_branch
      %163 = sbr.rel (%p160) target = $region12
    $region11: #{basic_block_forward.3} parent=5 // pred_region
      %s164 = ssub.s32 %s10, 1
      // Predicated region
      $region13: #{basic_block_forward.3} parent=11 // pred_check
        %p165 = pneg %p69
      $region14: #{basic_block_forward.3} parent=11 // pred_check_branch
        %167 = sbr.rel (%p165) target = $region16
      $region15: #{basic_block_forward.3} parent=11 // pred_region
        _
      $region16: #{basic_block_forward.3} parent=11 // pred_fallthru
        _
      // Predicated region
      $region17: #{basic_block_forward.3} parent=11 // pred_check
        %p168 = pneg %p90
      $region18: #{basic_block_forward.3} parent=11 // pred_check_branch
        %170 = sbr.rel (%p168) target = $region20
      $region19: #{basic_block_forward.3} parent=11 // pred_region
        _
      $region20: #{basic_block_forward.3} parent=11 // pred_fallthru
        _
    $region12: #{basic_block_forward.3} parent=5 // pred_fallthru
      _
    %p171 = scmp.lt.s32.totalorder %s10, 4
    // Predicated region
    $region21: #{basic_block_forward.3} parent=5 // pred_check
      %p172 = pneg %p171
    $region22: #{basic_block_forward.3} parent=5 // pred_check_branch
      %174 = sbr.rel (%p172) target = $region24
    $region23: #{basic_block_forward.3} parent=5 // pred_region
      // Predicated region
      $region25: #{basic_block_forward.3} parent=23 // pred_check
        %p175 = pneg %p42
      $region26: #{basic_block_forward.3} parent=23 // pred_check_branch
        %177 = sbr.rel (%p175) target = $region28
      $region27: #{basic_block_forward.3} parent=23 // pred_region
        %p178 = scmp.lt.s32.totalorder %s17, 1
        %s179 = scalar_select %p178, %s17, 1
        %s180 = smul.addr %s179, 54
        %s181 = smul.addr %s180, 4
        %s182 = scalar_lea.vmem %s0, %s181
      $region28: #{basic_block_forward.3} parent=23 // pred_fallthru
        _
      // Predicated region
      $region29: #{basic_block_forward.3} parent=23 // pred_check
        %p183 = pneg %p114
      $region30: #{basic_block_forward.3} parent=23 // pred_check_branch
        %185 = sbr.rel (%p183) target = $region32
      $region31: #{basic_block_forward.3} parent=23 // pred_region
        %s186 = smul.u32 %s17, 2
        %s187 = sadd.s32 %s186, %s18
        %s188 = smul.u32 16, %s187
        %p189 = scmp.lt.s32.totalorder %s188, 63
        %s190 = scalar_select %p189, %s188, 63
        %s191 = smul.addr %s190, 4
        %s192 = scalar_lea.vmem %s3, %s191
        %s193 = smul.u32 %s17, 2
        %s194 = sadd.s32 %s193, %s18
        %s195 = smul.u32 16, %s194
      $region32: #{basic_block_forward.3} parent=23 // pred_fallthru
        _
    $region24: #{basic_block_forward.3} parent=5 // pred_fallthru
      _
    %p196 = scmp.le.s32.totalorder 1, %s10
    %p197 = scmp.lt.s32.totalorder %s10, 5
    %p198 = pnand %p196, %p197
    %p199 = pneg %p198
    // Predicated region
    $region33: #{basic_block_forward.3} parent=5 // pred_check
      _
    $region34: #{basic_block_forward.3} parent=5 // pred_check_branch
      %201 = sbr.rel (%p198) target = $region36
    $region35: #{basic_block_forward.3} parent=5 // pred_region
      %s202 = ssub.s32 %s10, 1
      %p203 = scmp.lt.s32.totalorder %s19, 1
      %s204 = scalar_select %p203, %s19, 1
      %s205 = smul.addr %s204, 54
      %s206 = smul.addr %s205, 4
      %s207 = scalar_lea.vmem %s0, %s206
      %p208 = pneg %p48
      %p209 = pneg %p45
      %p210 = pneg %p69
      %p211 = pneg %p66
      %p212 = pneg %p90
      %p213 = pneg %p87
      %s214 = smul.u32 %s19, 2
      %s215 = sadd.s32 %s214, %s20
      %s216 = smul.u32 16, %s215
      %p217 = scmp.lt.s32.totalorder %s216, 63
      %s218 = scalar_select %p217, %s216, 63
      %s219 = smul.addr %s218, 4
      %s220 = scalar_lea.vmem %s3, %s219
      %p221 = pneg %p120
      %p222 = pneg %p117
      %p223 = pneg %p150
      %p224 = pneg %p147
      %s225 = smul.u32 %s19, 2
      %s226 = sadd.s32 %s225, %s20
      %s227 = smul.u32 16, %s226
      %p228 = scmp.lt.s32.totalorder %s227, 63
      %s229 = scalar_select %p228, %s227, 63
      %s230 = smul.addr %s229, 8
      %s231 = scalar_lea.vmem %s4, %s230
      %p232 = scmp.lt.s32.totalorder %s19, 1
      %s233 = scalar_select %p232, %s19, 1
      %s234 = smul.addr %s233, 54
      %s235 = smul.addr %s234, 4
      %s236 = scalar_lea.vmem %s0, %s235
      %s237 = smul.u32 %s19, 2
      %s238 = sadd.s32 %s237, %s20
      %s239 = smul.u32 16, %s238
      %p240 = scmp.lt.s32.totalorder %s239, 63
      %s241 = scalar_select %p240, %s239, 63
      %s242 = smul.addr %s241, 4
      %s243 = scalar_lea.vmem %s3, %s242
      %s244 = smul.u32 %s19, 2
      %s245 = sadd.s32 %s244, %s20
      %s246 = smul.u32 16, %s245
      %s247 = smul.u32 %s19, 2
      %s248 = sadd.s32 %s247, %s20
      %s249 = smul.u32 16, %s248
      %p250 = scmp.lt.s32.totalorder %s249, 63
      %s251 = scalar_select %p250, %s249, 63
      %s252 = smul.addr %s251, 8
      %s253 = scalar_lea.vmem %s4, %s252
      %s254 = smul.u32 %s19, 2
      %s255 = sadd.s32 %s254, %s20
      %s256 = smul.u32 16, %s255
      %s257 = smul.u32 %s20, 8
      %s258 = smul.u32 %s257, 3
      %s259 = smul.addr %s258, 4
      %s260 = scalar_lea.vmem %s236, %s259
      %v261 = vld [vmem:[%s260] sm:$0xf]
      %v262 = vld [vmem:[%s260 + $0x4] sm:$0xf]
      %v263 = vld [vmem:[%s260 + $0xc] sm:$0xf]
      %v264 = vld [vmem:[%s260 + $0x10] sm:$0xf]
      %v265 = vld [vmem:[%s260 + $0x18] sm:$0xf]
      %v266 = vld [vmem:[%s260 + $0x1c] sm:$0xf]
      %v267 = vld [vmem:[%s260 + $0x24] sm:$0xf]
      %v268 = vld [vmem:[%s260 + $0x28] sm:$0xf]
      %v269 = vld [vmem:[%s260 + $0x30] sm:$0xf]
      %v270 = vld [vmem:[%s260 + $0x34] sm:$0xf]
      %v271 = vld [vmem:[%s260 + $0x3c] sm:$0xf]
      %v272 = vld [vmem:[%s260 + $0x40] sm:$0xf]
      %v273 = vld [vmem:[%s260 + $0x48] sm:$0xf]
      %v274 = vld [vmem:[%s260 + $0x4c] sm:$0xf]
      %v275 = vld [vmem:[%s260 + $0x54] sm:$0xf]
      %v276 = vld [vmem:[%s260 + $0x58] sm:$0xf]
      %v277 = vld [vmem:[%s260 + $0x8] sm:$0x1]
      %v278 = vld [vmem:[%s260 + $0x14] sm:$0x1]
      %v279 = vld [vmem:[%s260 + $0x20] sm:$0x1]
      %v280 = vld [vmem:[%s260 + $0x2c] sm:$0x1]
      %v281 = vld [vmem:[%s260 + $0x38] sm:$0x1]
      %v282 = vld [vmem:[%s260 + $0x44] sm:$0x1]
      %v283 = vld [vmem:[%s260 + $0x50] sm:$0x1]
      %v284 = vld [vmem:[%s260 + $0x5c] sm:$0x1]
      %vm285 = vsmask.f32 3328
      %vm286 = vsmask.f32 7440
      %vm287 = vmor %vm285, %vm286
      %v289 = vshrl.u32 %v261, 16
      %v291 = vrot.slane %v289, 4
      %v292 = vshll.u32 %v261, 16
      %v294 = vrot.slane %v292, 5
      %v295 = vor.u32 %v291, %v294
      %v296 = vrot.slane %v295, 4
      %v298 = vshll.u32 %v262, 16
      %v300 = vrot.slane %v298, 5
      %v301 = vsel %vm287, %v296, %v300
      %v302 = vshrl.u32 %v262, 16
      %v304 = vrot.slane %v302, 4
      %v305 = vor.u32 %v304, %v300
      %v306 = vrot.slane %v305, 4
      %v308 = vshll.u32 %v277, 16
      %v310 = vrot.slane %v308, 5
      %v311 = vsel %vm287, %v306, %v310
      %v313 = vshrl.u32 %v263, 16
      %v315 = vrot.slane %v313, 4
      %v316 = vshll.u32 %v263, 16
      %v318 = vrot.slane %v316, 5
      %v319 = vor.u32 %v315, %v318
      %v320 = vrot.slane %v319, 4
      %v322 = vshll.u32 %v264, 16
      %v324 = vrot.slane %v322, 5
      %v325 = vsel %vm287, %v320, %v324
      %v326 = vshrl.u32 %v264, 16
      %v328 = vrot.slane %v326, 4
      %v329 = vor.u32 %v328, %v324
      %v330 = vrot.slane %v329, 4
      %v332 = vshll.u32 %v278, 16
      %v334 = vrot.slane %v332, 5
      %v335 = vsel %vm287, %v330, %v334
      %v337 = vshrl.u32 %v265, 16
      %v339 = vrot.slane %v337, 4
      %v340 = vshll.u32 %v265, 16
      %v342 = vrot.slane %v340, 5
      %v343 = vor.u32 %v339, %v342
      %v344 = vrot.slane %v343, 4
      %v346 = vshll.u32 %v266, 16
      %v348 = vrot.slane %v346, 5
      %v349 = vsel %vm287, %v344, %v348
      %v350 = vshrl.u32 %v266, 16
      %v352 = vrot.slane %v350, 4
      %v353 = vor.u32 %v352, %v348
      %v354 = vrot.slane %v353, 4
      %v356 = vshll.u32 %v279, 16
      %v358 = vrot.slane %v356, 5
      %v359 = vsel %vm287, %v354, %v358
      %v361 = vshrl.u32 %v267, 16
      %v363 = vrot.slane %v361, 4
      %v364 = vshll.u32 %v267, 16
      %v366 = vrot.slane %v364, 5
      %v367 = vor.u32 %v363, %v366
      %v368 = vrot.slane %v367, 4
      %v370 = vshll.u32 %v268, 16
      %v372 = vrot.slane %v370, 5
      %v373 = vsel %vm287, %v368, %v372
      %v374 = vshrl.u32 %v268, 16
      %v376 = vrot.slane %v374, 4
      %v377 = vor.u32 %v376, %v372
      %v378 = vrot.slane %v377, 4
      %v380 = vshll.u32 %v280, 16
      %v382 = vrot.slane %v380, 5
      %v383 = vsel %vm287, %v378, %v382
      %v385 = vshrl.u32 %v269, 16
      %v387 = vrot.slane %v385, 4
      %v388 = vshll.u32 %v269, 16
      %v390 = vrot.slane %v388, 5
      %v391 = vor.u32 %v387, %v390
      %v392 = vrot.slane %v391, 4
      %v394 = vshll.u32 %v270, 16
      %v396 = vrot.slane %v394, 5
      %v397 = vsel %vm287, %v392, %v396
      %v398 = vshrl.u32 %v270, 16
      %v400 = vrot.slane %v398, 4
      %v401 = vor.u32 %v400, %v396
      %v402 = vrot.slane %v401, 4
      %v404 = vshll.u32 %v281, 16
      %v406 = vrot.slane %v404, 5
      %v407 = vsel %vm287, %v402, %v406
      %v409 = vshrl.u32 %v271, 16
      %v411 = vrot.slane %v409, 4
      %v412 = vshll.u32 %v271, 16
      %v414 = vrot.slane %v412, 5
      %v415 = vor.u32 %v411, %v414
      %v416 = vrot.slane %v415, 4
      %v418 = vshll.u32 %v272, 16
      %v420 = vrot.slane %v418, 5
      %v421 = vsel %vm287, %v416, %v420
      %v422 = vshrl.u32 %v272, 16
      %v424 = vrot.slane %v422, 4
      %v425 = vor.u32 %v424, %v420
      %v426 = vrot.slane %v425, 4
      %v428 = vshll.u32 %v282, 16
      %v430 = vrot.slane %v428, 5
      %v431 = vsel %vm287, %v426, %v430
      %v433 = vshrl.u32 %v273, 16
      %v435 = vrot.slane %v433, 4
      %v436 = vshll.u32 %v273, 16
      %v438 = vrot.slane %v436, 5
      %v439 = vor.u32 %v435, %v438
      %v440 = vrot.slane %v439, 4
      %v442 = vshll.u32 %v274, 16
      %v444 = vrot.slane %v442, 5
      %v445 = vsel %vm287, %v440, %v444
      %v446 = vshrl.u32 %v274, 16
      %v448 = vrot.slane %v446, 4
      %v449 = vor.u32 %v448, %v444
      %v450 = vrot.slane %v449, 4
      %v452 = vshll.u32 %v283, 16
      %v454 = vrot.slane %v452, 5
      %v455 = vsel %vm287, %v450, %v454
      %v457 = vshrl.u32 %v275, 16
      %v459 = vrot.slane %v457, 4
      %v460 = vshll.u32 %v275, 16
      %v462 = vrot.slane %v460, 5
      %v463 = vor.u32 %v459, %v462
      %v464 = vrot.slane %v463, 4
      %v466 = vshll.u32 %v276, 16
      %v468 = vrot.slane %v466, 5
      %v469 = vsel %vm287, %v464, %v468
      %v470 = vshrl.u32 %v276, 16
      %v472 = vrot.slane %v470, 4
      %v473 = vor.u32 %v472, %v468
      %v474 = vrot.slane %v473, 4
      %v476 = vshll.u32 %v284, 16
      %v478 = vrot.slane %v476, 5
      %v479 = vsel %vm287, %v474, %v478
      %v480 = vld [vmem:[%s260] sm:$0xe]
      %v481 = vld [vmem:[%s260 + $0xc] sm:$0xe]
      %v482 = vld [vmem:[%s260 + $0x18] sm:$0xe]
      %v483 = vld [vmem:[%s260 + $0x24] sm:$0xe]
      %v484 = vld [vmem:[%s260 + $0x30] sm:$0xe]
      %v485 = vld [vmem:[%s260 + $0x3c] sm:$0xe]
      %v486 = vld [vmem:[%s260 + $0x48] sm:$0xe]
      %v487 = vld [vmem:[%s260 + $0x54] sm:$0xe]
      %vm512 = vcmask 1042432
      %vm513 = vcmask 1046532
      %vm514 = vmor %vm512, %vm513
      %v515 = vrot.slane %v480, 5
      %v516 = vrot.slane %v515, 4
      %v517 = vrot.slane %v262, 5
      %v518 = vsel %vm514, %v516, %v517
      %v519 = vrot.slane %v517, 4
      %v520 = vrot.slane %v277, 5
      %v521 = vsel %vm514, %v519, %v520
      %v522 = vrot.slane %v481, 5
      %v523 = vrot.slane %v522, 4
      %v524 = vrot.slane %v264, 5
      %v525 = vsel %vm514, %v523, %v524
      %v526 = vrot.slane %v524, 4
      %v527 = vrot.slane %v278, 5
      %v528 = vsel %vm514, %v526, %v527
      %v529 = vrot.slane %v482, 5
      %v530 = vrot.slane %v529, 4
      %v531 = vrot.slane %v266, 5
      %v532 = vsel %vm514, %v530, %v531
      %v533 = vrot.slane %v531, 4
      %v534 = vrot.slane %v279, 5
      %v535 = vsel %vm514, %v533, %v534
      %v536 = vrot.slane %v483, 5
      %v537 = vrot.slane %v536, 4
      %v538 = vrot.slane %v268, 5
      %v539 = vsel %vm514, %v537, %v538
      %v540 = vrot.slane %v538, 4
      %v541 = vrot.slane %v280, 5
      %v542 = vsel %vm514, %v540, %v541
      %v543 = vrot.slane %v484, 5
      %v544 = vrot.slane %v543, 4
      %v545 = vrot.slane %v270, 5
      %v546 = vsel %vm514, %v544, %v545
      %v547 = vrot.slane %v545, 4
      %v548 = vrot.slane %v281, 5
      %v549 = vsel %vm514, %v547, %v548
      %v550 = vrot.slane %v485, 5
      %v551 = vrot.slane %v550, 4
      %v552 = vrot.slane %v272, 5
      %v553 = vsel %vm514, %v551, %v552
      %v554 = vrot.slane %v552, 4
      %v555 = vrot.slane %v282, 5
      %v556 = vsel %vm514, %v554, %v555
      %v557 = vrot.slane %v486, 5
      %v558 = vrot.slane %v557, 4
      %v559 = vrot.slane %v274, 5
      %v560 = vsel %vm514, %v558, %v559
      %v561 = vrot.slane %v559, 4
      %v562 = vrot.slane %v283, 5
      %v563 = vsel %vm514, %v561, %v562
      %v564 = vrot.slane %v487, 5
      %v565 = vrot.slane %v564, 4
      %v566 = vrot.slane %v276, 5
      %v567 = vsel %vm514, %v565, %v566
      %v568 = vrot.slane %v566, 4
      %v569 = vrot.slane %v284, 5
      %v570 = vsel %vm514, %v568, %v569
      %v579 = vunpack.c.l.b16 %v261
      %v580 = vunpack.c.l.b16 %v262
      %v581 = vunpack.c.l.b16 %v263
      %v582 = vunpack.c.l.b16 %v264
      %v583 = vunpack.c.l.b16 %v265
      %v584 = vunpack.c.l.b16 %v266
      %v585 = vunpack.c.l.b16 %v267
      %v586 = vunpack.c.l.b16 %v268
      %v587 = vunpack.c.l.b16 %v269
      %v588 = vunpack.c.l.b16 %v270
      %v589 = vunpack.c.l.b16 %v271
      %v590 = vunpack.c.l.b16 %v272
      %v591 = vunpack.c.l.b16 %v273
      %v592 = vunpack.c.l.b16 %v274
      %v593 = vunpack.c.l.b16 %v275
      %v594 = vunpack.c.l.b16 %v276
      %v595 = vpack.c.b16 %v580, %v579
      %v596 = vpack.c.b16 %v582, %v581
      %v597 = vpack.c.b16 %v584, %v583
      %v598 = vpack.c.b16 %v586, %v585
      %v599 = vpack.c.b16 %v588, %v587
      %v600 = vpack.c.b16 %v590, %v589
      %v601 = vpack.c.b16 %v592, %v591
      %v602 = vpack.c.b16 %v594, %v593
      %v611 = vunpack.c.l.b16 %v301
      %v612 = vunpack.c.l.b16 %v311
      %v613 = vunpack.c.l.b16 %v325
      %v614 = vunpack.c.l.b16 %v335
      %v615 = vunpack.c.l.b16 %v349
      %v616 = vunpack.c.l.b16 %v359
      %v617 = vunpack.c.l.b16 %v373
      %v618 = vunpack.c.l.b16 %v383
      %v619 = vunpack.c.l.b16 %v397
      %v620 = vunpack.c.l.b16 %v407
      %v621 = vunpack.c.l.b16 %v421
      %v622 = vunpack.c.l.b16 %v431
      %v623 = vunpack.c.l.b16 %v445
      %v624 = vunpack.c.l.b16 %v455
      %v625 = vunpack.c.l.b16 %v469
      %v626 = vunpack.c.l.b16 %v479
      %v627 = vpack.c.b16 %v612, %v611
      %v628 = vpack.c.b16 %v614, %v613
      %v629 = vpack.c.b16 %v616, %v615
      %v630 = vpack.c.b16 %v618, %v617
      %v631 = vpack.c.b16 %v620, %v619
      %v632 = vpack.c.b16 %v622, %v621
      %v633 = vpack.c.b16 %v624, %v623
      %v634 = vpack.c.b16 %v626, %v625
      %v643 = vunpack.c.l.b16 %v518
      %v644 = vunpack.c.l.b16 %v521
      %v645 = vunpack.c.l.b16 %v525
      %v646 = vunpack.c.l.b16 %v528
      %v647 = vunpack.c.l.b16 %v532
      %v648 = vunpack.c.l.b16 %v535
      %v649 = vunpack.c.l.b16 %v539
      %v650 = vunpack.c.l.b16 %v542
      %v651 = vunpack.c.l.b16 %v546
      %v652 = vunpack.c.l.b16 %v549
      %v653 = vunpack.c.l.b16 %v553
      %v654 = vunpack.c.l.b16 %v556
      %v655 = vunpack.c.l.b16 %v560
      %v656 = vunpack.c.l.b16 %v563
      %v657 = vunpack.c.l.b16 %v567
      %v658 = vunpack.c.l.b16 %v570
      %v659 = vpack.c.b16 %v644, %v643
      %v660 = vpack.c.b16 %v646, %v645
      %v661 = vpack.c.b16 %v648, %v647
      %v662 = vpack.c.b16 %v650, %v649
      %v663 = vpack.c.b16 %v652, %v651
      %v664 = vpack.c.b16 %v654, %v653
      %v665 = vpack.c.b16 %v656, %v655
      %v666 = vpack.c.b16 %v658, %v657
      %v675 = vld [vmem:[%s1] sm:$0xf]
      %v676 = vld [vmem:[%s1 + $0x4] sm:$0xf]
      %v677 = vld [vmem:[%s1 + $0x8] sm:$0xf]
      %v678 = vld [vmem:[%s1 + $0xc] sm:$0xf]
      %v679 = vld [vmem:[%s1 + $0x10] sm:$0xf]
      %v680 = vld [vmem:[%s1 + $0x14] sm:$0xf]
      %v681 = vld [vmem:[%s1 + $0x18] sm:$0xf]
      %v682 = vld [vmem:[%s1 + $0x1c] sm:$0xf]
      %v683 = vld [vmem:[%s1 + $0x20] sm:$0xf]
      %v684 = vld [vmem:[%s1 + $0x24] sm:$0xf]
      %v685 = vld [vmem:[%s1 + $0x28] sm:$0xf]
      %v686 = vld [vmem:[%s1 + $0x2c] sm:$0xf]
      %v687 = vld [vmem:[%s1 + $0x30] sm:$0xf]
      %v688 = vld [vmem:[%s1 + $0x34] sm:$0xf]
      %v689 = vld [vmem:[%s1 + $0x38] sm:$0xf]
      %v690 = vld [vmem:[%s1 + $0x3c] sm:$0xf]
      %v691 = vld [vmem:[%s1 + $0x40] sm:$0xf]
      %v692 = vld [vmem:[%s1 + $0x44] sm:$0xf]
      %v693 = vld [vmem:[%s1 + $0x48] sm:$0xf]
      %v694 = vld [vmem:[%s1 + $0x4c] sm:$0xf]
      %v695 = vld [vmem:[%s1 + $0x50] sm:$0xf]
      %v696 = vld [vmem:[%s1 + $0x54] sm:$0xf]
      %v697 = vld [vmem:[%s1 + $0x58] sm:$0xf]
      %v698 = vld [vmem:[%s1 + $0x5c] sm:$0xf]
      %v699 = vld [vmem:[%s1 + $0x60] sm:$0xf]
      %v700 = vld [vmem:[%s1 + $0x64] sm:$0xf]
      %v701 = vld [vmem:[%s1 + $0x68] sm:$0xf]
      %v702 = vld [vmem:[%s1 + $0x6c] sm:$0xf]
      %v703 = vld [vmem:[%s1 + $0x70] sm:$0xf]
      %v704 = vld [vmem:[%s1 + $0x74] sm:$0xf]
      %v705 = vld [vmem:[%s1 + $0x78] sm:$0xf]
      %v706 = vld [vmem:[%s1 + $0x7c] sm:$0xf]
      %v707 = vld [vmem:[%s1 + $0x80] sm:$0xf]
      %v708 = vld [vmem:[%s1 + $0x84] sm:$0xf]
      %v709 = vld [vmem:[%s1 + $0x88] sm:$0xf]
      %v710 = vld [vmem:[%s1 + $0x8c] sm:$0xf]
      %v711 = vld [vmem:[%s1 + $0x90] sm:$0xf]
      %v712 = vld [vmem:[%s1 + $0x94] sm:$0xf]
      %v713 = vld [vmem:[%s1 + $0x98] sm:$0xf]
      %v714 = vld [vmem:[%s1 + $0x9c] sm:$0xf]
      %v715 = vld [vmem:[%s1 + $0xa0] sm:$0xf]
      %v716 = vld [vmem:[%s1 + $0xa4] sm:$0xf]
      %v717 = vld [vmem:[%s1 + $0xa8] sm:$0xf]
      %v718 = vld [vmem:[%s1 + $0xac] sm:$0xf]
      %v719 = vld [vmem:[%s1 + $0xb0] sm:$0xf]
      %v720 = vld [vmem:[%s1 + $0xb4] sm:$0xf]
      %v721 = vld [vmem:[%s1 + $0xb8] sm:$0xf]
      %v722 = vld [vmem:[%s1 + $0xbc] sm:$0xf]
      %s723 = sadd.s32 %s257, 1
      %s724 = smul.u32 %s723, 3
      %s725 = smul.addr %s724, 4
      %s726 = scalar_lea.vmem %s236, %s725
      %v727 = vld [vmem:[%s726] sm:$0xf]
      %v728 = vld [vmem:[%s726 + $0x4] sm:$0xf]
      %v729 = vld [vmem:[%s726 + $0xc] sm:$0xf]
      %v730 = vld [vmem:[%s726 + $0x10] sm:$0xf]
      %v731 = vld [vmem:[%s726 + $0x18] sm:$0xf]
      %v732 = vld [vmem:[%s726 + $0x1c] sm:$0xf]
      %v733 = vld [vmem:[%s726 + $0x24] sm:$0xf]
      %v734 = vld [vmem:[%s726 + $0x28] sm:$0xf]
      %v735 = vld [vmem:[%s726 + $0x30] sm:$0xf]
      %v736 = vld [vmem:[%s726 + $0x34] sm:$0xf]
      %v737 = vld [vmem:[%s726 + $0x3c] sm:$0xf]
      %v738 = vld [vmem:[%s726 + $0x40] sm:$0xf]
      %v739 = vld [vmem:[%s726 + $0x48] sm:$0xf]
      %v740 = vld [vmem:[%s726 + $0x4c] sm:$0xf]
      %v741 = vld [vmem:[%s726 + $0x54] sm:$0xf]
      %v742 = vld [vmem:[%s726 + $0x58] sm:$0xf]
      %v743 = vld [vmem:[%s726 + $0x8] sm:$0x1]
      %v744 = vld [vmem:[%s726 + $0x14] sm:$0x1]
      %v745 = vld [vmem:[%s726 + $0x20] sm:$0x1]
      %v746 = vld [vmem:[%s726 + $0x2c] sm:$0x1]
      %v747 = vld [vmem:[%s726 + $0x38] sm:$0x1]
      %v748 = vld [vmem:[%s726 + $0x44] sm:$0x1]
      %v749 = vld [vmem:[%s726 + $0x50] sm:$0x1]
      %v750 = vld [vmem:[%s726 + $0x5c] sm:$0x1]
      %v752 = vshrl.u32 %v727, 16
      %v754 = vrot.slane %v752, 4
      %v755 = vshll.u32 %v727, 16
      %v757 = vrot.slane %v755, 5
      %v758 = vor.u32 %v754, %v757
      %v759 = vrot.slane %v758, 4
      %v761 = vshll.u32 %v728, 16
      %v763 = vrot.slane %v761, 5
      %v764 = vsel %vm287, %v759, %v763
      %v765 = vshrl.u32 %v728, 16
      %v767 = vrot.slane %v765, 4
      %v768 = vor.u32 %v767, %v763
      %v769 = vrot.slane %v768, 4
      %v771 = vshll.u32 %v743, 16
      %v773 = vrot.slane %v771, 5
      %v774 = vsel %vm287, %v769, %v773
      %v776 = vshrl.u32 %v729, 16
      %v778 = vrot.slane %v776, 4
      %v779 = vshll.u32 %v729, 16
      %v781 = vrot.slane %v779, 5
      %v782 = vor.u32 %v778, %v781
      %v783 = vrot.slane %v782, 4
      %v785 = vshll.u32 %v730, 16
      %v787 = vrot.slane %v785, 5
      %v788 = vsel %vm287, %v783, %v787
      %v789 = vshrl.u32 %v730, 16
      %v791 = vrot.slane %v789, 4
      %v792 = vor.u32 %v791, %v787
      %v793 = vrot.slane %v792, 4
      %v795 = vshll.u32 %v744, 16
      %v797 = vrot.slane %v795, 5
      %v798 = vsel %vm287, %v793, %v797
      %v800 = vshrl.u32 %v731, 16
      %v802 = vrot.slane %v800, 4
      %v803 = vshll.u32 %v731, 16
      %v805 = vrot.slane %v803, 5
      %v806 = vor.u32 %v802, %v805
      %v807 = vrot.slane %v806, 4
      %v809 = vshll.u32 %v732, 16
      %v811 = vrot.slane %v809, 5
      %v812 = vsel %vm287, %v807, %v811
      %v813 = vshrl.u32 %v732, 16
      %v815 = vrot.slane %v813, 4
      %v816 = vor.u32 %v815, %v811
      %v817 = vrot.slane %v816, 4
      %v819 = vshll.u32 %v745, 16
      %v821 = vrot.slane %v819, 5
      %v822 = vsel %vm287, %v817, %v821
      %v824 = vshrl.u32 %v733, 16
      %v826 = vrot.slane %v824, 4
      %v827 = vshll.u32 %v733, 16
      %v829 = vrot.slane %v827, 5
      %v830 = vor.u32 %v826, %v829
      %v831 = vrot.slane %v830, 4
      %v833 = vshll.u32 %v734, 16
      %v835 = vrot.slane %v833, 5
      %v836 = vsel %vm287, %v831, %v835
      %v837 = vshrl.u32 %v734, 16
      %v839 = vrot.slane %v837, 4
      %v840 = vor.u32 %v839, %v835
      %v841 = vrot.slane %v840, 4
      %v843 = vshll.u32 %v746, 16
      %v845 = vrot.slane %v843, 5
      %v846 = vsel %vm287, %v841, %v845
      %v848 = vshrl.u32 %v735, 16
      %v850 = vrot.slane %v848, 4
      %v851 = vshll.u32 %v735, 16
      %v853 = vrot.slane %v851, 5
      %v854 = vor.u32 %v850, %v853
      %v855 = vrot.slane %v854, 4
      %v857 = vshll.u32 %v736, 16
      %v859 = vrot.slane %v857, 5
      %v860 = vsel %vm287, %v855, %v859
      %v861 = vshrl.u32 %v736, 16
      %v863 = vrot.slane %v861, 4
      %v864 = vor.u32 %v863, %v859
      %v865 = vrot.slane %v864, 4
      %v867 = vshll.u32 %v747, 16
      %v869 = vrot.slane %v867, 5
      %v870 = vsel %vm287, %v865, %v869
      %v872 = vshrl.u32 %v737, 16
      %v874 = vrot.slane %v872, 4
      %v875 = vshll.u32 %v737, 16
      %v877 = vrot.slane %v875, 5
      %v878 = vor.u32 %v874, %v877
      %v879 = vrot.slane %v878, 4
      %v881 = vshll.u32 %v738, 16
      %v883 = vrot.slane %v881, 5
      %v884 = vsel %vm287, %v879, %v883
      %v885 = vshrl.u32 %v738, 16
      %v887 = vrot.slane %v885, 4
      %v888 = vor.u32 %v887, %v883
      %v889 = vrot.slane %v888, 4
      %v891 = vshll.u32 %v748, 16
      %v893 = vrot.slane %v891, 5
      %v894 = vsel %vm287, %v889, %v893
      %v896 = vshrl.u32 %v739, 16
      %v898 = vrot.slane %v896, 4
      %v899 = vshll.u32 %v739, 16
      %v901 = vrot.slane %v899, 5
      %v902 = vor.u32 %v898, %v901
      %v903 = vrot.slane %v902, 4
      %v905 = vshll.u32 %v740, 16
      %v907 = vrot.slane %v905, 5
      %v908 = vsel %vm287, %v903, %v907
      %v909 = vshrl.u32 %v740, 16
      %v911 = vrot.slane %v909, 4
      %v912 = vor.u32 %v911, %v907
      %v913 = vrot.slane %v912, 4
      %v915 = vshll.u32 %v749, 16
      %v917 = vrot.slane %v915, 5
      %v918 = vsel %vm287, %v913, %v917
      %v920 = vshrl.u32 %v741, 16
      %v922 = vrot.slane %v920, 4
      %v923 = vshll.u32 %v741, 16
      %v925 = vrot.slane %v923, 5
      %v926 = vor.u32 %v922, %v925
      %v927 = vrot.slane %v926, 4
      %v929 = vshll.u32 %v742, 16
      %v931 = vrot.slane %v929, 5
      %v932 = vsel %vm287, %v927, %v931
      %v933 = vshrl.u32 %v742, 16
      %v935 = vrot.slane %v933, 4
      %v936 = vor.u32 %v935, %v931
      %v937 = vrot.slane %v936, 4
      %v939 = vshll.u32 %v750, 16
      %v941 = vrot.slane %v939, 5
      %v942 = vsel %vm287, %v937, %v941
      %v943 = vld [vmem:[%s726] sm:$0xe]
      %v944 = vld [vmem:[%s726 + $0xc] sm:$0xe]
      %v945 = vld [vmem:[%s726 + $0x18] sm:$0xe]
      %v946 = vld [vmem:[%s726 + $0x24] sm:$0xe]
      %v947 = vld [vmem:[%s726 + $0x30] sm:$0xe]
      %v948 = vld [vmem:[%s726 + $0x3c] sm:$0xe]
      %v949 = vld [vmem:[%s726 + $0x48] sm:$0xe]
      %v950 = vld [vmem:[%s726 + $0x54] sm:$0xe]
      %v975 = vrot.slane %v943, 5
      %v976 = vrot.slane %v975, 4
      %v977 = vrot.slane %v728, 5
      %v978 = vsel %vm514, %v976, %v977
      %v979 = vrot.slane %v977, 4
      %v980 = vrot.slane %v743, 5
      %v981 = vsel %vm514, %v979, %v980
      %v982 = vrot.slane %v944, 5
      %v983 = vrot.slane %v982, 4
      %v984 = vrot.slane %v730, 5
      %v985 = vsel %vm514, %v983, %v984
      %v986 = vrot.slane %v984, 4
      %v987 = vrot.slane %v744, 5
      %v988 = vsel %vm514, %v986, %v987
      %v989 = vrot.slane %v945, 5
      %v990 = vrot.slane %v989, 4
      %v991 = vrot.slane %v732, 5
      %v992 = vsel %vm514, %v990, %v991
      %v993 = vrot.slane %v991, 4
      %v994 = vrot.slane %v745, 5
      %v995 = vsel %vm514, %v993, %v994
      %v996 = vrot.slane %v946, 5
      %v997 = vrot.slane %v996, 4
      %v998 = vrot.slane %v734, 5
      %v999 = vsel %vm514, %v997, %v998
      %v1000 = vrot.slane %v998, 4
      %v1001 = vrot.slane %v746, 5
      %v1002 = vsel %vm514, %v1000, %v1001
      %v1003 = vrot.slane %v947, 5
      %v1004 = vrot.slane %v1003, 4
      %v1005 = vrot.slane %v736, 5
      %v1006 = vsel %vm514, %v1004, %v1005
      %v1007 = vrot.slane %v1005, 4
      %v1008 = vrot.slane %v747, 5
      %v1009 = vsel %vm514, %v1007, %v1008
      %v1010 = vrot.slane %v948, 5
      %v1011 = vrot.slane %v1010, 4
      %v1012 = vrot.slane %v738, 5
      %v1013 = vsel %vm514, %v1011, %v1012
      %v1014 = vrot.slane %v1012, 4
      %v1015 = vrot.slane %v748, 5
      %v1016 = vsel %vm514, %v1014, %v1015
      %v1017 = vrot.slane %v949, 5
      %v1018 = vrot.slane %v1017, 4
      %v1019 = vrot.slane %v740, 5
      %v1020 = vsel %vm514, %v1018, %v1019
      %v1021 = vrot.slane %v1019, 4
      %v1022 = vrot.slane %v749, 5
      %v1023 = vsel %vm514, %v1021, %v1022
      %v1024 = vrot.slane %v950, 5
      %v1025 = vrot.slane %v1024, 4
      %v1026 = vrot.slane %v742, 5
      %v1027 = vsel %vm514, %v1025, %v1026
      %v1028 = vrot.slane %v1026, 4
      %v1029 = vrot.slane %v750, 5
      %v1030 = vsel %vm514, %v1028, %v1029
      %v1039 = vunpack.c.l.b16 %v727
      %v1040 = vunpack.c.l.b16 %v728
      %v1041 = vunpack.c.l.b16 %v729
      %v1042 = vunpack.c.l.b16 %v730
      %v1043 = vunpack.c.l.b16 %v731
      %v1044 = vunpack.c.l.b16 %v732
      %v1045 = vunpack.c.l.b16 %v733
      %v1046 = vunpack.c.l.b16 %v734
      %v1047 = vunpack.c.l.b16 %v735
      %v1048 = vunpack.c.l.b16 %v736
      %v1049 = vunpack.c.l.b16 %v737
      %v1050 = vunpack.c.l.b16 %v738
      %v1051 = vunpack.c.l.b16 %v739
      %v1052 = vunpack.c.l.b16 %v740
      %v1053 = vunpack.c.l.b16 %v741
      %v1054 = vunpack.c.l.b16 %v742
      %v1055 = vpack.c.b16 %v1040, %v1039
      %v1056 = vpack.c.b16 %v1042, %v1041
      %v1057 = vpack.c.b16 %v1044, %v1043
      %v1058 = vpack.c.b16 %v1046, %v1045
      %v1059 = vpack.c.b16 %v1048, %v1047
      %v1060 = vpack.c.b16 %v1050, %v1049
      %v1061 = vpack.c.b16 %v1052, %v1051
      %v1062 = vpack.c.b16 %v1054, %v1053
      %v1071 = vunpack.c.l.b16 %v764
      %v1072 = vunpack.c.l.b16 %v774
      %v1073 = vunpack.c.l.b16 %v788
      %v1074 = vunpack.c.l.b16 %v798
      %v1075 = vunpack.c.l.b16 %v812
      %v1076 = vunpack.c.l.b16 %v822
      %v1077 = vunpack.c.l.b16 %v836
      %v1078 = vunpack.c.l.b16 %v846
      %v1079 = vunpack.c.l.b16 %v860
      %v1080 = vunpack.c.l.b16 %v870
      %v1081 = vunpack.c.l.b16 %v884
      %v1082 = vunpack.c.l.b16 %v894
      %v1083 = vunpack.c.l.b16 %v908
      %v1084 = vunpack.c.l.b16 %v918
      %v1085 = vunpack.c.l.b16 %v932
      %v1086 = vunpack.c.l.b16 %v942
      %v1087 = vpack.c.b16 %v1072, %v1071
      %v1088 = vpack.c.b16 %v1074, %v1073
      %v1089 = vpack.c.b16 %v1076, %v1075
      %v1090 = vpack.c.b16 %v1078, %v1077
      %v1091 = vpack.c.b16 %v1080, %v1079
      %v1092 = vpack.c.b16 %v1082, %v1081
      %v1093 = vpack.c.b16 %v1084, %v1083
      %v1094 = vpack.c.b16 %v1086, %v1085
      %v1103 = vunpack.c.l.b16 %v978
      %v1104 = vunpack.c.l.b16 %v981
      %v1105 = vunpack.c.l.b16 %v985
      %v1106 = vunpack.c.l.b16 %v988
      %v1107 = vunpack.c.l.b16 %v992
      %v1108 = vunpack.c.l.b16 %v995
      %v1109 = vunpack.c.l.b16 %v999
      %v1110 = vunpack.c.l.b16 %v1002
      %v1111 = vunpack.c.l.b16 %v1006
      %v1112 = vunpack.c.l.b16 %v1009
      %v1113 = vunpack.c.l.b16 %v1013
      %v1114 = vunpack.c.l.b16 %v1016
      %v1115 = vunpack.c.l.b16 %v1020
      %v1116 = vunpack.c.l.b16 %v1023
      %v1117 = vunpack.c.l.b16 %v1027
      %v1118 = vunpack.c.l.b16 %v1030
      %v1119 = vpack.c.b16 %v1104, %v1103
      %v1120 = vpack.c.b16 %v1106, %v1105
      %v1121 = vpack.c.b16 %v1108, %v1107
      %v1122 = vpack.c.b16 %v1110, %v1109
      %v1123 = vpack.c.b16 %v1112, %v1111
      %v1124 = vpack.c.b16 %v1114, %v1113
      %v1125 = vpack.c.b16 %v1116, %v1115
      %v1126 = vpack.c.b16 %v1118, %v1117
      %v1135 = vld [vmem:[%s1 + $0xc0] sm:$0xf]
      %v1136 = vld [vmem:[%s1 + $0xc4] sm:$0xf]
      %v1137 = vld [vmem:[%s1 + $0xc8] sm:$0xf]
      %v1138 = vld [vmem:[%s1 + $0xcc] sm:$0xf]
      %v1139 = vld [vmem:[%s1 + $0xd0] sm:$0xf]
      %v1140 = vld [vmem:[%s1 + $0xd4] sm:$0xf]
      %v1141 = vld [vmem:[%s1 + $0xd8] sm:$0xf]
      %v1142 = vld [vmem:[%s1 + $0xdc] sm:$0xf]
      %v1143 = vld [vmem:[%s1 + $0xe0] sm:$0xf]
      %v1144 = vld [vmem:[%s1 + $0xe4] sm:$0xf]
      %v1145 = vld [vmem:[%s1 + $0xe8] sm:$0xf]
      %v1146 = vld [vmem:[%s1 + $0xec] sm:$0xf]
      %v1147 = vld [vmem:[%s1 + $0xf0] sm:$0xf]
      %v1148 = vld [vmem:[%s1 + $0xf4] sm:$0xf]
      %v1149 = vld [vmem:[%s1 + $0xf8] sm:$0xf]
      %v1150 = vld [vmem:[%s1 + $0xfc] sm:$0xf]
      %v1151 = vld [vmem:[%s1 + $0x100] sm:$0xf]
      %v1152 = vld [vmem:[%s1 + $0x104] sm:$0xf]
      %v1153 = vld [vmem:[%s1 + $0x108] sm:$0xf]
      %v1154 = vld [vmem:[%s1 + $0x10c] sm:$0xf]
      %v1155 = vld [vmem:[%s1 + $0x110] sm:$0xf]
      %v1156 = vld [vmem:[%s1 + $0x114] sm:$0xf]
      %v1157 = vld [vmem:[%s1 + $0x118] sm:$0xf]
      %v1158 = vld [vmem:[%s1 + $0x11c] sm:$0xf]
      %v1159 = vld [vmem:[%s1 + $0x120] sm:$0xf]
      %v1160 = vld [vmem:[%s1 + $0x124] sm:$0xf]
      %v1161 = vld [vmem:[%s1 + $0x128] sm:$0xf]
      %v1162 = vld [vmem:[%s1 + $0x12c] sm:$0xf]
      %v1163 = vld [vmem:[%s1 + $0x130] sm:$0xf]
      %v1164 = vld [vmem:[%s1 + $0x134] sm:$0xf]
      %v1165 = vld [vmem:[%s1 + $0x138] sm:$0xf]
      %v1166 = vld [vmem:[%s1 + $0x13c] sm:$0xf]
      %v1167 = vld [vmem:[%s1 + $0x140] sm:$0xf]
      %v1168 = vld [vmem:[%s1 + $0x144] sm:$0xf]
      %v1169 = vld [vmem:[%s1 + $0x148] sm:$0xf]
      %v1170 = vld [vmem:[%s1 + $0x14c] sm:$0xf]
      %v1171 = vld [vmem:[%s1 + $0x150] sm:$0xf]
      %v1172 = vld [vmem:[%s1 + $0x154] sm:$0xf]
      %v1173 = vld [vmem:[%s1 + $0x158] sm:$0xf]
      %v1174 = vld [vmem:[%s1 + $0x15c] sm:$0xf]
      %v1175 = vld [vmem:[%s1 + $0x160] sm:$0xf]
      %v1176 = vld [vmem:[%s1 + $0x164] sm:$0xf]
      %v1177 = vld [vmem:[%s1 + $0x168] sm:$0xf]
      %v1178 = vld [vmem:[%s1 + $0x16c] sm:$0xf]
      %v1179 = vld [vmem:[%s1 + $0x170] sm:$0xf]
      %v1180 = vld [vmem:[%s1 + $0x174] sm:$0xf]
      %v1181 = vld [vmem:[%s1 + $0x178] sm:$0xf]
      %v1182 = vld [vmem:[%s1 + $0x17c] sm:$0xf]
      %v1231 = vunpack.c.l.b16 %v1135
      %v1232 = vunpack.c.l.b16 %v1136
      %v1233 = vunpack.c.l.b16 %v1137
      %v1234 = vunpack.c.l.b16 %v1138
      %v1235 = vunpack.c.l.b16 %v1139
      %v1236 = vunpack.c.l.b16 %v1140
      %v1237 = vunpack.c.l.b16 %v1141
      %v1238 = vunpack.c.l.b16 %v1142
      %v1239 = vunpack.c.l.b16 %v1143
      %v1240 = vunpack.c.l.b16 %v1144
      %v1241 = vunpack.c.l.b16 %v1145
      %v1242 = vunpack.c.l.b16 %v1146
      %v1243 = vunpack.c.l.b16 %v1147
      %v1244 = vunpack.c.l.b16 %v1148
      %v1245 = vunpack.c.l.b16 %v1149
      %v1246 = vunpack.c.l.b16 %v1150
      %v1247 = vunpack.c.l.b16 %v1151
      %v1248 = vunpack.c.l.b16 %v1152
      %v1249 = vunpack.c.l.b16 %v1153
      %v1250 = vunpack.c.l.b16 %v1154
      %v1251 = vunpack.c.l.b16 %v1155
      %v1252 = vunpack.c.l.b16 %v1156
      %v1253 = vunpack.c.l.b16 %v1157
      %v1254 = vunpack.c.l.b16 %v1158
      %v1255 = vunpack.c.l.b16 %v1159
      %v1256 = vunpack.c.l.b16 %v1160
      %v1257 = vunpack.c.l.b16 %v1161
      %v1258 = vunpack.c.l.b16 %v1162
      %v1259 = vunpack.c.l.b16 %v1163
      %v1260 = vunpack.c.l.b16 %v1164
      %v1261 = vunpack.c.l.b16 %v1165
      %v1262 = vunpack.c.l.b16 %v1166
      %v1263 = vunpack.c.l.b16 %v1167
      %v1264 = vunpack.c.l.b16 %v1168
      %v1265 = vunpack.c.l.b16 %v1169
      %v1266 = vunpack.c.l.b16 %v1170
      %v1267 = vunpack.c.l.b16 %v1171
      %v1268 = vunpack.c.l.b16 %v1172
      %v1269 = vunpack.c.l.b16 %v1173
      %v1270 = vunpack.c.l.b16 %v1174
      %v1271 = vunpack.c.l.b16 %v1175
      %v1272 = vunpack.c.l.b16 %v1176
      %v1273 = vunpack.c.l.b16 %v1177
      %v1274 = vunpack.c.l.b16 %v1178
      %v1275 = vunpack.c.l.b16 %v1179
      %v1276 = vunpack.c.l.b16 %v1180
      %v1277 = vunpack.c.l.b16 %v1181
      %v1278 = vunpack.c.l.b16 %v1182
      %v1279 = vpack.c.b16 %v1232, %v1231
      %v1280 = vpack.c.b16 %v1234, %v1233
      %v1281 = vpack.c.b16 %v1236, %v1235
      %v1282 = vpack.c.b16 %v1238, %v1237
      %v1283 = vpack.c.b16 %v1240, %v1239
      %v1284 = vpack.c.b16 %v1242, %v1241
      %v1285 = vpack.c.b16 %v1244, %v1243
      %v1286 = vpack.c.b16 %v1246, %v1245
      %v1287 = vpack.c.b16 %v1248, %v1247
      %v1288 = vpack.c.b16 %v1250, %v1249
      %v1289 = vpack.c.b16 %v1252, %v1251
      %v1290 = vpack.c.b16 %v1254, %v1253
      %v1291 = vpack.c.b16 %v1256, %v1255
      %v1292 = vpack.c.b16 %v1258, %v1257
      %v1293 = vpack.c.b16 %v1260, %v1259
      %v1294 = vpack.c.b16 %v1262, %v1261
      %v1295 = vpack.c.b16 %v1264, %v1263
      %v1296 = vpack.c.b16 %v1266, %v1265
      %v1297 = vpack.c.b16 %v1268, %v1267
      %v1298 = vpack.c.b16 %v1270, %v1269
      %v1299 = vpack.c.b16 %v1272, %v1271
      %v1300 = vpack.c.b16 %v1274, %v1273
      %v1301 = vpack.c.b16 %v1276, %v1275
      %v1302 = vpack.c.b16 %v1278, %v1277
      %1327 = vmatpush.bf16.msra.mxu0 %v1286
      %1328 = vmatpush.bf16.msra.mxu0 %v1285
      %1329 = vmatpush.bf16.msra.mxu0 %v1284
      %1330 = vmatpush.bf16.msra.mxu0 %v1283
      %1331 = vmatpush.bf16.msra.mxu0 %v1282
      %1332 = vmatpush.bf16.msra.mxu0 %v1281
      %1333 = vmatpush.bf16.msra.mxu0 %v1280
      %1334 = vmatpush.bf16.msra.mxu0 %v1279
      %1335 = vmatmul.bf16.gmra.mxu0 %v1055
      %v1336 = vpop.f32.mrf.mxu0
      %v1337 = vadd.f32 0.0, %v1336
      %v1338 = vpop.f32.mrf.mxu0
      %v1339 = vadd.f32 0.0, %v1338
      %1340 = vmatmul.bf16.gmra.mxu0 %v1056
      %v1341 = vpop.f32.mrf.mxu0
      %v1342 = vadd.f32 0.0, %v1341
      %v1343 = vpop.f32.mrf.mxu0
      %v1344 = vadd.f32 0.0, %v1343
      %1345 = vmatmul.bf16.gmra.mxu0 %v1057
      %v1346 = vpop.f32.mrf.mxu0
      %v1347 = vadd.f32 0.0, %v1346
      %v1348 = vpop.f32.mrf.mxu0
      %v1349 = vadd.f32 0.0, %v1348
      %1350 = vmatmul.bf16.gmra.mxu0 %v1058
      %v1351 = vpop.f32.mrf.mxu0
      %v1352 = vadd.f32 0.0, %v1351
      %v1353 = vpop.f32.mrf.mxu0
      %v1354 = vadd.f32 0.0, %v1353
      %1355 = vmatmul.bf16.gmra.mxu0 %v1059
      %v1356 = vpop.f32.mrf.mxu0
      %v1357 = vadd.f32 0.0, %v1356
      %v1358 = vpop.f32.mrf.mxu0
      %v1359 = vadd.f32 0.0, %v1358
      %1360 = vmatmul.bf16.gmra.mxu0 %v1060
      %v1361 = vpop.f32.mrf.mxu0
      %v1362 = vadd.f32 0.0, %v1361
      %v1363 = vpop.f32.mrf.mxu0
      %v1364 = vadd.f32 0.0, %v1363
      %1365 = vmatmul.bf16.gmra.mxu0 %v1061
      %v1366 = vpop.f32.mrf.mxu0
      %v1367 = vadd.f32 0.0, %v1366
      %v1368 = vpop.f32.mrf.mxu0
      %v1369 = vadd.f32 0.0, %v1368
      %1370 = vmatmul.bf16.gmra.mxu0 %v1062
      %v1371 = vpop.f32.mrf.mxu0
      %v1372 = vadd.f32 0.0, %v1371
      %v1373 = vpop.f32.mrf.mxu0
      %v1374 = vadd.f32 0.0, %v1373
      %1375 = vdwg.mxu0
      %1376 = vmatpush.bf16.msra.mxu0 %v1294
      %1377 = vmatpush.bf16.msra.mxu0 %v1293
      %1378 = vmatpush.bf16.msra.mxu0 %v1292
      %1379 = vmatpush.bf16.msra.mxu0 %v1291
      %1380 = vmatpush.bf16.msra.mxu0 %v1290
      %1381 = vmatpush.bf16.msra.mxu0 %v1289
      %1382 = vmatpush.bf16.msra.mxu0 %v1288
      %1383 = vmatpush.bf16.msra.mxu0 %v1287
      %1384 = vmatmul.bf16.gmra.mxu0 %v1087
      %v1385 = vpop.f32.mrf.mxu0
      %v1386 = vadd.f32 %v1337, %v1385
      %v1387 = vpop.f32.mrf.mxu0
      %v1388 = vadd.f32 %v1339, %v1387
      %1389 = vmatmul.bf16.gmra.mxu0 %v1088
      %v1390 = vpop.f32.mrf.mxu0
      %v1391 = vadd.f32 %v1342, %v1390
      %v1392 = vpop.f32.mrf.mxu0
      %v1393 = vadd.f32 %v1344, %v1392
      %1394 = vmatmul.bf16.gmra.mxu0 %v1089
      %v1395 = vpop.f32.mrf.mxu0
      %v1396 = vadd.f32 %v1347, %v1395
      %v1397 = vpop.f32.mrf.mxu0
      %v1398 = vadd.f32 %v1349, %v1397
      %1399 = vmatmul.bf16.gmra.mxu0 %v1090
      %v1400 = vpop.f32.mrf.mxu0
      %v1401 = vadd.f32 %v1352, %v1400
      %v1402 = vpop.f32.mrf.mxu0
      %v1403 = vadd.f32 %v1354, %v1402
      %1404 = vmatmul.bf16.gmra.mxu0 %v1091
      %v1405 = vpop.f32.mrf.mxu0
      %v1406 = vadd.f32 %v1357, %v1405
      %v1407 = vpop.f32.mrf.mxu0
      %v1408 = vadd.f32 %v1359, %v1407
      %1409 = vmatmul.bf16.gmra.mxu0 %v1092
      %v1410 = vpop.f32.mrf.mxu0
      %v1411 = vadd.f32 %v1362, %v1410
      %v1412 = vpop.f32.mrf.mxu0
      %v1413 = vadd.f32 %v1364, %v1412
      %1414 = vmatmul.bf16.gmra.mxu0 %v1093
      %v1415 = vpop.f32.mrf.mxu0
      %v1416 = vadd.f32 %v1367, %v1415
      %v1417 = vpop.f32.mrf.mxu0
      %v1418 = vadd.f32 %v1369, %v1417
      %1419 = vmatmul.bf16.gmra.mxu0 %v1094
      %v1420 = vpop.f32.mrf.mxu0
      %v1421 = vadd.f32 %v1372, %v1420
      %v1422 = vpop.f32.mrf.mxu0
      %v1423 = vadd.f32 %v1374, %v1422
      %1424 = vdwg.mxu0
      %1425 = vmatpush.bf16.msra.mxu0 %v1302
      %1426 = vmatpush.bf16.msra.mxu0 %v1301
      %1427 = vmatpush.bf16.msra.mxu0 %v1300
      %1428 = vmatpush.bf16.msra.mxu0 %v1299
      %1429 = vmatpush.bf16.msra.mxu0 %v1298
      %1430 = vmatpush.bf16.msra.mxu0 %v1297
      %1431 = vmatpush.bf16.msra.mxu0 %v1296
      %1432 = vmatpush.bf16.msra.mxu0 %v1295
      %1433 = vmatmul.bf16.gmra.mxu0 %v1119
      %v1434 = vpop.f32.mrf.mxu0
      %v1435 = vadd.f32 %v1386, %v1434
      %v1436 = vpop.f32.mrf.mxu0
      %v1437 = vadd.f32 %v1388, %v1436
      %1438 = vmatmul.bf16.gmra.mxu0 %v1120
      %v1439 = vpop.f32.mrf.mxu0
      %v1440 = vadd.f32 %v1391, %v1439
      %v1441 = vpop.f32.mrf.mxu0
      %v1442 = vadd.f32 %v1393, %v1441
      %1443 = vmatmul.bf16.gmra.mxu0 %v1121
      %v1444 = vpop.f32.mrf.mxu0
      %v1445 = vadd.f32 %v1396, %v1444
      %v1446 = vpop.f32.mrf.mxu0
      %v1447 = vadd.f32 %v1398, %v1446
      %1448 = vmatmul.bf16.gmra.mxu0 %v1122
      %v1449 = vpop.f32.mrf.mxu0
      %v1450 = vadd.f32 %v1401, %v1449
      %v1451 = vpop.f32.mrf.mxu0
      %v1452 = vadd.f32 %v1403, %v1451
      %1453 = vmatmul.bf16.gmra.mxu0 %v1123
      %v1454 = vpop.f32.mrf.mxu0
      %v1455 = vadd.f32 %v1406, %v1454
      %v1456 = vpop.f32.mrf.mxu0
      %v1457 = vadd.f32 %v1408, %v1456
      %1458 = vmatmul.bf16.gmra.mxu0 %v1124
      %v1459 = vpop.f32.mrf.mxu0
      %v1460 = vadd.f32 %v1411, %v1459
      %v1461 = vpop.f32.mrf.mxu0
      %v1462 = vadd.f32 %v1413, %v1461
      %1463 = vmatmul.bf16.gmra.mxu0 %v1125
      %v1464 = vpop.f32.mrf.mxu0
      %v1465 = vadd.f32 %v1416, %v1464
      %v1466 = vpop.f32.mrf.mxu0
      %v1467 = vadd.f32 %v1418, %v1466
      %1468 = vmatmul.bf16.gmra.mxu0 %v1126
      %v1469 = vpop.f32.mrf.mxu0
      %v1470 = vadd.f32 %v1421, %v1469
      %v1471 = vpop.f32.mrf.mxu0
      %v1472 = vadd.f32 %v1423, %v1471
      %1473 = vdwg.mxu0
      %v1522 = vunpack.c.l.b16 %v675
      %v1523 = vunpack.c.l.b16 %v676
      %v1524 = vunpack.c.l.b16 %v677
      %v1525 = vunpack.c.l.b16 %v678
      %v1526 = vunpack.c.l.b16 %v679
      %v1527 = vunpack.c.l.b16 %v680
      %v1528 = vunpack.c.l.b16 %v681
      %v1529 = vunpack.c.l.b16 %v682
      %v1530 = vunpack.c.l.b16 %v683
      %v1531 = vunpack.c.l.b16 %v684
      %v1532 = vunpack.c.l.b16 %v685
      %v1533 = vunpack.c.l.b16 %v686
      %v1534 = vunpack.c.l.b16 %v687
      %v1535 = vunpack.c.l.b16 %v688
      %v1536 = vunpack.c.l.b16 %v689
      %v1537 = vunpack.c.l.b16 %v690
      %v1538 = vunpack.c.l.b16 %v691
      %v1539 = vunpack.c.l.b16 %v692
      %v1540 = vunpack.c.l.b16 %v693
      %v1541 = vunpack.c.l.b16 %v694
      %v1542 = vunpack.c.l.b16 %v695
      %v1543 = vunpack.c.l.b16 %v696
      %v1544 = vunpack.c.l.b16 %v697
      %v1545 = vunpack.c.l.b16 %v698
      %v1546 = vunpack.c.l.b16 %v699
      %v1547 = vunpack.c.l.b16 %v700
      %v1548 = vunpack.c.l.b16 %v701
      %v1549 = vunpack.c.l.b16 %v702
      %v1550 = vunpack.c.l.b16 %v703
      %v1551 = vunpack.c.l.b16 %v704
      %v1552 = vunpack.c.l.b16 %v705
      %v1553 = vunpack.c.l.b16 %v706
      %v1554 = vunpack.c.l.b16 %v707
      %v1555 = vunpack.c.l.b16 %v708
      %v1556 = vunpack.c.l.b16 %v709
      %v1557 = vunpack.c.l.b16 %v710
      %v1558 = vunpack.c.l.b16 %v711
      %v1559 = vunpack.c.l.b16 %v712
      %v1560 = vunpack.c.l.b16 %v713
      %v1561 = vunpack.c.l.b16 %v714
      %v1562 = vunpack.c.l.b16 %v715
      %v1563 = vunpack.c.l.b16 %v716
      %v1564 = vunpack.c.l.b16 %v717
      %v1565 = vunpack.c.l.b16 %v718
      %v1566 = vunpack.c.l.b16 %v719
      %v1567 = vunpack.c.l.b16 %v720
      %v1568 = vunpack.c.l.b16 %v721
      %v1569 = vunpack.c.l.b16 %v722
      %v1570 = vpack.c.b16 %v1523, %v1522
      %v1571 = vpack.c.b16 %v1525, %v1524
      %v1572 = vpack.c.b16 %v1527, %v1526
      %v1573 = vpack.c.b16 %v1529, %v1528
      %v1574 = vpack.c.b16 %v1531, %v1530
      %v1575 = vpack.c.b16 %v1533, %v1532
      %v1576 = vpack.c.b16 %v1535, %v1534
      %v1577 = vpack.c.b16 %v1537, %v1536
      %v1578 = vpack.c.b16 %v1539, %v1538
      %v1579 = vpack.c.b16 %v1541, %v1540
      %v1580 = vpack.c.b16 %v1543, %v1542
      %v1581 = vpack.c.b16 %v1545, %v1544
      %v1582 = vpack.c.b16 %v1547, %v1546
      %v1583 = vpack.c.b16 %v1549, %v1548
      %v1584 = vpack.c.b16 %v1551, %v1550
      %v1585 = vpack.c.b16 %v1553, %v1552
      %v1586 = vpack.c.b16 %v1555, %v1554
      %v1587 = vpack.c.b16 %v1557, %v1556
      %v1588 = vpack.c.b16 %v1559, %v1558
      %v1589 = vpack.c.b16 %v1561, %v1560
      %v1590 = vpack.c.b16 %v1563, %v1562
      %v1591 = vpack.c.b16 %v1565, %v1564
      %v1592 = vpack.c.b16 %v1567, %v1566
      %v1593 = vpack.c.b16 %v1569, %v1568
      %1618 = vmatpush.bf16.msra.mxu0 %v1577
      %1619 = vmatpush.bf16.msra.mxu0 %v1576
      %1620 = vmatpush.bf16.msra.mxu0 %v1575
      %1621 = vmatpush.bf16.msra.mxu0 %v1574
      %1622 = vmatpush.bf16.msra.mxu0 %v1573
      %1623 = vmatpush.bf16.msra.mxu0 %v1572
      %1624 = vmatpush.bf16.msra.mxu0 %v1571
      %1625 = vmatpush.bf16.msra.mxu0 %v1570
      %1626 = vmatmul.bf16.gmra.mxu0 %v595
      %v1627 = vpop.f32.mrf.mxu0
      %v1628 = vadd.f32 %v1435, %v1627
      %v1629 = vpop.f32.mrf.mxu0
      %v1630 = vadd.f32 %v1437, %v1629
      %1631 = vmatmul.bf16.gmra.mxu0 %v596
      %v1632 = vpop.f32.mrf.mxu0
      %v1633 = vadd.f32 %v1440, %v1632
      %v1634 = vpop.f32.mrf.mxu0
      %v1635 = vadd.f32 %v1442, %v1634
      %1636 = vmatmul.bf16.gmra.mxu0 %v597
      %v1637 = vpop.f32.mrf.mxu0
      %v1638 = vadd.f32 %v1445, %v1637
      %v1639 = vpop.f32.mrf.mxu0
      %v1640 = vadd.f32 %v1447, %v1639
      %1641 = vmatmul.bf16.gmra.mxu0 %v598
      %v1642 = vpop.f32.mrf.mxu0
      %v1643 = vadd.f32 %v1450, %v1642
      %v1644 = vpop.f32.mrf.mxu0
      %v1645 = vadd.f32 %v1452, %v1644
      %1646 = vmatmul.bf16.gmra.mxu0 %v599
      %v1647 = vpop.f32.mrf.mxu0
      %v1648 = vadd.f32 %v1455, %v1647
      %v1649 = vpop.f32.mrf.mxu0
      %v1650 = vadd.f32 %v1457, %v1649
      %1651 = vmatmul.bf16.gmra.mxu0 %v600
      %v1652 = vpop.f32.mrf.mxu0
      %v1653 = vadd.f32 %v1460, %v1652
      %v1654 = vpop.f32.mrf.mxu0
      %v1655 = vadd.f32 %v1462, %v1654
      %1656 = vmatmul.bf16.gmra.mxu0 %v601
      %v1657 = vpop.f32.mrf.mxu0
      %v1658 = vadd.f32 %v1465, %v1657
      %v1659 = vpop.f32.mrf.mxu0
      %v1660 = vadd.f32 %v1467, %v1659
      %1661 = vmatmul.bf16.gmra.mxu0 %v602
      %v1662 = vpop.f32.mrf.mxu0
      %v1663 = vadd.f32 %v1470, %v1662
      %v1664 = vpop.f32.mrf.mxu0
      %v1665 = vadd.f32 %v1472, %v1664
      %1666 = vdwg.mxu0
      %1667 = vmatpush.bf16.msra.mxu0 %v1585
      %1668 = vmatpush.bf16.msra.mxu0 %v1584
      %1669 = vmatpush.bf16.msra.mxu0 %v1583
      %1670 = vmatpush.bf16.msra.mxu0 %v1582
      %1671 = vmatpush.bf16.msra.mxu0 %v1581
      %1672 = vmatpush.bf16.msra.mxu0 %v1580
      %1673 = vmatpush.bf16.msra.mxu0 %v1579
      %1674 = vmatpush.bf16.msra.mxu0 %v1578
      %1675 = vmatmul.bf16.gmra.mxu0 %v627
      %v1676 = vpop.f32.mrf.mxu0
      %v1677 = vadd.f32 %v1628, %v1676
      %v1678 = vpop.f32.mrf.mxu0
      %v1679 = vadd.f32 %v1630, %v1678
      %1680 = vmatmul.bf16.gmra.mxu0 %v628
      %v1681 = vpop.f32.mrf.mxu0
      %v1682 = vadd.f32 %v1633, %v1681
      %v1683 = vpop.f32.mrf.mxu0
      %v1684 = vadd.f32 %v1635, %v1683
      %1685 = vmatmul.bf16.gmra.mxu0 %v629
      %v1686 = vpop.f32.mrf.mxu0
      %v1687 = vadd.f32 %v1638, %v1686
      %v1688 = vpop.f32.mrf.mxu0
      %v1689 = vadd.f32 %v1640, %v1688
      %1690 = vmatmul.bf16.gmra.mxu0 %v630
      %v1691 = vpop.f32.mrf.mxu0
      %v1692 = vadd.f32 %v1643, %v1691
      %v1693 = vpop.f32.mrf.mxu0
      %v1694 = vadd.f32 %v1645, %v1693
      %1695 = vmatmul.bf16.gmra.mxu0 %v631
      %v1696 = vpop.f32.mrf.mxu0
      %v1697 = vadd.f32 %v1648, %v1696
      %v1698 = vpop.f32.mrf.mxu0
      %v1699 = vadd.f32 %v1650, %v1698
      %1700 = vmatmul.bf16.gmra.mxu0 %v632
      %v1701 = vpop.f32.mrf.mxu0
      %v1702 = vadd.f32 %v1653, %v1701
      %v1703 = vpop.f32.mrf.mxu0
      %v1704 = vadd.f32 %v1655, %v1703
      %1705 = vmatmul.bf16.gmra.mxu0 %v633
      %v1706 = vpop.f32.mrf.mxu0
      %v1707 = vadd.f32 %v1658, %v1706
      %v1708 = vpop.f32.mrf.mxu0
      %v1709 = vadd.f32 %v1660, %v1708
      %1710 = vmatmul.bf16.gmra.mxu0 %v634
      %v1711 = vpop.f32.mrf.mxu0
      %v1712 = vadd.f32 %v1663, %v1711
      %v1713 = vpop.f32.mrf.mxu0
      %v1714 = vadd.f32 %v1665, %v1713
      %1715 = vdwg.mxu0
      %1716 = vmatpush.bf16.msra.mxu0 %v1593
      %1717 = vmatpush.bf16.msra.mxu0 %v1592
      %1718 = vmatpush.bf16.msra.mxu0 %v1591
      %1719 = vmatpush.bf16.msra.mxu0 %v1590
      %1720 = vmatpush.bf16.msra.mxu0 %v1589
      %1721 = vmatpush.bf16.msra.mxu0 %v1588
      %1722 = vmatpush.bf16.msra.mxu0 %v1587
      %1723 = vmatpush.bf16.msra.mxu0 %v1586
      %1724 = vmatmul.bf16.gmra.mxu0 %v659
      %v1725 = vpop.f32.mrf.mxu0
      %v1726 = vadd.f32 %v1677, %v1725
      %v1727 = vpop.f32.mrf.mxu0
      %v1728 = vadd.f32 %v1679, %v1727
      %1729 = vmatmul.bf16.gmra.mxu0 %v660
      %v1730 = vpop.f32.mrf.mxu0
      %v1731 = vadd.f32 %v1682, %v1730
      %v1732 = vpop.f32.mrf.mxu0
      %v1733 = vadd.f32 %v1684, %v1732
      %1734 = vmatmul.bf16.gmra.mxu0 %v661
      %v1735 = vpop.f32.mrf.mxu0
      %v1736 = vadd.f32 %v1687, %v1735
      %v1737 = vpop.f32.mrf.mxu0
      %v1738 = vadd.f32 %v1689, %v1737
      %1739 = vmatmul.bf16.gmra.mxu0 %v662
      %v1740 = vpop.f32.mrf.mxu0
      %v1741 = vadd.f32 %v1692, %v1740
      %v1742 = vpop.f32.mrf.mxu0
      %v1743 = vadd.f32 %v1694, %v1742
      %1744 = vmatmul.bf16.gmra.mxu0 %v663
      %v1745 = vpop.f32.mrf.mxu0
      %v1746 = vadd.f32 %v1697, %v1745
      %v1747 = vpop.f32.mrf.mxu0
      %v1748 = vadd.f32 %v1699, %v1747
      %1749 = vmatmul.bf16.gmra.mxu0 %v664
      %v1750 = vpop.f32.mrf.mxu0
      %v1751 = vadd.f32 %v1702, %v1750
      %v1752 = vpop.f32.mrf.mxu0
      %v1753 = vadd.f32 %v1704, %v1752
      %1754 = vmatmul.bf16.gmra.mxu0 %v665
      %v1755 = vpop.f32.mrf.mxu0
      %v1756 = vadd.f32 %v1707, %v1755
      %v1757 = vpop.f32.mrf.mxu0
      %v1758 = vadd.f32 %v1709, %v1757
      %1759 = vmatmul.bf16.gmra.mxu0 %v666
      %v1760 = vpop.f32.mrf.mxu0
      %v1761 = vadd.f32 %v1712, %v1760
      %v1762 = vpop.f32.mrf.mxu0
      %v1763 = vadd.f32 %v1714, %v1762
      %1764 = vdwg.mxu0
      %s1765 = sadd.s32 %s257, 2
      %s1766 = smul.u32 %s1765, 3
      %s1767 = smul.addr %s1766, 4
      %s1768 = scalar_lea.vmem %s236, %s1767
      %v1769 = vld [vmem:[%s1768] sm:$0xf]
      %v1770 = vld [vmem:[%s1768 + $0x4] sm:$0xf]
      %v1771 = vld [vmem:[%s1768 + $0xc] sm:$0xf]
      %v1772 = vld [vmem:[%s1768 + $0x10] sm:$0xf]
      %v1773 = vld [vmem:[%s1768 + $0x18] sm:$0xf]
      %v1774 = vld [vmem:[%s1768 + $0x1c] sm:$0xf]
      %v1775 = vld [vmem:[%s1768 + $0x24] sm:$0xf]
      %v1776 = vld [vmem:[%s1768 + $0x28] sm:$0xf]
      %v1777 = vld [vmem:[%s1768 + $0x30] sm:$0xf]
      %v1778 = vld [vmem:[%s1768 + $0x34] sm:$0xf]
      %v1779 = vld [vmem:[%s1768 + $0x3c] sm:$0xf]
      %v1780 = vld [vmem:[%s1768 + $0x40] sm:$0xf]
      %v1781 = vld [vmem:[%s1768 + $0x48] sm:$0xf]
      %v1782 = vld [vmem:[%s1768 + $0x4c] sm:$0xf]
      %v1783 = vld [vmem:[%s1768 + $0x54] sm:$0xf]
      %v1784 = vld [vmem:[%s1768 + $0x58] sm:$0xf]
      %v1785 = vld [vmem:[%s1768 + $0x8] sm:$0x1]
      %v1786 = vld [vmem:[%s1768 + $0x14] sm:$0x1]
      %v1787 = vld [vmem:[%s1768 + $0x20] sm:$0x1]
      %v1788 = vld [vmem:[%s1768 + $0x2c] sm:$0x1]
      %v1789 = vld [vmem:[%s1768 + $0x38] sm:$0x1]
      %v1790 = vld [vmem:[%s1768 + $0x44] sm:$0x1]
      %v1791 = vld [vmem:[%s1768 + $0x50] sm:$0x1]
      %v1792 = vld [vmem:[%s1768 + $0x5c] sm:$0x1]
      %v1794 = vshrl.u32 %v1769, 16
      %v1796 = vrot.slane %v1794, 4
      %v1797 = vshll.u32 %v1769, 16
      %v1799 = vrot.slane %v1797, 5
      %v1800 = vor.u32 %v1796, %v1799
      %v1801 = vrot.slane %v1800, 4
      %v1803 = vshll.u32 %v1770, 16
      %v1805 = vrot.slane %v1803, 5
      %v1806 = vsel %vm287, %v1801, %v1805
      %v1807 = vshrl.u32 %v1770, 16
      %v1809 = vrot.slane %v1807, 4
      %v1810 = vor.u32 %v1809, %v1805
      %v1811 = vrot.slane %v1810, 4
      %v1813 = vshll.u32 %v1785, 16
      %v1815 = vrot.slane %v1813, 5
      %v1816 = vsel %vm287, %v1811, %v1815
      %v1818 = vshrl.u32 %v1771, 16
      %v1820 = vrot.slane %v1818, 4
      %v1821 = vshll.u32 %v1771, 16
      %v1823 = vrot.slane %v1821, 5
      %v1824 = vor.u32 %v1820, %v1823
      %v1825 = vrot.slane %v1824, 4
      %v1827 = vshll.u32 %v1772, 16
      %v1829 = vrot.slane %v1827, 5
      %v1830 = vsel %vm287, %v1825, %v1829
      %v1831 = vshrl.u32 %v1772, 16
      %v1833 = vrot.slane %v1831, 4
      %v1834 = vor.u32 %v1833, %v1829
      %v1835 = vrot.slane %v1834, 4
      %v1837 = vshll.u32 %v1786, 16
      %v1839 = vrot.slane %v1837, 5
      %v1840 = vsel %vm287, %v1835, %v1839
      %v1842 = vshrl.u32 %v1773, 16
      %v1844 = vrot.slane %v1842, 4
      %v1845 = vshll.u32 %v1773, 16
      %v1847 = vrot.slane %v1845, 5
      %v1848 = vor.u32 %v1844, %v1847
      %v1849 = vrot.slane %v1848, 4
      %v1851 = vshll.u32 %v1774, 16
      %v1853 = vrot.slane %v1851, 5
      %v1854 = vsel %vm287, %v1849, %v1853
      %v1855 = vshrl.u32 %v1774, 16
      %v1857 = vrot.slane %v1855, 4
      %v1858 = vor.u32 %v1857, %v1853
      %v1859 = vrot.slane %v1858, 4
      %v1861 = vshll.u32 %v1787, 16
      %v1863 = vrot.slane %v1861, 5
      %v1864 = vsel %vm287, %v1859, %v1863
      %v1866 = vshrl.u32 %v1775, 16
      %v1868 = vrot.slane %v1866, 4
      %v1869 = vshll.u32 %v1775, 16
      %v1871 = vrot.slane %v1869, 5
      %v1872 = vor.u32 %v1868, %v1871
      %v1873 = vrot.slane %v1872, 4
      %v1875 = vshll.u32 %v1776, 16
      %v1877 = vrot.slane %v1875, 5
      %v1878 = vsel %vm287, %v1873, %v1877
      %v1879 = vshrl.u32 %v1776, 16
      %v1881 = vrot.slane %v1879, 4
      %v1882 = vor.u32 %v1881, %v1877
      %v1883 = vrot.slane %v1882, 4
      %v1885 = vshll.u32 %v1788, 16
      %v1887 = vrot.slane %v1885, 5
      %v1888 = vsel %vm287, %v1883, %v1887
      %v1890 = vshrl.u32 %v1777, 16
      %v1892 = vrot.slane %v1890, 4
      %v1893 = vshll.u32 %v1777, 16
      %v1895 = vrot.slane %v1893, 5
      %v1896 = vor.u32 %v1892, %v1895
      %v1897 = vrot.slane %v1896, 4
      %v1899 = vshll.u32 %v1778, 16
      %v1901 = vrot.slane %v1899, 5
      %v1902 = vsel %vm287, %v1897, %v1901
      %v1903 = vshrl.u32 %v1778, 16
      %v1905 = vrot.slane %v1903, 4
      %v1906 = vor.u32 %v1905, %v1901
      %v1907 = vrot.slane %v1906, 4
      %v1909 = vshll.u32 %v1789, 16
      %v1911 = vrot.slane %v1909, 5
      %v1912 = vsel %vm287, %v1907, %v1911
      %v1914 = vshrl.u32 %v1779, 16
      %v1916 = vrot.slane %v1914, 4
      %v1917 = vshll.u32 %v1779, 16
      %v1919 = vrot.slane %v1917, 5
      %v1920 = vor.u32 %v1916, %v1919
      %v1921 = vrot.slane %v1920, 4
      %v1923 = vshll.u32 %v1780, 16
      %v1925 = vrot.slane %v1923, 5
      %v1926 = vsel %vm287, %v1921, %v1925
      %v1927 = vshrl.u32 %v1780, 16
      %v1929 = vrot.slane %v1927, 4
      %v1930 = vor.u32 %v1929, %v1925
      %v1931 = vrot.slane %v1930, 4
      %v1933 = vshll.u32 %v1790, 16
      %v1935 = vrot.slane %v1933, 5
      %v1936 = vsel %vm287, %v1931, %v1935
      %v1938 = vshrl.u32 %v1781, 16
      %v1940 = vrot.slane %v1938, 4
      %v1941 = vshll.u32 %v1781, 16
      %v1943 = vrot.slane %v1941, 5
      %v1944 = vor.u32 %v1940, %v1943
      %v1945 = vrot.slane %v1944, 4
      %v1947 = vshll.u32 %v1782, 16
      %v1949 = vrot.slane %v1947, 5
      %v1950 = vsel %vm287, %v1945, %v1949
      %v1951 = vshrl.u32 %v1782, 16
      %v1953 = vrot.slane %v1951, 4
      %v1954 = vor.u32 %v1953, %v1949
      %v1955 = vrot.slane %v1954, 4
      %v1957 = vshll.u32 %v1791, 16
      %v1959 = vrot.slane %v1957, 5
      %v1960 = vsel %vm287, %v1955, %v1959
      %v1962 = vshrl.u32 %v1783, 16
      %v1964 = vrot.slane %v1962, 4
      %v1965 = vshll.u32 %v1783, 16
      %v1967 = vrot.slane %v1965, 5
      %v1968 = vor.u32 %v1964, %v1967
      %v1969 = vrot.slane %v1968, 4
      %v1971 = vshll.u32 %v1784, 16
      %v1973 = vrot.slane %v1971, 5
      %v1974 = vsel %vm287, %v1969, %v1973
      %v1975 = vshrl.u32 %v1784, 16
      %v1977 = vrot.slane %v1975, 4
      %v1978 = vor.u32 %v1977, %v1973
      %v1979 = vrot.slane %v1978, 4
      %v1981 = vshll.u32 %v1792, 16
      %v1983 = vrot.slane %v1981, 5
      %v1984 = vsel %vm287, %v1979, %v1983
      %v1985 = vld [vmem:[%s1768] sm:$0xe]
      %v1986 = vld [vmem:[%s1768 + $0xc] sm:$0xe]
      %v1987 = vld [vmem:[%s1768 + $0x18] sm:$0xe]
      %v1988 = vld [vmem:[%s1768 + $0x24] sm:$0xe]
      %v1989 = vld [vmem:[%s1768 + $0x30] sm:$0xe]
      %v1990 = vld [vmem:[%s1768 + $0x3c] sm:$0xe]
      %v1991 = vld [vmem:[%s1768 + $0x48] sm:$0xe]
      %v1992 = vld [vmem:[%s1768 + $0x54] sm:$0xe]
      %v2017 = vrot.slane %v1985, 5
      %v2018 = vrot.slane %v2017, 4
      %v2019 = vrot.slane %v1770, 5
      %v2020 = vsel %vm514, %v2018, %v2019
      %v2021 = vrot.slane %v2019, 4
      %v2022 = vrot.slane %v1785, 5
      %v2023 = vsel %vm514, %v2021, %v2022
      %v2024 = vrot.slane %v1986, 5
      %v2025 = vrot.slane %v2024, 4
      %v2026 = vrot.slane %v1772, 5
      %v2027 = vsel %vm514, %v2025, %v2026
      %v2028 = vrot.slane %v2026, 4
      %v2029 = vrot.slane %v1786, 5
      %v2030 = vsel %vm514, %v2028, %v2029
      %v2031 = vrot.slane %v1987, 5
      %v2032 = vrot.slane %v2031, 4
      %v2033 = vrot.slane %v1774, 5
      %v2034 = vsel %vm514, %v2032, %v2033
      %v2035 = vrot.slane %v2033, 4
      %v2036 = vrot.slane %v1787, 5
      %v2037 = vsel %vm514, %v2035, %v2036
      %v2038 = vrot.slane %v1988, 5
      %v2039 = vrot.slane %v2038, 4
      %v2040 = vrot.slane %v1776, 5
      %v2041 = vsel %vm514, %v2039, %v2040
      %v2042 = vrot.slane %v2040, 4
      %v2043 = vrot.slane %v1788, 5
      %v2044 = vsel %vm514, %v2042, %v2043
      %v2045 = vrot.slane %v1989, 5
      %v2046 = vrot.slane %v2045, 4
      %v2047 = vrot.slane %v1778, 5
      %v2048 = vsel %vm514, %v2046, %v2047
      %v2049 = vrot.slane %v2047, 4
      %v2050 = vrot.slane %v1789, 5
      %v2051 = vsel %vm514, %v2049, %v2050
      %v2052 = vrot.slane %v1990, 5
      %v2053 = vrot.slane %v2052, 4
      %v2054 = vrot.slane %v1780, 5
      %v2055 = vsel %vm514, %v2053, %v2054
      %v2056 = vrot.slane %v2054, 4
      %v2057 = vrot.slane %v1790, 5
      %v2058 = vsel %vm514, %v2056, %v2057
      %v2059 = vrot.slane %v1991, 5
      %v2060 = vrot.slane %v2059, 4
      %v2061 = vrot.slane %v1782, 5
      %v2062 = vsel %vm514, %v2060, %v2061
      %v2063 = vrot.slane %v2061, 4
      %v2064 = vrot.slane %v1791, 5
      %v2065 = vsel %vm514, %v2063, %v2064
      %v2066 = vrot.slane %v1992, 5
      %v2067 = vrot.slane %v2066, 4
      %v2068 = vrot.slane %v1784, 5
      %v2069 = vsel %vm514, %v2067, %v2068
      %v2070 = vrot.slane %v2068, 4
      %v2071 = vrot.slane %v1792, 5
      %v2072 = vsel %vm514, %v2070, %v2071
      %v2081 = vunpack.c.l.b16 %v1769
      %v2082 = vunpack.c.l.b16 %v1770
      %v2083 = vunpack.c.l.b16 %v1771
      %v2084 = vunpack.c.l.b16 %v1772
      %v2085 = vunpack.c.l.b16 %v1773
      %v2086 = vunpack.c.l.b16 %v1774
      %v2087 = vunpack.c.l.b16 %v1775
      %v2088 = vunpack.c.l.b16 %v1776
      %v2089 = vunpack.c.l.b16 %v1777
      %v2090 = vunpack.c.l.b16 %v1778
      %v2091 = vunpack.c.l.b16 %v1779
      %v2092 = vunpack.c.l.b16 %v1780
      %v2093 = vunpack.c.l.b16 %v1781
      %v2094 = vunpack.c.l.b16 %v1782
      %v2095 = vunpack.c.l.b16 %v1783
      %v2096 = vunpack.c.l.b16 %v1784
      %v2097 = vpack.c.b16 %v2082, %v2081
      %v2098 = vpack.c.b16 %v2084, %v2083
      %v2099 = vpack.c.b16 %v2086, %v2085
      %v2100 = vpack.c.b16 %v2088, %v2087
      %v2101 = vpack.c.b16 %v2090, %v2089
      %v2102 = vpack.c.b16 %v2092, %v2091
      %v2103 = vpack.c.b16 %v2094, %v2093
      %v2104 = vpack.c.b16 %v2096, %v2095
      %v2113 = vunpack.c.l.b16 %v1806
      %v2114 = vunpack.c.l.b16 %v1816
      %v2115 = vunpack.c.l.b16 %v1830
      %v2116 = vunpack.c.l.b16 %v1840
      %v2117 = vunpack.c.l.b16 %v1854
      %v2118 = vunpack.c.l.b16 %v1864
      %v2119 = vunpack.c.l.b16 %v1878
      %v2120 = vunpack.c.l.b16 %v1888
      %v2121 = vunpack.c.l.b16 %v1902
      %v2122 = vunpack.c.l.b16 %v1912
      %v2123 = vunpack.c.l.b16 %v1926
      %v2124 = vunpack.c.l.b16 %v1936
      %v2125 = vunpack.c.l.b16 %v1950
      %v2126 = vunpack.c.l.b16 %v1960
      %v2127 = vunpack.c.l.b16 %v1974
      %v2128 = vunpack.c.l.b16 %v1984
      %v2129 = vpack.c.b16 %v2114, %v2113
      %v2130 = vpack.c.b16 %v2116, %v2115
      %v2131 = vpack.c.b16 %v2118, %v2117
      %v2132 = vpack.c.b16 %v2120, %v2119
      %v2133 = vpack.c.b16 %v2122, %v2121
      %v2134 = vpack.c.b16 %v2124, %v2123
      %v2135 = vpack.c.b16 %v2126, %v2125
      %v2136 = vpack.c.b16 %v2128, %v2127
      %v2145 = vunpack.c.l.b16 %v2020
      %v2146 = vunpack.c.l.b16 %v2023
      %v2147 = vunpack.c.l.b16 %v2027
      %v2148 = vunpack.c.l.b16 %v2030
      %v2149 = vunpack.c.l.b16 %v2034
      %v2150 = vunpack.c.l.b16 %v2037
      %v2151 = vunpack.c.l.b16 %v2041
      %v2152 = vunpack.c.l.b16 %v2044
      %v2153 = vunpack.c.l.b16 %v2048
      %v2154 = vunpack.c.l.b16 %v2051
      %v2155 = vunpack.c.l.b16 %v2055
      %v2156 = vunpack.c.l.b16 %v2058
      %v2157 = vunpack.c.l.b16 %v2062
      %v2158 = vunpack.c.l.b16 %v2065
      %v2159 = vunpack.c.l.b16 %v2069
      %v2160 = vunpack.c.l.b16 %v2072
      %v2161 = vpack.c.b16 %v2146, %v2145
      %v2162 = vpack.c.b16 %v2148, %v2147
      %v2163 = vpack.c.b16 %v2150, %v2149
      %v2164 = vpack.c.b16 %v2152, %v2151
      %v2165 = vpack.c.b16 %v2154, %v2153
      %v2166 = vpack.c.b16 %v2156, %v2155
      %v2167 = vpack.c.b16 %v2158, %v2157
      %v2168 = vpack.c.b16 %v2160, %v2159
      %v2177 = vld [vmem:[%s1 + $0x180] sm:$0xf]
      %v2178 = vld [vmem:[%s1 + $0x184] sm:$0xf]
      %v2179 = vld [vmem:[%s1 + $0x188] sm:$0xf]
      %v2180 = vld [vmem:[%s1 + $0x18c] sm:$0xf]
      %v2181 = vld [vmem:[%s1 + $0x190] sm:$0xf]
      %v2182 = vld [vmem:[%s1 + $0x194] sm:$0xf]
      %v2183 = vld [vmem:[%s1 + $0x198] sm:$0xf]
      %v2184 = vld [vmem:[%s1 + $0x19c] sm:$0xf]
      %v2185 = vld [vmem:[%s1 + $0x1a0] sm:$0xf]
      %v2186 = vld [vmem:[%s1 + $0x1a4] sm:$0xf]
      %v2187 = vld [vmem:[%s1 + $0x1a8] sm:$0xf]
      %v2188 = vld [vmem:[%s1 + $0x1ac] sm:$0xf]
      %v2189 = vld [vmem:[%s1 + $0x1b0] sm:$0xf]
      %v2190 = vld [vmem:[%s1 + $0x1b4] sm:$0xf]
      %v2191 = vld [vmem:[%s1 + $0x1b8] sm:$0xf]
      %v2192 = vld [vmem:[%s1 + $0x1bc] sm:$0xf]
      %v2193 = vld [vmem:[%s1 + $0x1c0] sm:$0xf]
      %v2194 = vld [vmem:[%s1 + $0x1c4] sm:$0xf]
      %v2195 = vld [vmem:[%s1 + $0x1c8] sm:$0xf]
      %v2196 = vld [vmem:[%s1 + $0x1cc] sm:$0xf]
      %v2197 = vld [vmem:[%s1 + $0x1d0] sm:$0xf]
      %v2198 = vld [vmem:[%s1 + $0x1d4] sm:$0xf]
      %v2199 = vld [vmem:[%s1 + $0x1d8] sm:$0xf]
      %v2200 = vld [vmem:[%s1 + $0x1dc] sm:$0xf]
      %v2201 = vld [vmem:[%s1 + $0x1e0] sm:$0xf]
      %v2202 = vld [vmem:[%s1 + $0x1e4] sm:$0xf]
      %v2203 = vld [vmem:[%s1 + $0x1e8] sm:$0xf]
      %v2204 = vld [vmem:[%s1 + $0x1ec] sm:$0xf]
      %v2205 = vld [vmem:[%s1 + $0x1f0] sm:$0xf]
      %v2206 = vld [vmem:[%s1 + $0x1f4] sm:$0xf]
      %v2207 = vld [vmem:[%s1 + $0x1f8] sm:$0xf]
      %v2208 = vld [vmem:[%s1 + $0x1fc] sm:$0xf]
      %v2209 = vld [vmem:[%s1 + $0x200] sm:$0xf]
      %v2210 = vld [vmem:[%s1 + $0x204] sm:$0xf]
      %v2211 = vld [vmem:[%s1 + $0x208] sm:$0xf]
      %v2212 = vld [vmem:[%s1 + $0x20c] sm:$0xf]
      %v2213 = vld [vmem:[%s1 + $0x210] sm:$0xf]
      %v2214 = vld [vmem:[%s1 + $0x214] sm:$0xf]
      %v2215 = vld [vmem:[%s1 + $0x218] sm:$0xf]
      %v2216 = vld [vmem:[%s1 + $0x21c] sm:$0xf]
      %v2217 = vld [vmem:[%s1 + $0x220] sm:$0xf]
      %v2218 = vld [vmem:[%s1 + $0x224] sm:$0xf]
      %v2219 = vld [vmem:[%s1 + $0x228] sm:$0xf]
      %v2220 = vld [vmem:[%s1 + $0x22c] sm:$0xf]
      %v2221 = vld [vmem:[%s1 + $0x230] sm:$0xf]
      %v2222 = vld [vmem:[%s1 + $0x234] sm:$0xf]
      %v2223 = vld [vmem:[%s1 + $0x238] sm:$0xf]
      %v2224 = vld [vmem:[%s1 + $0x23c] sm:$0xf]
      %v2273 = vunpack.c.l.b16 %v2177
      %v2274 = vunpack.c.l.b16 %v2178
      %v2275 = vunpack.c.l.b16 %v2179
      %v2276 = vunpack.c.l.b16 %v2180
      %v2277 = vunpack.c.l.b16 %v2181
      %v2278 = vunpack.c.l.b16 %v2182
      %v2279 = vunpack.c.l.b16 %v2183
      %v2280 = vunpack.c.l.b16 %v2184
      %v2281 = vunpack.c.l.b16 %v2185
      %v2282 = vunpack.c.l.b16 %v2186
      %v2283 = vunpack.c.l.b16 %v2187
      %v2284 = vunpack.c.l.b16 %v2188
      %v2285 = vunpack.c.l.b16 %v2189
      %v2286 = vunpack.c.l.b16 %v2190
      %v2287 = vunpack.c.l.b16 %v2191
      %v2288 = vunpack.c.l.b16 %v2192
      %v2289 = vunpack.c.l.b16 %v2193
      %v2290 = vunpack.c.l.b16 %v2194
      %v2291 = vunpack.c.l.b16 %v2195
      %v2292 = vunpack.c.l.b16 %v2196
      %v2293 = vunpack.c.l.b16 %v2197
      %v2294 = vunpack.c.l.b16 %v2198
      %v2295 = vunpack.c.l.b16 %v2199
      %v2296 = vunpack.c.l.b16 %v2200
      %v2297 = vunpack.c.l.b16 %v2201
      %v2298 = vunpack.c.l.b16 %v2202
      %v2299 = vunpack.c.l.b16 %v2203
      %v2300 = vunpack.c.l.b16 %v2204
      %v2301 = vunpack.c.l.b16 %v2205
      %v2302 = vunpack.c.l.b16 %v2206
      %v2303 = vunpack.c.l.b16 %v2207
      %v2304 = vunpack.c.l.b16 %v2208
      %v2305 = vunpack.c.l.b16 %v2209
      %v2306 = vunpack.c.l.b16 %v2210
      %v2307 = vunpack.c.l.b16 %v2211
      %v2308 = vunpack.c.l.b16 %v2212
      %v2309 = vunpack.c.l.b16 %v2213
      %v2310 = vunpack.c.l.b16 %v2214
      %v2311 = vunpack.c.l.b16 %v2215
      %v2312 = vunpack.c.l.b16 %v2216
      %v2313 = vunpack.c.l.b16 %v2217
      %v2314 = vunpack.c.l.b16 %v2218
      %v2315 = vunpack.c.l.b16 %v2219
      %v2316 = vunpack.c.l.b16 %v2220
      %v2317 = vunpack.c.l.b16 %v2221
      %v2318 = vunpack.c.l.b16 %v2222
      %v2319 = vunpack.c.l.b16 %v2223
      %v2320 = vunpack.c.l.b16 %v2224
      %v2321 = vpack.c.b16 %v2274, %v2273
      %v2322 = vpack.c.b16 %v2276, %v2275
      %v2323 = vpack.c.b16 %v2278, %v2277
      %v2324 = vpack.c.b16 %v2280, %v2279
      %v2325 = vpack.c.b16 %v2282, %v2281
      %v2326 = vpack.c.b16 %v2284, %v2283
      %v2327 = vpack.c.b16 %v2286, %v2285
      %v2328 = vpack.c.b16 %v2288, %v2287
      %v2329 = vpack.c.b16 %v2290, %v2289
      %v2330 = vpack.c.b16 %v2292, %v2291
      %v2331 = vpack.c.b16 %v2294, %v2293
      %v2332 = vpack.c.b16 %v2296, %v2295
      %v2333 = vpack.c.b16 %v2298, %v2297
      %v2334 = vpack.c.b16 %v2300, %v2299
      %v2335 = vpack.c.b16 %v2302, %v2301
      %v2336 = vpack.c.b16 %v2304, %v2303
      %v2337 = vpack.c.b16 %v2306, %v2305
      %v2338 = vpack.c.b16 %v2308, %v2307
      %v2339 = vpack.c.b16 %v2310, %v2309
      %v2340 = vpack.c.b16 %v2312, %v2311
      %v2341 = vpack.c.b16 %v2314, %v2313
      %v2342 = vpack.c.b16 %v2316, %v2315
      %v2343 = vpack.c.b16 %v2318, %v2317
      %v2344 = vpack.c.b16 %v2320, %v2319
      %2369 = vmatpush.bf16.msra.mxu0 %v2328
      %2370 = vmatpush.bf16.msra.mxu0 %v2327
      %2371 = vmatpush.bf16.msra.mxu0 %v2326
      %2372 = vmatpush.bf16.msra.mxu0 %v2325
      %2373 = vmatpush.bf16.msra.mxu0 %v2324
      %2374 = vmatpush.bf16.msra.mxu0 %v2323
      %2375 = vmatpush.bf16.msra.mxu0 %v2322
      %2376 = vmatpush.bf16.msra.mxu0 %v2321
      %2377 = vmatmul.bf16.gmra.mxu0 %v2097
      %v2378 = vpop.f32.mrf.mxu0
      %v2379 = vadd.f32 0.0, %v2378
      %v2380 = vpop.f32.mrf.mxu0
      %v2381 = vadd.f32 0.0, %v2380
      %2382 = vmatmul.bf16.gmra.mxu0 %v2098
      %v2383 = vpop.f32.mrf.mxu0
      %v2384 = vadd.f32 0.0, %v2383
      %v2385 = vpop.f32.mrf.mxu0
      %v2386 = vadd.f32 0.0, %v2385
      %2387 = vmatmul.bf16.gmra.mxu0 %v2099
      %v2388 = vpop.f32.mrf.mxu0
      %v2389 = vadd.f32 0.0, %v2388
      %v2390 = vpop.f32.mrf.mxu0
      %v2391 = vadd.f32 0.0, %v2390
      %2392 = vmatmul.bf16.gmra.mxu0 %v2100
      %v2393 = vpop.f32.mrf.mxu0
      %v2394 = vadd.f32 0.0, %v2393
      %v2395 = vpop.f32.mrf.mxu0
      %v2396 = vadd.f32 0.0, %v2395
      %2397 = vmatmul.bf16.gmra.mxu0 %v2101
      %v2398 = vpop.f32.mrf.mxu0
      %v2399 = vadd.f32 0.0, %v2398
      %v2400 = vpop.f32.mrf.mxu0
      %v2401 = vadd.f32 0.0, %v2400
      %2402 = vmatmul.bf16.gmra.mxu0 %v2102
      %v2403 = vpop.f32.mrf.mxu0
      %v2404 = vadd.f32 0.0, %v2403
      %v2405 = vpop.f32.mrf.mxu0
      %v2406 = vadd.f32 0.0, %v2405
      %2407 = vmatmul.bf16.gmra.mxu0 %v2103
      %v2408 = vpop.f32.mrf.mxu0
      %v2409 = vadd.f32 0.0, %v2408
      %v2410 = vpop.f32.mrf.mxu0
      %v2411 = vadd.f32 0.0, %v2410
      %2412 = vmatmul.bf16.gmra.mxu0 %v2104
      %v2413 = vpop.f32.mrf.mxu0
      %v2414 = vadd.f32 0.0, %v2413
      %v2415 = vpop.f32.mrf.mxu0
      %v2416 = vadd.f32 0.0, %v2415
      %2417 = vdwg.mxu0
      %2418 = vmatpush.bf16.msra.mxu0 %v2336
      %2419 = vmatpush.bf16.msra.mxu0 %v2335
      %2420 = vmatpush.bf16.msra.mxu0 %v2334
      %2421 = vmatpush.bf16.msra.mxu0 %v2333
      %2422 = vmatpush.bf16.msra.mxu0 %v2332
      %2423 = vmatpush.bf16.msra.mxu0 %v2331
      %2424 = vmatpush.bf16.msra.mxu0 %v2330
      %2425 = vmatpush.bf16.msra.mxu0 %v2329
      %2426 = vmatmul.bf16.gmra.mxu0 %v2129
      %v2427 = vpop.f32.mrf.mxu0
      %v2428 = vadd.f32 %v2379, %v2427
      %v2429 = vpop.f32.mrf.mxu0
      %v2430 = vadd.f32 %v2381, %v2429
      %2431 = vmatmul.bf16.gmra.mxu0 %v2130
      %v2432 = vpop.f32.mrf.mxu0
      %v2433 = vadd.f32 %v2384, %v2432
      %v2434 = vpop.f32.mrf.mxu0
      %v2435 = vadd.f32 %v2386, %v2434
      %2436 = vmatmul.bf16.gmra.mxu0 %v2131
      %v2437 = vpop.f32.mrf.mxu0
      %v2438 = vadd.f32 %v2389, %v2437
      %v2439 = vpop.f32.mrf.mxu0
      %v2440 = vadd.f32 %v2391, %v2439
      %2441 = vmatmul.bf16.gmra.mxu0 %v2132
      %v2442 = vpop.f32.mrf.mxu0
      %v2443 = vadd.f32 %v2394, %v2442
      %v2444 = vpop.f32.mrf.mxu0
      %v2445 = vadd.f32 %v2396, %v2444
      %2446 = vmatmul.bf16.gmra.mxu0 %v2133
      %v2447 = vpop.f32.mrf.mxu0
      %v2448 = vadd.f32 %v2399, %v2447
      %v2449 = vpop.f32.mrf.mxu0
      %v2450 = vadd.f32 %v2401, %v2449
      %2451 = vmatmul.bf16.gmra.mxu0 %v2134
      %v2452 = vpop.f32.mrf.mxu0
      %v2453 = vadd.f32 %v2404, %v2452
      %v2454 = vpop.f32.mrf.mxu0
      %v2455 = vadd.f32 %v2406, %v2454
      %2456 = vmatmul.bf16.gmra.mxu0 %v2135
      %v2457 = vpop.f32.mrf.mxu0
      %v2458 = vadd.f32 %v2409, %v2457
      %v2459 = vpop.f32.mrf.mxu0
      %v2460 = vadd.f32 %v2411, %v2459
      %2461 = vmatmul.bf16.gmra.mxu0 %v2136
      %v2462 = vpop.f32.mrf.mxu0
      %v2463 = vadd.f32 %v2414, %v2462
      %v2464 = vpop.f32.mrf.mxu0
      %v2465 = vadd.f32 %v2416, %v2464
      %2466 = vdwg.mxu0
      %2467 = vmatpush.bf16.msra.mxu0 %v2344
      %2468 = vmatpush.bf16.msra.mxu0 %v2343
      %2469 = vmatpush.bf16.msra.mxu0 %v2342
      %2470 = vmatpush.bf16.msra.mxu0 %v2341
      %2471 = vmatpush.bf16.msra.mxu0 %v2340
      %2472 = vmatpush.bf16.msra.mxu0 %v2339
      %2473 = vmatpush.bf16.msra.mxu0 %v2338
      %2474 = vmatpush.bf16.msra.mxu0 %v2337
      %2475 = vmatmul.bf16.gmra.mxu0 %v2161
      %v2476 = vpop.f32.mrf.mxu0
      %v2477 = vadd.f32 %v2428, %v2476
      %v2478 = vpop.f32.mrf.mxu0
      %v2479 = vadd.f32 %v2430, %v2478
      %2480 = vmatmul.bf16.gmra.mxu0 %v2162
      %v2481 = vpop.f32.mrf.mxu0
      %v2482 = vadd.f32 %v2433, %v2481
      %v2483 = vpop.f32.mrf.mxu0
      %v2484 = vadd.f32 %v2435, %v2483
      %2485 = vmatmul.bf16.gmra.mxu0 %v2163
      %v2486 = vpop.f32.mrf.mxu0
      %v2487 = vadd.f32 %v2438, %v2486
      %v2488 = vpop.f32.mrf.mxu0
      %v2489 = vadd.f32 %v2440, %v2488
      %2490 = vmatmul.bf16.gmra.mxu0 %v2164
      %v2491 = vpop.f32.mrf.mxu0
      %v2492 = vadd.f32 %v2443, %v2491
      %v2493 = vpop.f32.mrf.mxu0
      %v2494 = vadd.f32 %v2445, %v2493
      %2495 = vmatmul.bf16.gmra.mxu0 %v2165
      %v2496 = vpop.f32.mrf.mxu0
      %v2497 = vadd.f32 %v2448, %v2496
      %v2498 = vpop.f32.mrf.mxu0
      %v2499 = vadd.f32 %v2450, %v2498
      %2500 = vmatmul.bf16.gmra.mxu0 %v2166
      %v2501 = vpop.f32.mrf.mxu0
      %v2502 = vadd.f32 %v2453, %v2501
      %v2503 = vpop.f32.mrf.mxu0
      %v2504 = vadd.f32 %v2455, %v2503
      %2505 = vmatmul.bf16.gmra.mxu0 %v2167
      %v2506 = vpop.f32.mrf.mxu0
      %v2507 = vadd.f32 %v2458, %v2506
      %v2508 = vpop.f32.mrf.mxu0
      %v2509 = vadd.f32 %v2460, %v2508
      %2510 = vmatmul.bf16.gmra.mxu0 %v2168
      %v2511 = vpop.f32.mrf.mxu0
      %v2512 = vadd.f32 %v2463, %v2511
      %v2513 = vpop.f32.mrf.mxu0
      %v2514 = vadd.f32 %v2465, %v2513
      %2515 = vdwg.mxu0
      %v2516 = vadd.f32 %v1726, %v2477
      %v2517 = vadd.f32 %v1728, %v2479
      %v2518 = vadd.f32 %v1731, %v2482
      %v2519 = vadd.f32 %v1733, %v2484
      %v2520 = vadd.f32 %v1736, %v2487
      %v2521 = vadd.f32 %v1738, %v2489
      %v2522 = vadd.f32 %v1741, %v2492
      %v2523 = vadd.f32 %v1743, %v2494
      %v2524 = vadd.f32 %v1746, %v2497
      %v2525 = vadd.f32 %v1748, %v2499
      %v2526 = vadd.f32 %v1751, %v2502
      %v2527 = vadd.f32 %v1753, %v2504
      %v2528 = vadd.f32 %v1756, %v2507
      %v2529 = vadd.f32 %v1758, %v2509
      %v2530 = vadd.f32 %v1761, %v2512
      %v2531 = vadd.f32 %v1763, %v2514
      %v2532 = vld [vmem:[%s2] sm:$0x1]
      %v2534 = vperm.slane %v2532, 0
      %v2536 = vadd.f32 %v2516, %v2534
      %v2537 = vadd.f32 %v2517, %v2534
      %v2538 = vadd.f32 %v2518, %v2534
      %v2539 = vadd.f32 %v2519, %v2534
      %v2540 = vadd.f32 %v2520, %v2534
      %v2541 = vadd.f32 %v2521, %v2534
      %v2542 = vadd.f32 %v2522, %v2534
      %v2543 = vadd.f32 %v2523, %v2534
      %v2544 = vadd.f32 %v2524, %v2534
      %v2545 = vadd.f32 %v2525, %v2534
      %v2546 = vadd.f32 %v2526, %v2534
      %v2547 = vadd.f32 %v2527, %v2534
      %v2548 = vadd.f32 %v2528, %v2534
      %v2549 = vadd.f32 %v2529, %v2534
      %v2550 = vadd.f32 %v2530, %v2534
      %v2551 = vadd.f32 %v2531, %v2534
      %v2552 = vld [vmem:[%s243] sm:$0xf]
      %v2553 = vld [vmem:[%s243 + $0x4] sm:$0xf]
      %v2554 = vld [vmem:[%s243 + $0x8] sm:$0xf]
      %v2555 = vld [vmem:[%s243 + $0xc] sm:$0xf]
      %v2556 = vld [vmem:[%s243 + $0x10] sm:$0xf]
      %v2557 = vld [vmem:[%s243 + $0x14] sm:$0xf]
      %v2558 = vld [vmem:[%s243 + $0x18] sm:$0xf]
      %v2559 = vld [vmem:[%s243 + $0x1c] sm:$0xf]
      %v2560 = vld [vmem:[%s243 + $0x20] sm:$0xf]
      %v2561 = vld [vmem:[%s243 + $0x24] sm:$0xf]
      %v2562 = vld [vmem:[%s243 + $0x28] sm:$0xf]
      %v2563 = vld [vmem:[%s243 + $0x2c] sm:$0xf]
      %v2564 = vld [vmem:[%s243 + $0x30] sm:$0xf]
      %v2565 = vld [vmem:[%s243 + $0x34] sm:$0xf]
      %v2566 = vld [vmem:[%s243 + $0x38] sm:$0xf]
      %v2567 = vld [vmem:[%s243 + $0x3c] sm:$0xf]
      %v2568 = vunpack.c.l.bf16 %v2552
      %v2569 = vunpack.c.l.bf16 %v2553
      %v2570 = vunpack.c.l.bf16 %v2554
      %v2571 = vunpack.c.l.bf16 %v2555
      %v2572 = vunpack.c.l.bf16 %v2556
      %v2573 = vunpack.c.l.bf16 %v2557
      %v2574 = vunpack.c.l.bf16 %v2558
      %v2575 = vunpack.c.l.bf16 %v2559
      %v2576 = vunpack.c.l.bf16 %v2560
      %v2577 = vunpack.c.l.bf16 %v2561
      %v2578 = vunpack.c.l.bf16 %v2562
      %v2579 = vunpack.c.l.bf16 %v2563
      %v2580 = vunpack.c.l.bf16 %v2564
      %v2581 = vunpack.c.l.bf16 %v2565
      %v2582 = vunpack.c.l.bf16 %v2566
      %v2583 = vunpack.c.l.bf16 %v2567
      %v2584 = vadd.f32 %v2536, %v2568
      %v2585 = vadd.f32 %v2537, %v2569
      %v2586 = vadd.f32 %v2538, %v2570
      %v2587 = vadd.f32 %v2539, %v2571
      %v2588 = vadd.f32 %v2540, %v2572
      %v2589 = vadd.f32 %v2541, %v2573
      %v2590 = vadd.f32 %v2542, %v2574
      %v2591 = vadd.f32 %v2543, %v2575
      %v2592 = vadd.f32 %v2544, %v2576
      %v2593 = vadd.f32 %v2545, %v2577
      %v2594 = vadd.f32 %v2546, %v2578
      %v2595 = vadd.f32 %v2547, %v2579
      %v2596 = vadd.f32 %v2548, %v2580
      %v2597 = vadd.f32 %v2549, %v2581
      %v2598 = vadd.f32 %v2550, %v2582
      %v2599 = vadd.f32 %v2551, %v2583
      %v2600 = vmax.f32 %v2584, 0.0
      %v2601 = vmax.f32 %v2585, 0.0
      %v2602 = vmax.f32 %v2586, 0.0
      %v2603 = vmax.f32 %v2587, 0.0
      %v2604 = vmax.f32 %v2588, 0.0
      %v2605 = vmax.f32 %v2589, 0.0
      %v2606 = vmax.f32 %v2590, 0.0
      %v2607 = vmax.f32 %v2591, 0.0
      %v2608 = vmax.f32 %v2592, 0.0
      %v2609 = vmax.f32 %v2593, 0.0
      %v2610 = vmax.f32 %v2594, 0.0
      %v2611 = vmax.f32 %v2595, 0.0
      %v2612 = vmax.f32 %v2596, 0.0
      %v2613 = vmax.f32 %v2597, 0.0
      %v2614 = vmax.f32 %v2598, 0.0
      %v2615 = vmax.f32 %v2599, 0.0
      %2616 = vst [vmem:[%s253] sm:$0xff] %v2600
      %2617 = vst [vmem:[%s253 + $0x8] sm:$0xff] %v2601
      %2618 = vst [vmem:[%s253 + $0x10] sm:$0xff] %v2602
      %2619 = vst [vmem:[%s253 + $0x18] sm:$0xff] %v2603
      %2620 = vst [vmem:[%s253 + $0x20] sm:$0xff] %v2604
      %2621 = vst [vmem:[%s253 + $0x28] sm:$0xff] %v2605
      %2622 = vst [vmem:[%s253 + $0x30] sm:$0xff] %v2606
      %2623 = vst [vmem:[%s253 + $0x38] sm:$0xff] %v2607
      %2624 = vst [vmem:[%s253 + $0x40] sm:$0xff] %v2608
      %2625 = vst [vmem:[%s253 + $0x48] sm:$0xff] %v2609
      %2626 = vst [vmem:[%s253 + $0x50] sm:$0xff] %v2610
      %2627 = vst [vmem:[%s253 + $0x58] sm:$0xff] %v2611
      %2628 = vst [vmem:[%s253 + $0x60] sm:$0xff] %v2612
      %2629 = vst [vmem:[%s253 + $0x68] sm:$0xff] %v2613
      %2630 = vst [vmem:[%s253 + $0x70] sm:$0xff] %v2614
      %2631 = vst [vmem:[%s253 + $0x78] sm:$0xff] %v2615
      %s2632 = smul.u32 %s19, 2
      %s2633 = sadd.s32 %s2632, %s20
      %s2634 = smul.u32 16, %s2633
      %p2635 = scmp.lt.s32.totalorder %s2634, 63
      %s2636 = scalar_select %p2635, %s2634, 63
      %s2637 = smul.addr %s2636, 8
      %s2638 = scalar_lea.vmem %s4, %s2637
      // Predicated region
      $region37: #{basic_block_forward.3} parent=35 // pred_check
        %p2639 = pneg %p147
      $region38: #{basic_block_forward.3} parent=35 // pred_check_branch
        %2641 = sbr.rel (%p2639) target = $region40
      $region39: #{basic_block_forward.3} parent=35 // pred_region
        %s2642 = smul.u32 %s19, 2
        %s2643 = sadd.s32 %s2642, %s20
        %s2644 = smul.u32 16, %s2643
      $region40: #{basic_block_forward.3} parent=35 // pred_fallthru
        _
    $region36: #{basic_block_forward.3} parent=5 // pred_fallthru
      _
    %p2645 = scmp.le.s32.totalorder 2, %s10
    // Predicated region
    $region41: #{basic_block_forward.3} parent=5 // pred_check
      %p2646 = pneg %p2645
    $region42: #{basic_block_forward.3} parent=5 // pred_check_branch
      %2648 = sbr.rel (%p2646) target = $region44
    $region43: #{basic_block_forward.3} parent=5 // pred_region
      %s2649 = ssub.s32 %s10, 2
      // Predicated region
      $region45: #{basic_block_forward.3} parent=43 // pred_check
        %p2650 = pneg %p153
      $region46: #{basic_block_forward.3} parent=43 // pred_check_branch
        %2652 = sbr.rel (%p2650) target = $region48
      $region47: #{basic_block_forward.3} parent=43 // pred_region
        %s2653 = smul.u32 %s21, 2
        %s2654 = sadd.s32 %s2653, %s22
        %s2655 = smul.u32 16, %s2654
        %p2656 = scmp.lt.s32.totalorder %s2655, 63
        %s2657 = scalar_select %p2656, %s2655, 63
        %s2658 = smul.addr %s2657, 8
        %s2659 = scalar_lea.vmem %s4, %s2658
      $region48: #{basic_block_forward.3} parent=43 // pred_fallthru
        _
    $region44: #{basic_block_forward.3} parent=5 // pred_fallthru
      _
  $region6: #{basic_block_forward.3} parent=0 // loop_footer
    %s14 = sadd.s32 1, %s10
  $region7: #{basic_block_forward.3} parent=0 // loop_footer_branch
    %9 = sbr.rel target = $region3
  $region8: #{basic_block_forward.3} parent=0 // loop_exit
    _

</llo_original>
